<compile_context>
chip_gen: v7x
topology: tpu7x:2x2x1
jax: 0.10.0
libtpu: 0.0.40
codegen_flags: <defaults>
</compile_context>

<pallas_src>
import functools
import math

import jax
import jax.numpy as jnp
from jax.experimental import pallas as pl
from jax.experimental.pallas import tpu as pltpu


def _cdiv(a, b):
    return -(-a // b)


def _channel_tiling(c_in):
    """Pad C to a multiple of 128 and pick the per-grid-step channel tile."""
    c_pad = _cdiv(c_in, 128) * 128
    cb = c_pad if c_pad <= 256 else 128
    return c_pad, cb, c_pad // cb


def _vmem_limit_bytes():
    # v5e/v6e: 128 MiB physical VMEM, v7x: 64 MiB -> derive limit per chip.
    try:
        cap = pltpu.get_tpu_info().vmem_capacity_bytes
        return int(min(100 * 1024 * 1024, max(32 * 1024 * 1024, cap * 0.85)))
    except Exception:
        return 64 * 1024 * 1024


# Keep the packed weight VMEM-resident (constant index_map) below this size.
_WEIGHT_RESIDENT_BYTES = 4 * 1024 * 1024


# ---------------------------------------------------------------------------
# Pallas kernel: dilated conv (wide-K tap-packed matmul) + folded BN + ReLU
# ---------------------------------------------------------------------------
def _make_kernel(tap_offsets, m_rows, m_sub, cb, nct, weight_resident, relu):
    n_taps = len(tap_offsets)
    use_staging = n_taps > 1
    m_starts = tuple(range(0, m_rows, m_sub))

    def kernel(x_ref, w_ref, s_ref, b_ref, o_ref, *scratch):
        # x_ref : (r_rows, cb) bf16   flattened padded activation (one batch)
        # w_ref : (nct, K, 256) bf16 resident  OR  (K, 256) bf16 per-tile
        # s_ref, b_ref : (1, 256) f32 folded BN scale / bias
        # o_ref : (m_rows, 256) bf16
        # scratch: [lhs (m_sub, K) bf16 if k>1] [acc (m_rows, 256) f32 if nct>1]
        it = iter(scratch)
        lhs_ref = next(it) if use_staging else None
        acc_ref = next(it) if nct > 1 else None

        c = pl.program_id(1)                       # cin-tile index (reduction)
        w_tile = w_ref[c] if weight_resident else w_ref[...]    # (K, 256)
        scale = s_ref[...]
        bias = b_ref[...]

        for m0 in m_starts:
            rows = min(m_sub, m_rows - m0)
            if use_staging:
                # Pack the k*k shifted activation slices into one wide-K LHS
                # (each tap is a constant flat-row offset, static slices only).
                for t, off in enumerate(tap_offsets):
                    lhs_ref[0:rows, t * cb:(t + 1) * cb] = (
                        x_ref[m0 + off:m0 + off + rows, :])
                lhs = lhs_ref[0:rows, :]
            else:
                off = tap_offsets[0]
                lhs = x_ref[m0 + off:m0 + off + rows, :]

            # ONE MXU matmul per (m sub-tile, cin tile): K = n_taps * cb.
            chunk = jnp.dot(lhs, w_tile, preferred_element_type=jnp.float32)

            if nct == 1:
                y = chunk * scale + bias
                if relu:
                    y = jnp.maximum(y, 0.0)
                o_ref[m0:m0 + rows, :] = y.astype(o_ref.dtype)
            else:
                @pl.when(c == 0)
                def _init(chunk=chunk, m0=m0, rows=rows):
                    acc_ref[m0:m0 + rows, :] = chunk

                @pl.when(jnp.logical_and(c > 0, c < nct - 1))
                def _accum(chunk=chunk, m0=m0, rows=rows):
                    acc_ref[m0:m0 + rows, :] += chunk

                @pl.when(c == nct - 1)
                def _finish(chunk=chunk, m0=m0, rows=rows):
                    y = (acc_ref[m0:m0 + rows, :] + chunk) * scale + bias
                    if relu:
                        y = jnp.maximum(y, 0.0)
                    o_ref[m0:m0 + rows, :] = y.astype(o_ref.dtype)

    return kernel


# ---------------------------------------------------------------------------
# One-time parameter preparation (no per-call weight padding / transposition)
# ---------------------------------------------------------------------------
def prepare_conv_block_params(conv_weight, bn_gamma, bn_beta,
                              bn_running_mean, bn_running_var, eps=1e-5):
    """Fold BN into scale/bias; pack the conv weight as (nct, k*k*cb, O) bf16
    with the K layout expected by the kernel's wide-K LHS (tap-major,
    channel-minor within a cin tile)."""
    o, c_in, kh, kw = conv_weight.shape
    assert kh == kw, "square kernels only"
    assert o % 128 == 0, "out_channels must be lane aligned (256 here)"
    n_taps = kh * kw
    c_pad, cb, nct = _channel_tiling(c_in)

    w_t = jnp.transpose(conv_weight, (2, 3, 1, 0)).reshape(n_taps, c_in, o)
    w_t = jnp.pad(w_t, ((0, 0), (0, c_pad - c_in), (0, 0)))
    w_packed = (w_t.reshape(n_taps, nct, cb, o)
                .transpose(1, 0, 2, 3)
                .reshape(nct, n_taps * cb, o)
                .astype(jnp.bfloat16))

    scale = (bn_gamma / jnp.sqrt(bn_running_var + eps)).astype(jnp.float32)
    bias = (bn_beta - bn_running_mean * scale).astype(jnp.float32)
    return w_packed, scale.reshape(1, o), bias.reshape(1, o)


# ---------------------------------------------------------------------------
# Forward pass (NHWC core + NCHW wrapper matching the PyTorch module)
# ---------------------------------------------------------------------------
@functools.partial(jax.jit, static_argnames=("kernel_size", "dilation", "relu"))
def conv_block_forward_nhwc(x_nhwc, w_packed, scale, bias, *,
                            kernel_size, dilation, relu=True):
    """Fused conv+BN+ReLU on NHWC input; returns NHWC bf16 (lane-dense C=256)."""
    k, d = kernel_size, dilation
    n, h, w, c_in = x_nhwc.shape
    nct, k_t, o_ch = w_packed.shape
    n_taps = k * k
    assert k_t % n_taps == 0
    cb = k_t // n_taps
    c_pad = nct * cb
    assert c_pad >= c_in

    # PyTorch padding='same' (stride 1): total pad d*(k-1), extra on hi side.
    total = d * (k - 1)
    pad_lo = total // 2
    pad_hi = total - pad_lo
    wp = w + total
    # Extra hi rows so the largest tap offset never reads out of bounds
    # (merged with the spatial/channel pad into a single jnp.pad).
    extra_h = _cdiv(total, wp)
    r_rows = (h + total + extra_h) * wp
    m_rows = h * wp              # output rows (wp - w junk cols per row)

    xp = jnp.pad(x_nhwc.astype(jnp.bfloat16),
                 ((0, 0), (pad_lo, pad_hi + extra_h), (pad_lo, pad_hi),
                  (0, c_pad - c_in)))
    x_flat = xp.reshape(n, r_rows, c_pad)

    # Tap (dy, dx) of the dilated k x k stencil = constant flat-row offset.
    tap_offsets = tuple(dy * d * wp + dx * d
                        for dy in range(k) for dx in range(k))

    m_sub = min(m_rows, 1024)    # spatial sub-tile for the wide-K LHS staging
    weight_resident = (w_packed.size * w_packed.dtype.itemsize
                       <= _WEIGHT_RESIDENT_BYTES)

    if weight_resident:
        # Full packed weight fetched once, resident for the whole grid.
        w_spec = pl.BlockSpec((nct, k_t, o_ch), lambda b, c: (0, 0, 0))
    else:
        # TODO(synk): very large C re-fetches the weight once per batch element.
        w_spec = pl.BlockSpec((None, k_t, o_ch), lambda b, c: (c, 0, 0))

    scratch = []
    if n_taps > 1:
        scratch.append(pltpu.VMEM((m_sub, k_t), jnp.bfloat16))
    if nct > 1:
        scratch.append(pltpu.VMEM((m_rows, o_ch), jnp.float32))

    out_flat = pl.pallas_call(
        _make_kernel(tap_offsets, m_rows, m_sub, cb, nct, weight_resident,
                     relu),
        out_shape=jax.ShapeDtypeStruct((n, m_rows, o_ch), jnp.bfloat16),
        grid_spec=pltpu.PrefetchScalarGridSpec(
            num_scalar_prefetch=0,
            grid=(n, nct),
            in_specs=[
                pl.BlockSpec((None, r_rows, cb), lambda b, c: (b, 0, c)),
                w_spec,
                pl.BlockSpec((1, o_ch), lambda b, c: (0, 0)),
                pl.BlockSpec((1, o_ch), lambda b, c: (0, 0)),
            ],
            out_specs=pl.BlockSpec((None, m_rows, o_ch),
                                   lambda b, c: (b, 0, 0)),
            scratch_shapes=scratch,
        ),
        compiler_params=pltpu.CompilerParams(
            dimension_semantics=("parallel", "arbitrary"),
            vmem_limit_bytes=_vmem_limit_bytes(),
        ),
    )(x_flat, w_packed, scale, bias)

    # Drop the junk pad columns (cheap: bf16, fuses with downstream ops).
    return out_flat.reshape(n, h, wp, o_ch)[:, :, :w, :]


@functools.partial(jax.jit, static_argnames=("kernel_size", "dilation", "relu"))
def conv_block_forward(x_nchw, w_packed, scale, bias, *,
                       kernel_size, dilation, relu=True):
    """Matches ConvBlock.forward: NCHW f32 in -> NCHW f32 out."""
    x_nhwc = jnp.transpose(x_nchw, (0, 2, 3, 1))
    out = conv_block_forward_nhwc(x_nhwc, w_packed, scale, bias,
                                  kernel_size=kernel_size, dilation=dilation,
                                  relu=relu)
    # transpose + slice + cast fuse into one XLA copy reading bf16.
    return jnp.transpose(out, (0, 3, 1, 2)).astype(x_nchw.dtype)


# ---------------------------------------------------------------------------
# Test
# ---------------------------------------------------------------------------
def _reference_conv_block(x_nchw, conv_w, scale, bias, k, d, relu=True):
    n, c_in, h, w = x_nchw.shape
    o = conv_w.shape[0]
    total = d * (k - 1)
    p_lo, p_hi = total // 2, total - total // 2
    xb = x_nchw.astype(jnp.bfloat16).astype(jnp.float32)
    wb = conv_w.astype(jnp.bfloat16).astype(jnp.float32)
    xpad = jnp.pad(jnp.transpose(xb, (0, 2, 3, 1)),
                   ((0, 0), (p_lo, p_hi), (p_lo, p_hi), (0, 0)))
    ref = jnp.zeros((n, h, w, o), jnp.float32)
    for dy in range(k):
        for dx in range(k):
            win = xpad[:, dy * d:dy * d + h, dx * d:dx * d + w, :]
            ref = ref + jnp.einsum('nhwc,oc->nhwo', win, wb[:, :, dy, dx],
                                   precision=jax.lax.Precision.HIGHEST)
    ref = ref * scale.reshape(1, 1, 1, -1) + bias.reshape(1, 1, 1, -1)
    if relu:
        ref = jnp.maximum(ref, 0.0)
    ref = ref.astype(jnp.bfloat16).astype(jnp.float32)  # kernel writes bf16
    return jnp.transpose(ref, (0, 3, 1, 2))


def _run_case(key, *, in_channels, kernel_size, dilation, batch, height,
              width, tol=5e-2):
    out_channels = 256
    kx, kw_, kg, kb = jax.random.split(key, 4)
    x = jax.random.normal(kx, (batch, in_channels, height, width), jnp.float32)
    fan_in = in_channels * kernel_size * kernel_size
    conv_w = jax.random.normal(
        kw_, (out_channels, in_channels, kernel_size, kernel_size),
        jnp.float32) / math.sqrt(fan_in)
    gamma = jax.random.uniform(kg, (out_channels,), jnp.float32, 0.5, 1.0)
    beta = jax.random.normal(kb, (out_channels,), jnp.float32) * 0.05
    running_mean = jnp.zeros((out_channels,), jnp.float32)
    running_var = jnp.ones((out_channels,), jnp.float32)

    w_packed, scale, bias = prepare_conv_block_params(
        conv_w, gamma, beta, running_mean, running_var)

    out = conv_block_forward(x, w_packed, scale, bias,
                             kernel_size=kernel_size, dilation=dilation)
    out = jax.block_until_ready(out)
    assert out.shape == (batch, out_channels, height, width), out.shape
    assert bool(jnp.all(jnp.isfinite(out)))

    ref = _reference_conv_block(x, conv_w, scale, bias, kernel_size, dilation)
    err = float(jnp.max(jnp.abs(out - ref)))
    assert err < tol, f"max abs error {err} (C={in_channels}, k={kernel_size}, d={dilation})"


if __name__ == "__main__":
    key = jax.random.PRNGKey(0)
    k0, k1, k2 = jax.random.split(key, 3)
    # 3x3 dilated conv, C < 128 (channel padding + tap-folded wide-K path).
    _run_case(k0, in_channels=64, kernel_size=3, dilation=2,
              batch=2, height=16, width=16)
    # 3x3 conv with several input-channel tiles (f32 accumulator path,
    # VMEM-resident packed weight indexed dynamically per cin tile).
    _run_case(k1, in_channels=384, kernel_size=3, dilation=1,
              batch=1, height=8, width=8)
    # 1x1 conv (no LHS staging, single matmul straight from the input block).
    _run_case(k2, in_channels=256, kernel_size=1, dilation=1,
              batch=2, height=8, width=8)
    print("KERNEL_OK")
</pallas_src>

<mosaic_0001>
module attributes {stable_mosaic.version = 11 : i64} {
  func.func @kernel(%arg0: i32, %arg1: i32, %arg2: memref<1x420x128xbf16, #tpu.memory_space<vmem>>, %arg3: memref<1x1152x256xbf16, #tpu.memory_space<vmem>>, %arg4: memref<1x256xf32, #tpu.memory_space<vmem>>, %arg5: memref<1x256xf32, #tpu.memory_space<vmem>>, %arg6: memref<1x320x256xbf16, #tpu.memory_space<vmem>>, %arg7: memref<320x1152xbf16, #tpu.memory_space<vmem>>) attributes {dimension_semantics = [#tpu.dimension_semantics<parallel>, #tpu.dimension_semantics<arbitrary>], iteration_bounds = array<i64: 2, 1>, scalar_prefetch = 0 : i64, scratch_operands = 1 : i64, tpu.core_type = #tpu.core_type<tc>, window_params = [{transform_indices = @transform_0, window_bounds = array<i64: 1, 420, 128>}, {pipeline_mode = #tpu.pipeline_mode<synchronous>, transform_indices = @transform_1, window_bounds = array<i64: 1, 1152, 256>}, {pipeline_mode = #tpu.pipeline_mode<synchronous>, transform_indices = @transform_2, window_bounds = array<i64: 1, 256>}, {pipeline_mode = #tpu.pipeline_mode<synchronous>, transform_indices = @transform_3, window_bounds = array<i64: 1, 256>}, {transform_indices = @transform_4, window_bounds = array<i64: 1, 320, 256>}]} {
    %0 = arith.index_cast %arg1 : i32 to index
    %c0 = arith.constant 0 : index
    %c0_0 = arith.constant 0 : index
    %1 = vector.load %arg3[%0, %c0, %c0_0] : memref<1x1152x256xbf16, #tpu.memory_space<vmem>>, vector<1x1152x256xbf16>
    %2 = vector.shape_cast %1 : vector<1x1152x256xbf16> to vector<1152x256xbf16>
    %c0_1 = arith.constant 0 : index
    %c0_2 = arith.constant 0 : index
    %3 = vector.load %arg4[%c0_1, %c0_2] : memref<1x256xf32, #tpu.memory_space<vmem>>, vector<1x256xf32>
    %c0_3 = arith.constant 0 : index
    %c0_4 = arith.constant 0 : index
    %4 = vector.load %arg5[%c0_3, %c0_4] : memref<1x256xf32, #tpu.memory_space<vmem>>, vector<1x256xf32>
    %c0_5 = arith.constant 0 : index
    %c0_6 = arith.constant 0 : index
    %c0_7 = arith.constant 0 : index
    %5 = vector.load %arg2[%c0_5, %c0_6, %c0_7] : memref<1x420x128xbf16, #tpu.memory_space<vmem>>, vector<1x320x128xbf16>
    %6 = vector.shape_cast %5 : vector<1x320x128xbf16> to vector<320x128xbf16>
    %c0_8 = arith.constant 0 : index
    %c0_9 = arith.constant 0 : index
    %7 = vector.load %arg7[%c0_8, %c0_9] : memref<320x1152xbf16, #tpu.memory_space<vmem>>, vector<320x128xbf16>
    tpu.vector_store %arg7[%c0_8, %c0_9], %6 {strides = array<i32>} : memref<320x1152xbf16, #tpu.memory_space<vmem>>, vector<320x128xbf16>,
    %c0_10 = arith.constant 0 : index
    %c2 = arith.constant 2 : index
    %c0_11 = arith.constant 0 : index
    %8 = vector.load %arg2[%c0_10, %c2, %c0_11] : memref<1x420x128xbf16, #tpu.memory_space<vmem>>, vector<1x320x128xbf16>
    %9 = vector.shape_cast %8 : vector<1x320x128xbf16> to vector<320x128xbf16>
    %c0_12 = arith.constant 0 : index
    %c128 = arith.constant 128 : index
    %10 = vector.load %arg7[%c0_12, %c128] : memref<320x1152xbf16, #tpu.memory_space<vmem>>, vector<320x128xbf16>
    tpu.vector_store %arg7[%c0_12, %c128], %9 {strides = array<i32>} : memref<320x1152xbf16, #tpu.memory_space<vmem>>, vector<320x128xbf16>,
    %c0_13 = arith.constant 0 : index
    %c4 = arith.constant 4 : index
    %c0_14 = arith.constant 0 : index
    %11 = vector.load %arg2[%c0_13, %c4, %c0_14] : memref<1x420x128xbf16, #tpu.memory_space<vmem>>, vector<1x320x128xbf16>
    %12 = vector.shape_cast %11 : vector<1x320x128xbf16> to vector<320x128xbf16>
    %c0_15 = arith.constant 0 : index
    %c256 = arith.constant 256 : index
    %13 = vector.load %arg7[%c0_15, %c256] : memref<320x1152xbf16, #tpu.memory_space<vmem>>, vector<320x128xbf16>
    tpu.vector_store %arg7[%c0_15, %c256], %12 {strides = array<i32>} : memref<320x1152xbf16, #tpu.memory_space<vmem>>, vector<320x128xbf16>,
    %c0_16 = arith.constant 0 : index
    %c40 = arith.constant 40 : index
    %c0_17 = arith.constant 0 : index
    %14 = vector.load %arg2[%c0_16, %c40, %c0_17] : memref<1x420x128xbf16, #tpu.memory_space<vmem>>, vector<1x320x128xbf16>
    %15 = vector.shape_cast %14 : vector<1x320x128xbf16> to vector<320x128xbf16>
    %c0_18 = arith.constant 0 : index
    %c384 = arith.constant 384 : index
    %16 = vector.load %arg7[%c0_18, %c384] : memref<320x1152xbf16, #tpu.memory_space<vmem>>, vector<320x128xbf16>
    tpu.vector_store %arg7[%c0_18, %c384], %15 {strides = array<i32>} : memref<320x1152xbf16, #tpu.memory_space<vmem>>, vector<320x128xbf16>,
    %c0_19 = arith.constant 0 : index
    %c42 = arith.constant 42 : index
    %c0_20 = arith.constant 0 : index
    %17 = vector.load %arg2[%c0_19, %c42, %c0_20] : memref<1x420x128xbf16, #tpu.memory_space<vmem>>, vector<1x320x128xbf16>
    %18 = vector.shape_cast %17 : vector<1x320x128xbf16> to vector<320x128xbf16>
    %c0_21 = arith.constant 0 : index
    %c512 = arith.constant 512 : index
    %19 = vector.load %arg7[%c0_21, %c512] : memref<320x1152xbf16, #tpu.memory_space<vmem>>, vector<320x128xbf16>
    tpu.vector_store %arg7[%c0_21, %c512], %18 {strides = array<i32>} : memref<320x1152xbf16, #tpu.memory_space<vmem>>, vector<320x128xbf16>,
    %c0_22 = arith.constant 0 : index
    %c44 = arith.constant 44 : index
    %c0_23 = arith.constant 0 : index
    %20 = vector.load %arg2[%c0_22, %c44, %c0_23] : memref<1x420x128xbf16, #tpu.memory_space<vmem>>, vector<1x320x128xbf16>
    %21 = vector.shape_cast %20 : vector<1x320x128xbf16> to vector<320x128xbf16>
    %c0_24 = arith.constant 0 : index
    %c640 = arith.constant 640 : index
    %22 = vector.load %arg7[%c0_24, %c640] : memref<320x1152xbf16, #tpu.memory_space<vmem>>, vector<320x128xbf16>
    tpu.vector_store %arg7[%c0_24, %c640], %21 {strides = array<i32>} : memref<320x1152xbf16, #tpu.memory_space<vmem>>, vector<320x128xbf16>,
    %c0_25 = arith.constant 0 : index
    %c80 = arith.constant 80 : index
    %c0_26 = arith.constant 0 : index
    %23 = vector.load %arg2[%c0_25, %c80, %c0_26] : memref<1x420x128xbf16, #tpu.memory_space<vmem>>, vector<1x320x128xbf16>
    %24 = vector.shape_cast %23 : vector<1x320x128xbf16> to vector<320x128xbf16>
    %c0_27 = arith.constant 0 : index
    %c768 = arith.constant 768 : index
    %25 = vector.load %arg7[%c0_27, %c768] : memref<320x1152xbf16, #tpu.memory_space<vmem>>, vector<320x128xbf16>
    tpu.vector_store %arg7[%c0_27, %c768], %24 {strides = array<i32>} : memref<320x1152xbf16, #tpu.memory_space<vmem>>, vector<320x128xbf16>,
    %c0_28 = arith.constant 0 : index
    %c82 = arith.constant 82 : index
    %c0_29 = arith.constant 0 : index
    %26 = vector.load %arg2[%c0_28, %c82, %c0_29] : memref<1x420x128xbf16, #tpu.memory_space<vmem>>, vector<1x320x128xbf16>
    %27 = vector.shape_cast %26 : vector<1x320x128xbf16> to vector<320x128xbf16>
    %c0_30 = arith.constant 0 : index
    %c896 = arith.constant 896 : index
    %28 = vector.load %arg7[%c0_30, %c896] : memref<320x1152xbf16, #tpu.memory_space<vmem>>, vector<320x128xbf16>
    tpu.vector_store %arg7[%c0_30, %c896], %27 {strides = array<i32>} : memref<320x1152xbf16, #tpu.memory_space<vmem>>, vector<320x128xbf16>,
    %c0_31 = arith.constant 0 : index
    %c84 = arith.constant 84 : index
    %c0_32 = arith.constant 0 : index
    %29 = vector.load %arg2[%c0_31, %c84, %c0_32] : memref<1x420x128xbf16, #tpu.memory_space<vmem>>, vector<1x320x128xbf16>
    %30 = vector.shape_cast %29 : vector<1x320x128xbf16> to vector<320x128xbf16>
    %c0_33 = arith.constant 0 : index
    %c1024 = arith.constant 1024 : index
    %31 = vector.load %arg7[%c0_33, %c1024] : memref<320x1152xbf16, #tpu.memory_space<vmem>>, vector<320x128xbf16>
    tpu.vector_store %arg7[%c0_33, %c1024], %30 {strides = array<i32>} : memref<320x1152xbf16, #tpu.memory_space<vmem>>, vector<320x128xbf16>,
    %c0_34 = arith.constant 0 : index
    %c0_35 = arith.constant 0 : index
    %32 = vector.load %arg7[%c0_34, %c0_35] : memref<320x1152xbf16, #tpu.memory_space<vmem>>, vector<320x1152xbf16>
    %cst = arith.constant dense<0.000000e+00> : vector<320x256xf32>
    %33 = tpu.matmul %32, %2, %cst {dimension_numbers = #tpu.dot_dimension_numbers<[1], [0], [0], [1], [0, 0, 1, 1], [], []>} : vector<320x1152xbf16>, vector<1152x256xbf16>, vector<320x256xf32> -> vector<320x256xf32>
    %34 = vector.broadcast %3 : vector<1x256xf32> to vector<320x256xf32>
    %35 = arith.mulf %33, %34 : vector<320x256xf32>
    %36 = vector.broadcast %4 : vector<1x256xf32> to vector<320x256xf32>
    %37 = arith.addf %35, %36 : vector<320x256xf32>
    %cst_36 = arith.constant 0.000000e+00 : f32
    %38 = vector.broadcast %cst_36 : f32 to vector<320x256xf32>
    %39 = arith.maximumf %37, %38 : vector<320x256xf32>
    %40 = arith.truncf %39 : vector<320x256xf32> to vector<320x256xbf16>
    %c0_37 = arith.constant 0 : index
    %c0_38 = arith.constant 0 : index
    %c0_39 = arith.constant 0 : index
    %41 = vector.load %arg6[%c0_37, %c0_38, %c0_39] : memref<1x320x256xbf16, #tpu.memory_space<vmem>>, vector<1x320x256xbf16>
    %42 = vector.shape_cast %41 : vector<1x320x256xbf16> to vector<320x256xbf16>
    %43 = vector.shape_cast %40 : vector<320x256xbf16> to vector<1x320x256xbf16>
    tpu.vector_store %arg6[%c0_37, %c0_38, %c0_39], %43 {strides = array<i32>} : memref<1x320x256xbf16, #tpu.memory_space<vmem>>, vector<1x320x256xbf16>,
    return
  }
  func.func @transform_0(%arg0: i32, %arg1: i32) -> (i32, i32, i32) {
    %c0_i32 = arith.constant 0 : i32
    %c0_i32_0 = arith.constant 0 : i32
    return %arg0, %c0_i32, %arg1 : i32, i32, i32
  }
  func.func @transform_1(%arg0: i32, %arg1: i32) -> (i32, i32, i32) {
    %c0_i32 = arith.constant 0 : i32
    %c0_i32_0 = arith.constant 0 : i32
    %c0_i32_1 = arith.constant 0 : i32
    %c0_i32_2 = arith.constant 0 : i32
    return %c0_i32, %c0_i32_0, %c0_i32_1 : i32, i32, i32
  }
  func.func @transform_2(%arg0: i32, %arg1: i32) -> (i32, i32) {
    %c0_i32 = arith.constant 0 : i32
    %c0_i32_0 = arith.constant 0 : i32
    %c0_i32_1 = arith.constant 0 : i32
    return %c0_i32, %c0_i32_0 : i32, i32
  }
  func.func @transform_3(%arg0: i32, %arg1: i32) -> (i32, i32) {
    %c0_i32 = arith.constant 0 : i32
    %c0_i32_0 = arith.constant 0 : i32
    %c0_i32_1 = arith.constant 0 : i32
    return %c0_i32, %c0_i32_0 : i32, i32
  }
  func.func @transform_4(%arg0: i32, %arg1: i32) -> (i32, i32, i32) {
    %c0_i32 = arith.constant 0 : i32
    %c0_i32_0 = arith.constant 0 : i32
    %c0_i32_1 = arith.constant 0 : i32
    return %arg0, %c0_i32, %c0_i32_0 : i32, i32, i32
  }
}

</mosaic_0001>

<llo_original>
// kernel: conv_block_forward_nhwc.1
$region0: #{conv_block_forward_nhwc.1}
  #allocation0 [shape = 'u32[]', space=smem, size = 0x4, offset = 0x4, fixed_abs, tag = 'smem constant byte address 0x4 - core index']
  #allocation1 [shape = 'u32[144,128]{1,0:T(1,128)}', space=vmem, size = 0x12000, scoped, tag = 'internal scratch']
  #allocation2 [shape = 'bf16[320,1152]{1,0:T(16,128)(2,1)}', space=vmem, size = 0xb4000, scoped, tag = 'scratch operand']
  %s0 = inlined_call_operand.hbm [shape: bf16[2,420,128], index: 0, kind: input, shape index: {}]
  %s1 = inlined_call_operand.hbm [shape: bf16[1,1152,256], index: 1, kind: input, shape index: {}]
  %s2 = inlined_call_operand.hbm [shape: f32[1,256], index: 2, kind: input, shape index: {}]
  %s3 = inlined_call_operand.hbm [shape: f32[1,256], index: 3, kind: input, shape index: {}]
  %s4 = inlined_call_operand.hbm [shape: bf16[2,320,256], index: 4, kind: output, shape index: {}]
  %s5 = sld [smem:[#allocation0]]
  $region65: #{conv_block_forward_nhwc.1} parent=0
    _
  %s7 = ssub.s32 1, %s5
  %s8 = scalar_select 0, %s7, %s5
  $region1: #{conv_block_forward_nhwc.1} parent=0
    #allocation3 [shape = 'u8[217088]{0}', space=vmem, size = 0x35000, scoped, tag = 'input window, operand 0']
    #allocation4 [shape = 's32[2]{0}', space=sflag, size = 0x8, scoped, tag = 'scoped memory for conv_block_forward_nhwc.1']
    #allocation5 [shape = 's32[2]{0}', space=sflag, size = 0x8, scoped, tag = 'scoped memory for conv_block_forward_nhwc.1']
    #allocation6 [shape = 'u8[589824]{0}', space=vmem, size = 0x90000, scoped, tag = 'input window, operand 1, single buffered']
    #allocation7 [shape = 's32[1]{0}', space=sflag, size = 0x4, scoped, tag = 'scoped memory for conv_block_forward_nhwc.1']
    #allocation8 [shape = 'u8[1024]{0}', space=vmem, size = 0x400, scoped, tag = 'input window, operand 2, single buffered']
    #allocation9 [shape = 'u8[1024]{0}', space=vmem, size = 0x400, scoped, tag = 'input window, operand 3, single buffered']
    #allocation10 [shape = 's32[1]{0}', space=sflag, size = 0x4, scoped, tag = 'scoped memory for conv_block_forward_nhwc.1']
    #allocation11 [shape = 'u8[327680]{0}', space=vmem, size = 0x50000, scoped, tag = 'output window, operand 0']
    %9 = vsyncpa [#allocation4], 0
    %s10 = scalar_lea.sflag [#allocation4], 1
    %11 = vsyncpa %s10, 0
    %12 = vsyncpa [#allocation7], 0
    %13 = vsyncpa [#allocation10], 0
    %14 = vsyncpa [#allocation5], 0
    %s15 = scalar_lea.sflag [#allocation5], 1
    %16 = vsyncpa %s15, 0
    loop: start=0, step=1, limit=4
    $region2: #{conv_block_forward_nhwc.1} parent=1 // loop_pre_header
      _
    $region3: #{conv_block_forward_nhwc.1} parent=1 // loop_header
      %s18 = sphi 0, %s22
      %p19 = scmp.ge.s32.totalorder %s18, 4
      %s25 = sphi 0, %s37
      %s26 = sphi 0, %s33
      %s27 = sphi 0, %s25
      %s28 = sphi 0, %s26
      %s29 = sphi 0, %s27
      %s30 = sphi 0, %s28
      %s42 = sphi 0, %s44
      %s45 = sphi 0, %s42
      %s46 = sphi 0, %s45
      %s62 = sphi 0, %s46
      %s66 = sphi 0, %s66
      %s68 = sphi 0, %s66
      %s69 = sphi 0, %s68
      %s83 = sphi 0, %s69
      %s87 = sphi 0, %s87
      %s89 = sphi 0, %s87
      %s90 = sphi 0, %s89
      %s104 = sphi 0, %s90
      %s108 = sphi 0, %s108
      %s110 = sphi 0, %s108
      %s111 = sphi 0, %s110
      %s125 = sphi 0, %s111
      %s131 = sphi 0, %s133
      %s134 = sphi 0, %s131
      %s135 = sphi 0, %s134
      %s151 = sphi 0, %s135
    $region4: #{conv_block_forward_nhwc.1} parent=1 // loop_header_branch
      %21 = sbr.rel (%p19) target = $region8
    $region5: #{conv_block_forward_nhwc.1} parent=1 // loop_body
      %s23 = ssub.s32 %s18, 1
      %s24 = ssub.s32 %s18, 2
      %s31 = sadd.s32 1, %s26
      %p32 = scmp.ge.s32.totalorder %s31, 1
      %s33 = scalar_select %p32, 0, %s31
      %s34 = sadd.s32 1, %s25
      %s35 = scalar_select %p32, %s34, %s25
      %p36 = scmp.ge.s32.totalorder %s35, 2
      %s37 = scalar_select %p36, 0, %s35
      %s38 = ssub.s32 %s25, %s37
      %s39 = ssub.s32 %s26, %s33
      %s40 = sor.u32 %s38, %s39
      %p41 = scmp.eq.s32.totalorder %s40, 0
      %s43 = sadd.s32 %s42, 1
      %s44 = scalar_select %p41, %s42, %s43
      %p47 = pneg %p41
      %p48 = scmp.eq.s32.totalorder %s18, 1
      %p49 = por %p47, %p48
      %p50 = scmp.ne.s32.totalorder %s42, %s45
      %p51 = scmp.eq.s32.totalorder %s18, 0
      %p52 = por %p50, %p51
      %p53 = scmp.ne.s32.totalorder %s42, %s45
      %p54 = scmp.eq.s32.totalorder %s23, 1
      %p55 = por %p53, %p54
      %p56 = scmp.ne.s32.totalorder %s45, %s46
      %p57 = scmp.eq.s32.totalorder %s23, 0
      %p58 = por %p56, %p57
      %p59 = scmp.ne.s32.totalorder %s45, %s46
      %p60 = scmp.eq.s32.totalorder %s24, 1
      %p61 = por %p59, %p60
      %p63 = scmp.ne.s32.totalorder %s46, %s62
      %p64 = scmp.eq.s32.totalorder %s24, 0
      %p65 = por %p63, %p64
      %s67 = sadd.s32 %s66, 1
      %p70 = scmp.eq.s32.totalorder %s18, 1
      %p71 = scmp.ne.s32.totalorder %s66, %s68
      %p72 = scmp.eq.s32.totalorder %s18, 0
      %p73 = por %p71, %p72
      %p74 = scmp.ne.s32.totalorder %s66, %s68
      %p75 = scmp.eq.s32.totalorder %s23, 1
      %p76 = por %p74, %p75
      %p77 = scmp.ne.s32.totalorder %s68, %s69
      %p78 = scmp.eq.s32.totalorder %s23, 0
      %p79 = por %p77, %p78
      %p80 = scmp.ne.s32.totalorder %s68, %s69
      %p81 = scmp.eq.s32.totalorder %s24, 1
      %p82 = por %p80, %p81
      %p84 = scmp.ne.s32.totalorder %s69, %s83
      %p85 = scmp.eq.s32.totalorder %s24, 0
      %p86 = por %p84, %p85
      %s88 = sadd.s32 %s87, 1
      %p91 = scmp.eq.s32.totalorder %s18, 1
      %p92 = scmp.ne.s32.totalorder %s87, %s89
      %p93 = scmp.eq.s32.totalorder %s18, 0
      %p94 = por %p92, %p93
      %p95 = scmp.ne.s32.totalorder %s87, %s89
      %p96 = scmp.eq.s32.totalorder %s23, 1
      %p97 = por %p95, %p96
      %p98 = scmp.ne.s32.totalorder %s89, %s90
      %p99 = scmp.eq.s32.totalorder %s23, 0
      %p100 = por %p98, %p99
      %p101 = scmp.ne.s32.totalorder %s89, %s90
      %p102 = scmp.eq.s32.totalorder %s24, 1
      %p103 = por %p101, %p102
      %p105 = scmp.ne.s32.totalorder %s90, %s104
      %p106 = scmp.eq.s32.totalorder %s24, 0
      %p107 = por %p105, %p106
      %s109 = sadd.s32 %s108, 1
      %p112 = scmp.eq.s32.totalorder %s18, 1
      %p113 = scmp.ne.s32.totalorder %s108, %s110
      %p114 = scmp.eq.s32.totalorder %s18, 0
      %p115 = por %p113, %p114
      %p116 = scmp.ne.s32.totalorder %s108, %s110
      %p117 = scmp.eq.s32.totalorder %s23, 1
      %p118 = por %p116, %p117
      %p119 = scmp.ne.s32.totalorder %s110, %s111
      %p120 = scmp.eq.s32.totalorder %s23, 0
      %p121 = por %p119, %p120
      %p122 = scmp.ne.s32.totalorder %s110, %s111
      %p123 = scmp.eq.s32.totalorder %s24, 1
      %p124 = por %p122, %p123
      %p126 = scmp.ne.s32.totalorder %s111, %s125
      %p127 = scmp.eq.s32.totalorder %s24, 0
      %p128 = por %p126, %p127
      %s129 = ssub.s32 %s25, %s37
      %p130 = scmp.eq.s32.totalorder %s129, 0
      %s132 = sadd.s32 %s131, 1
      %s133 = scalar_select %p130, %s131, %s132
      %p136 = pneg %p130
      %p137 = scmp.eq.s32.totalorder %s18, 1
      %p138 = por %p136, %p137
      %p139 = scmp.ne.s32.totalorder %s131, %s134
      %p140 = scmp.eq.s32.totalorder %s18, 0
      %p141 = por %p139, %p140
      %p142 = scmp.ne.s32.totalorder %s131, %s134
      %p143 = scmp.eq.s32.totalorder %s23, 1
      %p144 = por %p142, %p143
      %p145 = scmp.ne.s32.totalorder %s134, %s135
      %p146 = scmp.eq.s32.totalorder %s23, 0
      %p147 = por %p145, %p146
      %p148 = scmp.ne.s32.totalorder %s134, %s135
      %p149 = scmp.eq.s32.totalorder %s24, 1
      %p150 = por %p148, %p149
      %p152 = scmp.ne.s32.totalorder %s135, %s151
      %p153 = scmp.eq.s32.totalorder %s24, 0
      %p154 = por %p152, %p153
      %p155 = scmp.le.s32.totalorder 1, %s18
      %p156 = scmp.lt.s32.totalorder %s18, 3
      %p157 = pnand %p155, %p156
      %p158 = pneg %p157
      // Predicated region
      $region9: #{conv_block_forward_nhwc.1} parent=5 // pred_check
        _
      $region10: #{conv_block_forward_nhwc.1} parent=5 // pred_check_branch
        %160 = sbr.rel (%p157) target = $region12
      $region11: #{conv_block_forward_nhwc.1} parent=5 // pred_region
        %s161 = ssub.s32 %s18, 1
        // Predicated region
        $region13: #{conv_block_forward_nhwc.1} parent=11 // pred_check
          %p162 = pneg %p79
        $region14: #{conv_block_forward_nhwc.1} parent=11 // pred_check_branch
          %164 = sbr.rel (%p162) target = $region16
        $region15: #{conv_block_forward_nhwc.1} parent=11 // pred_region
          %s166 = ssub.s32 18432, 18432
          %167 = vsyncadd [#allocation7], %s166
          %s168 = sshll.u32 [#allocation6], 4
          %s169 = int_to_ptr.vmem [resolvable:$true] %s168
          %174 = dma.hbm_to_vmem [thread:$0]  %s1, 18432, %s169, [#allocation7], 128, 128, 8
        $region16: #{conv_block_forward_nhwc.1} parent=11 // pred_fallthru
          _
        // Predicated region
        $region17: #{conv_block_forward_nhwc.1} parent=11 // pred_check
          %p175 = pneg %p100
        $region18: #{conv_block_forward_nhwc.1} parent=11 // pred_check_branch
          %177 = sbr.rel (%p175) target = $region20
        $region19: #{conv_block_forward_nhwc.1} parent=11 // pred_region
          %s179 = ssub.s32 32, 32
          %180 = vsyncadd [#allocation7], %s179
          %s182 = sshll.u32 [#allocation8], 4
          %s183 = int_to_ptr.vmem [resolvable:$true] %s182
          %185 = dma.hbm_to_vmem [thread:$0]  %s2, 32, %s183, [#allocation7]
        $region20: #{conv_block_forward_nhwc.1} parent=11 // pred_fallthru
          _
        // Predicated region
        $region21: #{conv_block_forward_nhwc.1} parent=11 // pred_check
          %p186 = pneg %p121
        $region22: #{conv_block_forward_nhwc.1} parent=11 // pred_check_branch
          %188 = sbr.rel (%p186) target = $region24
        $region23: #{conv_block_forward_nhwc.1} parent=11 // pred_region
          %s190 = ssub.s32 32, 32
          %191 = vsyncadd [#allocation10], %s190
          %s193 = sshll.u32 [#allocation9], 4
          %s194 = int_to_ptr.vmem [resolvable:$true] %s193
          %196 = dma.hbm_to_vmem [thread:$0]  %s3, 32, %s194, [#allocation10]
        $region24: #{conv_block_forward_nhwc.1} parent=11 // pred_fallthru
          _
      $region12: #{conv_block_forward_nhwc.1} parent=5 // pred_fallthru
        _
      %p197 = scmp.lt.s32.totalorder %s18, 2
      // Predicated region
      $region25: #{conv_block_forward_nhwc.1} parent=5 // pred_check
        %p198 = pneg %p197
      $region26: #{conv_block_forward_nhwc.1} parent=5 // pred_check_branch
        %200 = sbr.rel (%p198) target = $region28
      $region27: #{conv_block_forward_nhwc.1} parent=5 // pred_region
        // Predicated region
        $region29: #{conv_block_forward_nhwc.1} parent=27 // pred_check
          %p201 = pneg %p52
        $region30: #{conv_block_forward_nhwc.1} parent=27 // pred_check_branch
          %203 = sbr.rel (%p201) target = $region32
        $region31: #{conv_block_forward_nhwc.1} parent=27 // pred_region
          %s204 = sand.u32 %s42, 1
          %s205 = scalar_lea.sflag [#allocation4], %s204
          %s206 = sand.u32 %s42, 1
          %s207 = smul.addr %s206, 212
          %s208 = scalar_lea.vmem [#allocation3], %s207
          %s210 = ssub.s32 3392, 3392
          %211 = vsyncadd %s205, %s210
          %s212 = smul.addr %s25, 53
          %s213 = sadd.s32 %s26, %s212
          %s214 = smul.addr %s213, 64
          %s215 = scalar_lea.hbm %s0, %s214
          %s216 = sshll.u32 %s208, 4
          %s217 = int_to_ptr.vmem [resolvable:$true] %s216
          %222 = dma.hbm_to_vmem [thread:$0]  %s215, 3392, %s217, %s205, 64, 64, 4
        $region32: #{conv_block_forward_nhwc.1} parent=27 // pred_fallthru
          _
      $region28: #{conv_block_forward_nhwc.1} parent=5 // pred_fallthru
        _
      %p223 = scmp.le.s32.totalorder 1, %s18
      %p224 = scmp.lt.s32.totalorder %s18, 3
      %p225 = pnand %p223, %p224
      %p226 = pneg %p225
      // Predicated region
      $region33: #{conv_block_forward_nhwc.1} parent=5 // pred_check
        _
      $region34: #{conv_block_forward_nhwc.1} parent=5 // pred_check_branch
        %228 = sbr.rel (%p225) target = $region36
      $region35: #{conv_block_forward_nhwc.1} parent=5 // pred_region
        %s229 = ssub.s32 %s18, 1
        %s230 = sand.u32 %s45, 1
        %s231 = scalar_lea.sflag [#allocation4], %s230
        %s232 = sand.u32 %s45, 1
        %s233 = smul.addr %s232, 212
        %s234 = scalar_lea.vmem [#allocation3], %s233
        // Predicated region
        $region37: #{conv_block_forward_nhwc.1} parent=35 // pred_check
          %p235 = pneg %p58
        $region38: #{conv_block_forward_nhwc.1} parent=35 // pred_check_branch
          %237 = sbr.rel (%p235) target = $region40
        $region39: #{conv_block_forward_nhwc.1} parent=35 // pred_region
          %238 = dma.done %s231, 3392
        $region40: #{conv_block_forward_nhwc.1} parent=35 // pred_fallthru
          _
        // Predicated region
        $region41: #{conv_block_forward_nhwc.1} parent=35 // pred_check
          %p239 = pneg %p79
        $region42: #{conv_block_forward_nhwc.1} parent=35 // pred_check_branch
          %241 = sbr.rel (%p239) target = $region44
        $region43: #{conv_block_forward_nhwc.1} parent=35 // pred_region
          %242 = dma.done [#allocation7], 18432
        $region44: #{conv_block_forward_nhwc.1} parent=35 // pred_fallthru
          _
        // Predicated region
        $region45: #{conv_block_forward_nhwc.1} parent=35 // pred_check
          %p243 = pneg %p100
        $region46: #{conv_block_forward_nhwc.1} parent=35 // pred_check_branch
          %245 = sbr.rel (%p243) target = $region48
        $region47: #{conv_block_forward_nhwc.1} parent=35 // pred_region
          %246 = dma.done [#allocation7], 32
        $region48: #{conv_block_forward_nhwc.1} parent=35 // pred_fallthru
          _
        // Predicated region
        $region49: #{conv_block_forward_nhwc.1} parent=35 // pred_check
          %p247 = pneg %p121
        $region50: #{conv_block_forward_nhwc.1} parent=35 // pred_check_branch
          %249 = sbr.rel (%p247) target = $region52
        $region51: #{conv_block_forward_nhwc.1} parent=35 // pred_region
          %250 = dma.done [#allocation10], 32
        $region52: #{conv_block_forward_nhwc.1} parent=35 // pred_fallthru
          _
        %s251 = sand.u32 %s45, 1
        %s252 = scalar_lea.sflag [#allocation4], %s251
        %s253 = sand.u32 %s45, 1
        %s254 = smul.addr %s253, 212
        %s255 = scalar_lea.vmem [#allocation3], %s254
        %p256 = pneg %p58
        %p257 = pneg %p55
        %p258 = pneg %p79
        %p259 = pneg %p76
        %p260 = pneg %p100
        %p261 = pneg %p97
        %p262 = pneg %p121
        %p263 = pneg %p118
        %p264 = pneg %p147
        %p265 = pneg %p144
        %s266 = sand.u32 %s134, 1
        %s267 = scalar_lea.sflag [#allocation5], %s266
        %s268 = sand.u32 %s134, 1
        %s269 = smul.addr %s268, 320
        %s270 = scalar_lea.vmem [#allocation11], %s269
        %s272 = smul.u32 %s28, 288
        %s273 = smul.addr %s272, 4
        %s274 = scalar_lea.vmem [#allocation6], %s273
        %v275 = vld [vmem:[%s274] sm:$0xff]
        %v276 = vld [vmem:[%s274 + $0x8] sm:$0xff]
        %v277 = vld [vmem:[%s274 + $0x10] sm:$0xff]
        %v278 = vld [vmem:[%s274 + $0x18] sm:$0xff]
        %v279 = vld [vmem:[%s274 + $0x20] sm:$0xff]
        %v280 = vld [vmem:[%s274 + $0x28] sm:$0xff]
        %v281 = vld [vmem:[%s274 + $0x30] sm:$0xff]
        %v282 = vld [vmem:[%s274 + $0x38] sm:$0xff]
        %v283 = vld [vmem:[%s274 + $0x40] sm:$0xff]
        %v284 = vld [vmem:[%s274 + $0x48] sm:$0xff]
        %v285 = vld [vmem:[%s274 + $0x50] sm:$0xff]
        %v286 = vld [vmem:[%s274 + $0x58] sm:$0xff]
        %v287 = vld [vmem:[%s274 + $0x60] sm:$0xff]
        %v288 = vld [vmem:[%s274 + $0x68] sm:$0xff]
        %v289 = vld [vmem:[%s274 + $0x70] sm:$0xff]
        %v290 = vld [vmem:[%s274 + $0x78] sm:$0xff]
        %v291 = vld [vmem:[%s274 + $0x80] sm:$0xff]
        %v292 = vld [vmem:[%s274 + $0x88] sm:$0xff]
        %v293 = vld [vmem:[%s274 + $0x90] sm:$0xff]
        %v294 = vld [vmem:[%s274 + $0x98] sm:$0xff]
        %v295 = vld [vmem:[%s274 + $0xa0] sm:$0xff]
        %v296 = vld [vmem:[%s274 + $0xa8] sm:$0xff]
        %v297 = vld [vmem:[%s274 + $0xb0] sm:$0xff]
        %v298 = vld [vmem:[%s274 + $0xb8] sm:$0xff]
        %v299 = vld [vmem:[%s274 + $0xc0] sm:$0xff]
        %v300 = vld [vmem:[%s274 + $0xc8] sm:$0xff]
        %v301 = vld [vmem:[%s274 + $0xd0] sm:$0xff]
        %v302 = vld [vmem:[%s274 + $0xd8] sm:$0xff]
        %v303 = vld [vmem:[%s274 + $0xe0] sm:$0xff]
        %v304 = vld [vmem:[%s274 + $0xe8] sm:$0xff]
        %v305 = vld [vmem:[%s274 + $0xf0] sm:$0xff]
        %v306 = vld [vmem:[%s274 + $0xf8] sm:$0xff]
        %v307 = vld [vmem:[%s274 + $0x100] sm:$0xff]
        %v308 = vld [vmem:[%s274 + $0x108] sm:$0xff]
        %v309 = vld [vmem:[%s274 + $0x110] sm:$0xff]
        %v310 = vld [vmem:[%s274 + $0x118] sm:$0xff]
        %v311 = vld [vmem:[%s274 + $0x120] sm:$0xff]
        %v312 = vld [vmem:[%s274 + $0x128] sm:$0xff]
        %v313 = vld [vmem:[%s274 + $0x130] sm:$0xff]
        %v314 = vld [vmem:[%s274 + $0x138] sm:$0xff]
        %v315 = vld [vmem:[%s274 + $0x140] sm:$0xff]
        %v316 = vld [vmem:[%s274 + $0x148] sm:$0xff]
        %v317 = vld [vmem:[%s274 + $0x150] sm:$0xff]
        %v318 = vld [vmem:[%s274 + $0x158] sm:$0xff]
        %v319 = vld [vmem:[%s274 + $0x160] sm:$0xff]
        %v320 = vld [vmem:[%s274 + $0x168] sm:$0xff]
        %v321 = vld [vmem:[%s274 + $0x170] sm:$0xff]
        %v322 = vld [vmem:[%s274 + $0x178] sm:$0xff]
        %v323 = vld [vmem:[%s274 + $0x180] sm:$0xff]
        %v324 = vld [vmem:[%s274 + $0x188] sm:$0xff]
        %v325 = vld [vmem:[%s274 + $0x190] sm:$0xff]
        %v326 = vld [vmem:[%s274 + $0x198] sm:$0xff]
        %v327 = vld [vmem:[%s274 + $0x1a0] sm:$0xff]
        %v328 = vld [vmem:[%s274 + $0x1a8] sm:$0xff]
        %v329 = vld [vmem:[%s274 + $0x1b0] sm:$0xff]
        %v330 = vld [vmem:[%s274 + $0x1b8] sm:$0xff]
        %v331 = vld [vmem:[%s274 + $0x1c0] sm:$0xff]
        %v332 = vld [vmem:[%s274 + $0x1c8] sm:$0xff]
        %v333 = vld [vmem:[%s274 + $0x1d0] sm:$0xff]
        %v334 = vld [vmem:[%s274 + $0x1d8] sm:$0xff]
        %v335 = vld [vmem:[%s274 + $0x1e0] sm:$0xff]
        %v336 = vld [vmem:[%s274 + $0x1e8] sm:$0xff]
        %v337 = vld [vmem:[%s274 + $0x1f0] sm:$0xff]
        %v338 = vld [vmem:[%s274 + $0x1f8] sm:$0xff]
        %v339 = vld [vmem:[%s274 + $0x200] sm:$0xff]
        %v340 = vld [vmem:[%s274 + $0x208] sm:$0xff]
        %v341 = vld [vmem:[%s274 + $0x210] sm:$0xff]
        %v342 = vld [vmem:[%s274 + $0x218] sm:$0xff]
        %v343 = vld [vmem:[%s274 + $0x220] sm:$0xff]
        %v344 = vld [vmem:[%s274 + $0x228] sm:$0xff]
        %v345 = vld [vmem:[%s274 + $0x230] sm:$0xff]
        %v346 = vld [vmem:[%s274 + $0x238] sm:$0xff]
        %v347 = vld [vmem:[%s274 + $0x240] sm:$0xff]
        %v348 = vld [vmem:[%s274 + $0x248] sm:$0xff]
        %v349 = vld [vmem:[%s274 + $0x250] sm:$0xff]
        %v350 = vld [vmem:[%s274 + $0x258] sm:$0xff]
        %v351 = vld [vmem:[%s274 + $0x260] sm:$0xff]
        %v352 = vld [vmem:[%s274 + $0x268] sm:$0xff]
        %v353 = vld [vmem:[%s274 + $0x270] sm:$0xff]
        %v354 = vld [vmem:[%s274 + $0x278] sm:$0xff]
        %v355 = vld [vmem:[%s274 + $0x280] sm:$0xff]
        %v356 = vld [vmem:[%s274 + $0x288] sm:$0xff]
        %v357 = vld [vmem:[%s274 + $0x290] sm:$0xff]
        %v358 = vld [vmem:[%s274 + $0x298] sm:$0xff]
        %v359 = vld [vmem:[%s274 + $0x2a0] sm:$0xff]
        %v360 = vld [vmem:[%s274 + $0x2a8] sm:$0xff]
        %v361 = vld [vmem:[%s274 + $0x2b0] sm:$0xff]
        %v362 = vld [vmem:[%s274 + $0x2b8] sm:$0xff]
        %v363 = vld [vmem:[%s274 + $0x2c0] sm:$0xff]
        %v364 = vld [vmem:[%s274 + $0x2c8] sm:$0xff]
        %v365 = vld [vmem:[%s274 + $0x2d0] sm:$0xff]
        %v366 = vld [vmem:[%s274 + $0x2d8] sm:$0xff]
        %v367 = vld [vmem:[%s274 + $0x2e0] sm:$0xff]
        %v368 = vld [vmem:[%s274 + $0x2e8] sm:$0xff]
        %v369 = vld [vmem:[%s274 + $0x2f0] sm:$0xff]
        %v370 = vld [vmem:[%s274 + $0x2f8] sm:$0xff]
        %v371 = vld [vmem:[%s274 + $0x300] sm:$0xff]
        %v372 = vld [vmem:[%s274 + $0x308] sm:$0xff]
        %v373 = vld [vmem:[%s274 + $0x310] sm:$0xff]
        %v374 = vld [vmem:[%s274 + $0x318] sm:$0xff]
        %v375 = vld [vmem:[%s274 + $0x320] sm:$0xff]
        %v376 = vld [vmem:[%s274 + $0x328] sm:$0xff]
        %v377 = vld [vmem:[%s274 + $0x330] sm:$0xff]
        %v378 = vld [vmem:[%s274 + $0x338] sm:$0xff]
        %v379 = vld [vmem:[%s274 + $0x340] sm:$0xff]
        %v380 = vld [vmem:[%s274 + $0x348] sm:$0xff]
        %v381 = vld [vmem:[%s274 + $0x350] sm:$0xff]
        %v382 = vld [vmem:[%s274 + $0x358] sm:$0xff]
        %v383 = vld [vmem:[%s274 + $0x360] sm:$0xff]
        %v384 = vld [vmem:[%s274 + $0x368] sm:$0xff]
        %v385 = vld [vmem:[%s274 + $0x370] sm:$0xff]
        %v386 = vld [vmem:[%s274 + $0x378] sm:$0xff]
        %v387 = vld [vmem:[%s274 + $0x380] sm:$0xff]
        %v388 = vld [vmem:[%s274 + $0x388] sm:$0xff]
        %v389 = vld [vmem:[%s274 + $0x390] sm:$0xff]
        %v390 = vld [vmem:[%s274 + $0x398] sm:$0xff]
        %v391 = vld [vmem:[%s274 + $0x3a0] sm:$0xff]
        %v392 = vld [vmem:[%s274 + $0x3a8] sm:$0xff]
        %v393 = vld [vmem:[%s274 + $0x3b0] sm:$0xff]
        %v394 = vld [vmem:[%s274 + $0x3b8] sm:$0xff]
        %v395 = vld [vmem:[%s274 + $0x3c0] sm:$0xff]
        %v396 = vld [vmem:[%s274 + $0x3c8] sm:$0xff]
        %v397 = vld [vmem:[%s274 + $0x3d0] sm:$0xff]
        %v398 = vld [vmem:[%s274 + $0x3d8] sm:$0xff]
        %v399 = vld [vmem:[%s274 + $0x3e0] sm:$0xff]
        %v400 = vld [vmem:[%s274 + $0x3e8] sm:$0xff]
        %v401 = vld [vmem:[%s274 + $0x3f0] sm:$0xff]
        %v402 = vld [vmem:[%s274 + $0x3f8] sm:$0xff]
        %v403 = vld [vmem:[%s274 + $0x400] sm:$0xff]
        %v404 = vld [vmem:[%s274 + $0x408] sm:$0xff]
        %v405 = vld [vmem:[%s274 + $0x410] sm:$0xff]
        %v406 = vld [vmem:[%s274 + $0x418] sm:$0xff]
        %v407 = vld [vmem:[%s274 + $0x420] sm:$0xff]
        %v408 = vld [vmem:[%s274 + $0x428] sm:$0xff]
        %v409 = vld [vmem:[%s274 + $0x430] sm:$0xff]
        %v410 = vld [vmem:[%s274 + $0x438] sm:$0xff]
        %v411 = vld [vmem:[%s274 + $0x440] sm:$0xff]
        %v412 = vld [vmem:[%s274 + $0x448] sm:$0xff]
        %v413 = vld [vmem:[%s274 + $0x450] sm:$0xff]
        %v414 = vld [vmem:[%s274 + $0x458] sm:$0xff]
        %v415 = vld [vmem:[%s274 + $0x460] sm:$0xff]
        %v416 = vld [vmem:[%s274 + $0x468] sm:$0xff]
        %v417 = vld [vmem:[%s274 + $0x470] sm:$0xff]
        %v418 = vld [vmem:[%s274 + $0x478] sm:$0xff]
        %v419 = vld [vmem:[#allocation8] sm:$0x3]
        %v420 = vld [vmem:[#allocation9] sm:$0x3]
        %v421 = vld [vmem:[%s234] sm:$0xf]
        %v422 = vld [vmem:[%s234 + $0x4] sm:$0xf]
        %v423 = vld [vmem:[%s234 + $0x8] sm:$0xf]
        %v424 = vld [vmem:[%s234 + $0xc] sm:$0xf]
        %v425 = vld [vmem:[%s234 + $0x10] sm:$0xf]
        %v426 = vld [vmem:[%s234 + $0x14] sm:$0xf]
        %v427 = vld [vmem:[%s234 + $0x18] sm:$0xf]
        %v428 = vld [vmem:[%s234 + $0x1c] sm:$0xf]
        %v429 = vld [vmem:[%s234 + $0x20] sm:$0xf]
        %v430 = vld [vmem:[%s234 + $0x24] sm:$0xf]
        %v431 = vld [vmem:[%s234 + $0x28] sm:$0xf]
        %v432 = vld [vmem:[%s234 + $0x2c] sm:$0xf]
        %v433 = vld [vmem:[%s234 + $0x30] sm:$0xf]
        %v434 = vld [vmem:[%s234 + $0x34] sm:$0xf]
        %v435 = vld [vmem:[%s234 + $0x38] sm:$0xf]
        %v436 = vld [vmem:[%s234 + $0x3c] sm:$0xf]
        %v437 = vld [vmem:[%s234 + $0x40] sm:$0xf]
        %v438 = vld [vmem:[%s234 + $0x44] sm:$0xf]
        %v439 = vld [vmem:[%s234 + $0x48] sm:$0xf]
        %v440 = vld [vmem:[%s234 + $0x4c] sm:$0xf]
        %v441 = vld [vmem:[%s234 + $0x50] sm:$0xf]
        %v442 = vld [vmem:[%s234 + $0x54] sm:$0xf]
        %v443 = vld [vmem:[%s234 + $0x58] sm:$0xf]
        %v444 = vld [vmem:[%s234 + $0x5c] sm:$0xf]
        %v445 = vld [vmem:[%s234 + $0x60] sm:$0xf]
        %v446 = vld [vmem:[%s234 + $0x64] sm:$0xf]
        %v447 = vld [vmem:[%s234 + $0x68] sm:$0xf]
        %v448 = vld [vmem:[%s234 + $0x6c] sm:$0xf]
        %v449 = vld [vmem:[%s234 + $0x70] sm:$0xf]
        %v450 = vld [vmem:[%s234 + $0x74] sm:$0xf]
        %v451 = vld [vmem:[%s234 + $0x78] sm:$0xf]
        %v452 = vld [vmem:[%s234 + $0x7c] sm:$0xf]
        %v453 = vld [vmem:[%s234 + $0x80] sm:$0xf]
        %v454 = vld [vmem:[%s234 + $0x84] sm:$0xf]
        %v455 = vld [vmem:[%s234 + $0x88] sm:$0xf]
        %v456 = vld [vmem:[%s234 + $0x8c] sm:$0xf]
        %v457 = vld [vmem:[%s234 + $0x90] sm:$0xf]
        %v458 = vld [vmem:[%s234 + $0x94] sm:$0xf]
        %v459 = vld [vmem:[%s234 + $0x98] sm:$0xf]
        %v460 = vld [vmem:[%s234 + $0x9c] sm:$0xf]
        %v501 = vunpack.c.l.b16 %v421
        %v502 = vunpack.c.l.b16 %v422
        %v503 = vunpack.c.l.b16 %v423
        %v504 = vunpack.c.l.b16 %v424
        %v505 = vunpack.c.l.b16 %v425
        %v506 = vunpack.c.l.b16 %v426
        %v507 = vunpack.c.l.b16 %v427
        %v508 = vunpack.c.l.b16 %v428
        %v509 = vunpack.c.l.b16 %v429
        %v510 = vunpack.c.l.b16 %v430
        %v511 = vunpack.c.l.b16 %v431
        %v512 = vunpack.c.l.b16 %v432
        %v513 = vunpack.c.l.b16 %v433
        %v514 = vunpack.c.l.b16 %v434
        %v515 = vunpack.c.l.b16 %v435
        %v516 = vunpack.c.l.b16 %v436
        %v517 = vunpack.c.l.b16 %v437
        %v518 = vunpack.c.l.b16 %v438
        %v519 = vunpack.c.l.b16 %v439
        %v520 = vunpack.c.l.b16 %v440
        %v521 = vunpack.c.l.b16 %v441
        %v522 = vunpack.c.l.b16 %v442
        %v523 = vunpack.c.l.b16 %v443
        %v524 = vunpack.c.l.b16 %v444
        %v525 = vunpack.c.l.b16 %v445
        %v526 = vunpack.c.l.b16 %v446
        %v527 = vunpack.c.l.b16 %v447
        %v528 = vunpack.c.l.b16 %v448
        %v529 = vunpack.c.l.b16 %v449
        %v530 = vunpack.c.l.b16 %v450
        %v531 = vunpack.c.l.b16 %v451
        %v532 = vunpack.c.l.b16 %v452
        %v533 = vunpack.c.l.b16 %v453
        %v534 = vunpack.c.l.b16 %v454
        %v535 = vunpack.c.l.b16 %v455
        %v536 = vunpack.c.l.b16 %v456
        %v537 = vunpack.c.l.b16 %v457
        %v538 = vunpack.c.l.b16 %v458
        %v539 = vunpack.c.l.b16 %v459
        %v540 = vunpack.c.l.b16 %v460
        %v541 = vpack.c.b16 %v502, %v501
        %v542 = vpack.c.b16 %v504, %v503
        %v543 = vpack.c.b16 %v506, %v505
        %v544 = vpack.c.b16 %v508, %v507
        %v545 = vpack.c.b16 %v510, %v509
        %v546 = vpack.c.b16 %v512, %v511
        %v547 = vpack.c.b16 %v514, %v513
        %v548 = vpack.c.b16 %v516, %v515
        %v549 = vpack.c.b16 %v518, %v517
        %v550 = vpack.c.b16 %v520, %v519
        %v551 = vpack.c.b16 %v522, %v521
        %v552 = vpack.c.b16 %v524, %v523
        %v553 = vpack.c.b16 %v526, %v525
        %v554 = vpack.c.b16 %v528, %v527
        %v555 = vpack.c.b16 %v530, %v529
        %v556 = vpack.c.b16 %v532, %v531
        %v557 = vpack.c.b16 %v534, %v533
        %v558 = vpack.c.b16 %v536, %v535
        %v559 = vpack.c.b16 %v538, %v537
        %v560 = vpack.c.b16 %v540, %v539
        %581 = vst [vmem:[#allocation2] sm:$0xff] %v541
        %582 = vst [vmem:[#allocation2 + $0x48] sm:$0xff] %v542
        %583 = vst [vmem:[#allocation2 + $0x90] sm:$0xff] %v543
        %584 = vst [vmem:[#allocation2 + $0xd8] sm:$0xff] %v544
        %585 = vst [vmem:[#allocation2 + $0x120] sm:$0xff] %v545
        %586 = vst [vmem:[#allocation2 + $0x168] sm:$0xff] %v546
        %587 = vst [vmem:[#allocation2 + $0x1b0] sm:$0xff] %v547
        %588 = vst [vmem:[#allocation2 + $0x1f8] sm:$0xff] %v548
        %589 = vst [vmem:[#allocation2 + $0x240] sm:$0xff] %v549
        %590 = vst [vmem:[#allocation2 + $0x288] sm:$0xff] %v550
        %591 = vst [vmem:[#allocation2 + $0x2d0] sm:$0xff] %v551
        %592 = vst [vmem:[#allocation2 + $0x318] sm:$0xff] %v552
        %593 = vst [vmem:[#allocation2 + $0x360] sm:$0xff] %v553
        %594 = vst [vmem:[#allocation2 + $0x3a8] sm:$0xff] %v554
        %595 = vst [vmem:[#allocation2 + $0x3f0] sm:$0xff] %v555
        %596 = vst [vmem:[#allocation2 + $0x438] sm:$0xff] %v556
        %597 = vst [vmem:[#allocation2 + $0x480] sm:$0xff] %v557
        %598 = vst [vmem:[#allocation2 + $0x4c8] sm:$0xff] %v558
        %599 = vst [vmem:[#allocation2 + $0x510] sm:$0xff] %v559
        %600 = vst [vmem:[#allocation2 + $0x558] sm:$0xff] %v560
        %v601 = vld [vmem:[%s234] sm:$0xe]
        %v602 = vld [vmem:[%s234 + $0x4] sm:$0xf]
        %v603 = vld [vmem:[%s234 + $0x8] sm:$0xf]
        %v604 = vld [vmem:[%s234 + $0xc] sm:$0xf]
        %v605 = vld [vmem:[%s234 + $0x10] sm:$0xf]
        %v606 = vld [vmem:[%s234 + $0x14] sm:$0xf]
        %v607 = vld [vmem:[%s234 + $0x18] sm:$0xf]
        %v608 = vld [vmem:[%s234 + $0x1c] sm:$0xf]
        %v609 = vld [vmem:[%s234 + $0x20] sm:$0xf]
        %v610 = vld [vmem:[%s234 + $0x24] sm:$0xf]
        %v611 = vld [vmem:[%s234 + $0x28] sm:$0xf]
        %v612 = vld [vmem:[%s234 + $0x2c] sm:$0xf]
        %v613 = vld [vmem:[%s234 + $0x30] sm:$0xf]
        %v614 = vld [vmem:[%s234 + $0x34] sm:$0xf]
        %v615 = vld [vmem:[%s234 + $0x38] sm:$0xf]
        %v616 = vld [vmem:[%s234 + $0x3c] sm:$0xf]
        %v617 = vld [vmem:[%s234 + $0x40] sm:$0xf]
        %v618 = vld [vmem:[%s234 + $0x44] sm:$0xf]
        %v619 = vld [vmem:[%s234 + $0x48] sm:$0xf]
        %v620 = vld [vmem:[%s234 + $0x4c] sm:$0xf]
        %v621 = vld [vmem:[%s234 + $0x50] sm:$0xf]
        %v622 = vld [vmem:[%s234 + $0x54] sm:$0xf]
        %v623 = vld [vmem:[%s234 + $0x58] sm:$0xf]
        %v624 = vld [vmem:[%s234 + $0x5c] sm:$0xf]
        %v625 = vld [vmem:[%s234 + $0x60] sm:$0xf]
        %v626 = vld [vmem:[%s234 + $0x64] sm:$0xf]
        %v627 = vld [vmem:[%s234 + $0x68] sm:$0xf]
        %v628 = vld [vmem:[%s234 + $0x6c] sm:$0xf]
        %v629 = vld [vmem:[%s234 + $0x70] sm:$0xf]
        %v630 = vld [vmem:[%s234 + $0x74] sm:$0xf]
        %v631 = vld [vmem:[%s234 + $0x78] sm:$0xf]
        %v632 = vld [vmem:[%s234 + $0x7c] sm:$0xf]
        %v633 = vld [vmem:[%s234 + $0x80] sm:$0xf]
        %v634 = vld [vmem:[%s234 + $0x84] sm:$0xf]
        %v635 = vld [vmem:[%s234 + $0x88] sm:$0xf]
        %v636 = vld [vmem:[%s234 + $0x8c] sm:$0xf]
        %v637 = vld [vmem:[%s234 + $0x90] sm:$0xf]
        %v638 = vld [vmem:[%s234 + $0x94] sm:$0xf]
        %v639 = vld [vmem:[%s234 + $0x98] sm:$0xf]
        %v640 = vld [vmem:[%s234 + $0x9c] sm:$0xf]
        %v641 = vld [vmem:[%s234 + $0xa0] sm:$0x1]
        %v683 = vunpack.c.l.b16 %v601
        %v684 = vunpack.c.l.b16 %v602
        %v685 = vunpack.c.l.b16 %v603
        %v686 = vunpack.c.l.b16 %v604
        %v687 = vunpack.c.l.b16 %v605
        %v688 = vunpack.c.l.b16 %v606
        %v689 = vunpack.c.l.b16 %v607
        %v690 = vunpack.c.l.b16 %v608
        %v691 = vunpack.c.l.b16 %v609
        %v692 = vunpack.c.l.b16 %v610
        %v693 = vunpack.c.l.b16 %v611
        %v694 = vunpack.c.l.b16 %v612
        %v695 = vunpack.c.l.b16 %v613
        %v696 = vunpack.c.l.b16 %v614
        %v697 = vunpack.c.l.b16 %v615
        %v698 = vunpack.c.l.b16 %v616
        %v699 = vunpack.c.l.b16 %v617
        %v700 = vunpack.c.l.b16 %v618
        %v701 = vunpack.c.l.b16 %v619
        %v702 = vunpack.c.l.b16 %v620
        %v703 = vunpack.c.l.b16 %v621
        %v704 = vunpack.c.l.b16 %v622
        %v705 = vunpack.c.l.b16 %v623
        %v706 = vunpack.c.l.b16 %v624
        %v707 = vunpack.c.l.b16 %v625
        %v708 = vunpack.c.l.b16 %v626
        %v709 = vunpack.c.l.b16 %v627
        %v710 = vunpack.c.l.b16 %v628
        %v711 = vunpack.c.l.b16 %v629
        %v712 = vunpack.c.l.b16 %v630
        %v713 = vunpack.c.l.b16 %v631
        %v714 = vunpack.c.l.b16 %v632
        %v715 = vunpack.c.l.b16 %v633
        %v716 = vunpack.c.l.b16 %v634
        %v717 = vunpack.c.l.b16 %v635
        %v718 = vunpack.c.l.b16 %v636
        %v719 = vunpack.c.l.b16 %v637
        %v720 = vunpack.c.l.b16 %v638
        %v721 = vunpack.c.l.b16 %v639
        %v722 = vunpack.c.l.b16 %v640
        %v723 = vunpack.c.l.b16 %v641
        %v724 = vpack.c.b16 %v684, %v683
        %v725 = vpack.c.b16 %v686, %v685
        %v726 = vpack.c.b16 %v688, %v687
        %v727 = vpack.c.b16 %v690, %v689
        %v728 = vpack.c.b16 %v692, %v691
        %v729 = vpack.c.b16 %v694, %v693
        %v730 = vpack.c.b16 %v696, %v695
        %v731 = vpack.c.b16 %v698, %v697
        %v732 = vpack.c.b16 %v700, %v699
        %v733 = vpack.c.b16 %v702, %v701
        %v734 = vpack.c.b16 %v704, %v703
        %v735 = vpack.c.b16 %v706, %v705
        %v736 = vpack.c.b16 %v708, %v707
        %v737 = vpack.c.b16 %v710, %v709
        %v738 = vpack.c.b16 %v712, %v711
        %v739 = vpack.c.b16 %v714, %v713
        %v740 = vpack.c.b16 %v716, %v715
        %v741 = vpack.c.b16 %v718, %v717
        %v742 = vpack.c.b16 %v720, %v719
        %v743 = vpack.c.b16 %v722, %v721
        %v744 = vpack.c.b16 %v723, %v723
        %vm745 = vcmask 1046528
        %v746 = vrot.slane %v724, 1
        %v747 = vrot.slane %v725, 1
        %v748 = vsel %vm745, %v746, %v747
        %v749 = vrot.slane %v726, 1
        %v750 = vsel %vm745, %v747, %v749
        %v751 = vrot.slane %v727, 1
        %v752 = vsel %vm745, %v749, %v751
        %v753 = vrot.slane %v728, 1
        %v754 = vsel %vm745, %v751, %v753
        %v755 = vrot.slane %v729, 1
        %v756 = vsel %vm745, %v753, %v755
        %v757 = vrot.slane %v730, 1
        %v758 = vsel %vm745, %v755, %v757
        %v759 = vrot.slane %v731, 1
        %v760 = vsel %vm745, %v757, %v759
        %v761 = vrot.slane %v732, 1
        %v762 = vsel %vm745, %v759, %v761
        %v763 = vrot.slane %v733, 1
        %v764 = vsel %vm745, %v761, %v763
        %v765 = vrot.slane %v734, 1
        %v766 = vsel %vm745, %v763, %v765
        %v767 = vrot.slane %v735, 1
        %v768 = vsel %vm745, %v765, %v767
        %v769 = vrot.slane %v736, 1
        %v770 = vsel %vm745, %v767, %v769
        %v771 = vrot.slane %v737, 1
        %v772 = vsel %vm745, %v769, %v771
        %v773 = vrot.slane %v738, 1
        %v774 = vsel %vm745, %v771, %v773
        %v775 = vrot.slane %v739, 1
        %v776 = vsel %vm745, %v773, %v775
        %v777 = vrot.slane %v740, 1
        %v778 = vsel %vm745, %v775, %v777
        %v779 = vrot.slane %v741, 1
        %v780 = vsel %vm745, %v777, %v779
        %v781 = vrot.slane %v742, 1
        %v782 = vsel %vm745, %v779, %v781
        %v783 = vrot.slane %v743, 1
        %v784 = vsel %vm745, %v781, %v783
        %v785 = vrot.slane %v744, 1
        %v786 = vsel %vm745, %v783, %v785
        %807 = vst [vmem:[#allocation2 + $0x8] sm:$0xff] %v748
        %808 = vst [vmem:[#allocation2 + $0x50] sm:$0xff] %v750
        %809 = vst [vmem:[#allocation2 + $0x98] sm:$0xff] %v752
        %810 = vst [vmem:[#allocation2 + $0xe0] sm:$0xff] %v754
        %811 = vst [vmem:[#allocation2 + $0x128] sm:$0xff] %v756
        %812 = vst [vmem:[#allocation2 + $0x170] sm:$0xff] %v758
        %813 = vst [vmem:[#allocation2 + $0x1b8] sm:$0xff] %v760
        %814 = vst [vmem:[#allocation2 + $0x200] sm:$0xff] %v762
        %815 = vst [vmem:[#allocation2 + $0x248] sm:$0xff] %v764
        %816 = vst [vmem:[#allocation2 + $0x290] sm:$0xff] %v766
        %817 = vst [vmem:[#allocation2 + $0x2d8] sm:$0xff] %v768
        %818 = vst [vmem:[#allocation2 + $0x320] sm:$0xff] %v770
        %819 = vst [vmem:[#allocation2 + $0x368] sm:$0xff] %v772
        %820 = vst [vmem:[#allocation2 + $0x3b0] sm:$0xff] %v774
        %821 = vst [vmem:[#allocation2 + $0x3f8] sm:$0xff] %v776
        %822 = vst [vmem:[#allocation2 + $0x440] sm:$0xff] %v778
        %823 = vst [vmem:[#allocation2 + $0x488] sm:$0xff] %v780
        %824 = vst [vmem:[#allocation2 + $0x4d0] sm:$0xff] %v782
        %825 = vst [vmem:[#allocation2 + $0x518] sm:$0xff] %v784
        %826 = vst [vmem:[#allocation2 + $0x560] sm:$0xff] %v786
        %v827 = vld [vmem:[%s234] sm:$0xc]
        %v828 = vld [vmem:[%s234 + $0x4] sm:$0xf]
        %v829 = vld [vmem:[%s234 + $0x8] sm:$0xf]
        %v830 = vld [vmem:[%s234 + $0xc] sm:$0xf]
        %v831 = vld [vmem:[%s234 + $0x10] sm:$0xf]
        %v832 = vld [vmem:[%s234 + $0x14] sm:$0xf]
        %v833 = vld [vmem:[%s234 + $0x18] sm:$0xf]
        %v834 = vld [vmem:[%s234 + $0x1c] sm:$0xf]
        %v835 = vld [vmem:[%s234 + $0x20] sm:$0xf]
        %v836 = vld [vmem:[%s234 + $0x24] sm:$0xf]
        %v837 = vld [vmem:[%s234 + $0x28] sm:$0xf]
        %v838 = vld [vmem:[%s234 + $0x2c] sm:$0xf]
        %v839 = vld [vmem:[%s234 + $0x30] sm:$0xf]
        %v840 = vld [vmem:[%s234 + $0x34] sm:$0xf]
        %v841 = vld [vmem:[%s234 + $0x38] sm:$0xf]
        %v842 = vld [vmem:[%s234 + $0x3c] sm:$0xf]
        %v843 = vld [vmem:[%s234 + $0x40] sm:$0xf]
        %v844 = vld [vmem:[%s234 + $0x44] sm:$0xf]
        %v845 = vld [vmem:[%s234 + $0x48] sm:$0xf]
        %v846 = vld [vmem:[%s234 + $0x4c] sm:$0xf]
        %v847 = vld [vmem:[%s234 + $0x50] sm:$0xf]
        %v848 = vld [vmem:[%s234 + $0x54] sm:$0xf]
        %v849 = vld [vmem:[%s234 + $0x58] sm:$0xf]
        %v850 = vld [vmem:[%s234 + $0x5c] sm:$0xf]
        %v851 = vld [vmem:[%s234 + $0x60] sm:$0xf]
        %v852 = vld [vmem:[%s234 + $0x64] sm:$0xf]
        %v853 = vld [vmem:[%s234 + $0x68] sm:$0xf]
        %v854 = vld [vmem:[%s234 + $0x6c] sm:$0xf]
        %v855 = vld [vmem:[%s234 + $0x70] sm:$0xf]
        %v856 = vld [vmem:[%s234 + $0x74] sm:$0xf]
        %v857 = vld [vmem:[%s234 + $0x78] sm:$0xf]
        %v858 = vld [vmem:[%s234 + $0x7c] sm:$0xf]
        %v859 = vld [vmem:[%s234 + $0x80] sm:$0xf]
        %v860 = vld [vmem:[%s234 + $0x84] sm:$0xf]
        %v861 = vld [vmem:[%s234 + $0x88] sm:$0xf]
        %v862 = vld [vmem:[%s234 + $0x8c] sm:$0xf]
        %v863 = vld [vmem:[%s234 + $0x90] sm:$0xf]
        %v864 = vld [vmem:[%s234 + $0x94] sm:$0xf]
        %v865 = vld [vmem:[%s234 + $0x98] sm:$0xf]
        %v866 = vld [vmem:[%s234 + $0x9c] sm:$0xf]
        %v867 = vld [vmem:[%s234 + $0xa0] sm:$0x3]
        %v909 = vunpack.c.l.b16 %v827
        %v910 = vunpack.c.l.b16 %v828
        %v911 = vunpack.c.l.b16 %v829
        %v912 = vunpack.c.l.b16 %v830
        %v913 = vunpack.c.l.b16 %v831
        %v914 = vunpack.c.l.b16 %v832
        %v915 = vunpack.c.l.b16 %v833
        %v916 = vunpack.c.l.b16 %v834
        %v917 = vunpack.c.l.b16 %v835
        %v918 = vunpack.c.l.b16 %v836
        %v919 = vunpack.c.l.b16 %v837
        %v920 = vunpack.c.l.b16 %v838
        %v921 = vunpack.c.l.b16 %v839
        %v922 = vunpack.c.l.b16 %v840
        %v923 = vunpack.c.l.b16 %v841
        %v924 = vunpack.c.l.b16 %v842
        %v925 = vunpack.c.l.b16 %v843
        %v926 = vunpack.c.l.b16 %v844
        %v927 = vunpack.c.l.b16 %v845
        %v928 = vunpack.c.l.b16 %v846
        %v929 = vunpack.c.l.b16 %v847
        %v930 = vunpack.c.l.b16 %v848
        %v931 = vunpack.c.l.b16 %v849
        %v932 = vunpack.c.l.b16 %v850
        %v933 = vunpack.c.l.b16 %v851
        %v934 = vunpack.c.l.b16 %v852
        %v935 = vunpack.c.l.b16 %v853
        %v936 = vunpack.c.l.b16 %v854
        %v937 = vunpack.c.l.b16 %v855
        %v938 = vunpack.c.l.b16 %v856
        %v939 = vunpack.c.l.b16 %v857
        %v940 = vunpack.c.l.b16 %v858
        %v941 = vunpack.c.l.b16 %v859
        %v942 = vunpack.c.l.b16 %v860
        %v943 = vunpack.c.l.b16 %v861
        %v944 = vunpack.c.l.b16 %v862
        %v945 = vunpack.c.l.b16 %v863
        %v946 = vunpack.c.l.b16 %v864
        %v947 = vunpack.c.l.b16 %v865
        %v948 = vunpack.c.l.b16 %v866
        %v949 = vunpack.c.l.b16 %v867
        %v950 = vpack.c.b16 %v910, %v909
        %v951 = vpack.c.b16 %v912, %v911
        %v952 = vpack.c.b16 %v914, %v913
        %v953 = vpack.c.b16 %v916, %v915
        %v954 = vpack.c.b16 %v918, %v917
        %v955 = vpack.c.b16 %v920, %v919
        %v956 = vpack.c.b16 %v922, %v921
        %v957 = vpack.c.b16 %v924, %v923
        %v958 = vpack.c.b16 %v926, %v925
        %v959 = vpack.c.b16 %v928, %v927
        %v960 = vpack.c.b16 %v930, %v929
        %v961 = vpack.c.b16 %v932, %v931
        %v962 = vpack.c.b16 %v934, %v933
        %v963 = vpack.c.b16 %v936, %v935
        %v964 = vpack.c.b16 %v938, %v937
        %v965 = vpack.c.b16 %v940, %v939
        %v966 = vpack.c.b16 %v942, %v941
        %v967 = vpack.c.b16 %v944, %v943
        %v968 = vpack.c.b16 %v946, %v945
        %v969 = vpack.c.b16 %v948, %v947
        %v970 = vpack.c.b16 %v949, %v949
        %vm971 = vcmask 1045504
        %v972 = vrot.slane %v950, 2
        %v973 = vrot.slane %v951, 2
        %v974 = vsel %vm971, %v972, %v973
        %v975 = vrot.slane %v952, 2
        %v976 = vsel %vm971, %v973, %v975
        %v977 = vrot.slane %v953, 2
        %v978 = vsel %vm971, %v975, %v977
        %v979 = vrot.slane %v954, 2
        %v980 = vsel %vm971, %v977, %v979
        %v981 = vrot.slane %v955, 2
        %v982 = vsel %vm971, %v979, %v981
        %v983 = vrot.slane %v956, 2
        %v984 = vsel %vm971, %v981, %v983
        %v985 = vrot.slane %v957, 2
        %v986 = vsel %vm971, %v983, %v985
        %v987 = vrot.slane %v958, 2
        %v988 = vsel %vm971, %v985, %v987
        %v989 = vrot.slane %v959, 2
        %v990 = vsel %vm971, %v987, %v989
        %v991 = vrot.slane %v960, 2
        %v992 = vsel %vm971, %v989, %v991
        %v993 = vrot.slane %v961, 2
        %v994 = vsel %vm971, %v991, %v993
        %v995 = vrot.slane %v962, 2
        %v996 = vsel %vm971, %v993, %v995
        %v997 = vrot.slane %v963, 2
        %v998 = vsel %vm971, %v995, %v997
        %v999 = vrot.slane %v964, 2
        %v1000 = vsel %vm971, %v997, %v999
        %v1001 = vrot.slane %v965, 2
        %v1002 = vsel %vm971, %v999, %v1001
        %v1003 = vrot.slane %v966, 2
        %v1004 = vsel %vm971, %v1001, %v1003
        %v1005 = vrot.slane %v967, 2
        %v1006 = vsel %vm971, %v1003, %v1005
        %v1007 = vrot.slane %v968, 2
        %v1008 = vsel %vm971, %v1005, %v1007
        %v1009 = vrot.slane %v969, 2
        %v1010 = vsel %vm971, %v1007, %v1009
        %v1011 = vrot.slane %v970, 2
        %v1012 = vsel %vm971, %v1009, %v1011
        %1033 = vst [vmem:[#allocation2 + $0x10] sm:$0xff] %v974
        %1034 = vst [vmem:[#allocation2 + $0x58] sm:$0xff] %v976
        %1035 = vst [vmem:[#allocation2 + $0xa0] sm:$0xff] %v978
        %1036 = vst [vmem:[#allocation2 + $0xe8] sm:$0xff] %v980
        %1037 = vst [vmem:[#allocation2 + $0x130] sm:$0xff] %v982
        %1038 = vst [vmem:[#allocation2 + $0x178] sm:$0xff] %v984
        %1039 = vst [vmem:[#allocation2 + $0x1c0] sm:$0xff] %v986
        %1040 = vst [vmem:[#allocation2 + $0x208] sm:$0xff] %v988
        %1041 = vst [vmem:[#allocation2 + $0x250] sm:$0xff] %v990
        %1042 = vst [vmem:[#allocation2 + $0x298] sm:$0xff] %v992
        %1043 = vst [vmem:[#allocation2 + $0x2e0] sm:$0xff] %v994
        %1044 = vst [vmem:[#allocation2 + $0x328] sm:$0xff] %v996
        %1045 = vst [vmem:[#allocation2 + $0x370] sm:$0xff] %v998
        %1046 = vst [vmem:[#allocation2 + $0x3b8] sm:$0xff] %v1000
        %1047 = vst [vmem:[#allocation2 + $0x400] sm:$0xff] %v1002
        %1048 = vst [vmem:[#allocation2 + $0x448] sm:$0xff] %v1004
        %1049 = vst [vmem:[#allocation2 + $0x490] sm:$0xff] %v1006
        %1050 = vst [vmem:[#allocation2 + $0x4d8] sm:$0xff] %v1008
        %1051 = vst [vmem:[#allocation2 + $0x520] sm:$0xff] %v1010
        %1052 = vst [vmem:[#allocation2 + $0x568] sm:$0xff] %v1012
        %v1053 = vld [vmem:[%s234 + $0x14] sm:$0xf]
        %v1054 = vld [vmem:[%s234 + $0x18] sm:$0xf]
        %v1055 = vld [vmem:[%s234 + $0x1c] sm:$0xf]
        %v1056 = vld [vmem:[%s234 + $0x20] sm:$0xf]
        %v1057 = vld [vmem:[%s234 + $0x24] sm:$0xf]
        %v1058 = vld [vmem:[%s234 + $0x28] sm:$0xf]
        %v1059 = vld [vmem:[%s234 + $0x2c] sm:$0xf]
        %v1060 = vld [vmem:[%s234 + $0x30] sm:$0xf]
        %v1061 = vld [vmem:[%s234 + $0x34] sm:$0xf]
        %v1062 = vld [vmem:[%s234 + $0x38] sm:$0xf]
        %v1063 = vld [vmem:[%s234 + $0x3c] sm:$0xf]
        %v1064 = vld [vmem:[%s234 + $0x40] sm:$0xf]
        %v1065 = vld [vmem:[%s234 + $0x44] sm:$0xf]
        %v1066 = vld [vmem:[%s234 + $0x48] sm:$0xf]
        %v1067 = vld [vmem:[%s234 + $0x4c] sm:$0xf]
        %v1068 = vld [vmem:[%s234 + $0x50] sm:$0xf]
        %v1069 = vld [vmem:[%s234 + $0x54] sm:$0xf]
        %v1070 = vld [vmem:[%s234 + $0x58] sm:$0xf]
        %v1071 = vld [vmem:[%s234 + $0x5c] sm:$0xf]
        %v1072 = vld [vmem:[%s234 + $0x60] sm:$0xf]
        %v1073 = vld [vmem:[%s234 + $0x64] sm:$0xf]
        %v1074 = vld [vmem:[%s234 + $0x68] sm:$0xf]
        %v1075 = vld [vmem:[%s234 + $0x6c] sm:$0xf]
        %v1076 = vld [vmem:[%s234 + $0x70] sm:$0xf]
        %v1077 = vld [vmem:[%s234 + $0x74] sm:$0xf]
        %v1078 = vld [vmem:[%s234 + $0x78] sm:$0xf]
        %v1079 = vld [vmem:[%s234 + $0x7c] sm:$0xf]
        %v1080 = vld [vmem:[%s234 + $0x80] sm:$0xf]
        %v1081 = vld [vmem:[%s234 + $0x84] sm:$0xf]
        %v1082 = vld [vmem:[%s234 + $0x88] sm:$0xf]
        %v1083 = vld [vmem:[%s234 + $0x8c] sm:$0xf]
        %v1084 = vld [vmem:[%s234 + $0x90] sm:$0xf]
        %v1085 = vld [vmem:[%s234 + $0x94] sm:$0xf]
        %v1086 = vld [vmem:[%s234 + $0x98] sm:$0xf]
        %v1087 = vld [vmem:[%s234 + $0x9c] sm:$0xf]
        %v1088 = vld [vmem:[%s234 + $0xa0] sm:$0xf]
        %v1089 = vld [vmem:[%s234 + $0xa4] sm:$0xf]
        %v1090 = vld [vmem:[%s234 + $0xa8] sm:$0xf]
        %v1091 = vld [vmem:[%s234 + $0xac] sm:$0xf]
        %v1092 = vld [vmem:[%s234 + $0xb0] sm:$0xf]
        %v1133 = vunpack.c.l.b16 %v1053
        %v1134 = vunpack.c.l.b16 %v1054
        %v1135 = vunpack.c.l.b16 %v1055
        %v1136 = vunpack.c.l.b16 %v1056
        %v1137 = vunpack.c.l.b16 %v1057
        %v1138 = vunpack.c.l.b16 %v1058
        %v1139 = vunpack.c.l.b16 %v1059
        %v1140 = vunpack.c.l.b16 %v1060
        %v1141 = vunpack.c.l.b16 %v1061
        %v1142 = vunpack.c.l.b16 %v1062
        %v1143 = vunpack.c.l.b16 %v1063
        %v1144 = vunpack.c.l.b16 %v1064
        %v1145 = vunpack.c.l.b16 %v1065
        %v1146 = vunpack.c.l.b16 %v1066
        %v1147 = vunpack.c.l.b16 %v1067
        %v1148 = vunpack.c.l.b16 %v1068
        %v1149 = vunpack.c.l.b16 %v1069
        %v1150 = vunpack.c.l.b16 %v1070
        %v1151 = vunpack.c.l.b16 %v1071
        %v1152 = vunpack.c.l.b16 %v1072
        %v1153 = vunpack.c.l.b16 %v1073
        %v1154 = vunpack.c.l.b16 %v1074
        %v1155 = vunpack.c.l.b16 %v1075
        %v1156 = vunpack.c.l.b16 %v1076
        %v1157 = vunpack.c.l.b16 %v1077
        %v1158 = vunpack.c.l.b16 %v1078
        %v1159 = vunpack.c.l.b16 %v1079
        %v1160 = vunpack.c.l.b16 %v1080
        %v1161 = vunpack.c.l.b16 %v1081
        %v1162 = vunpack.c.l.b16 %v1082
        %v1163 = vunpack.c.l.b16 %v1083
        %v1164 = vunpack.c.l.b16 %v1084
        %v1165 = vunpack.c.l.b16 %v1085
        %v1166 = vunpack.c.l.b16 %v1086
        %v1167 = vunpack.c.l.b16 %v1087
        %v1168 = vunpack.c.l.b16 %v1088
        %v1169 = vunpack.c.l.b16 %v1089
        %v1170 = vunpack.c.l.b16 %v1090
        %v1171 = vunpack.c.l.b16 %v1091
        %v1172 = vunpack.c.l.b16 %v1092
        %v1173 = vpack.c.b16 %v1134, %v1133
        %v1174 = vpack.c.b16 %v1136, %v1135
        %v1175 = vpack.c.b16 %v1138, %v1137
        %v1176 = vpack.c.b16 %v1140, %v1139
        %v1177 = vpack.c.b16 %v1142, %v1141
        %v1178 = vpack.c.b16 %v1144, %v1143
        %v1179 = vpack.c.b16 %v1146, %v1145
        %v1180 = vpack.c.b16 %v1148, %v1147
        %v1181 = vpack.c.b16 %v1150, %v1149
        %v1182 = vpack.c.b16 %v1152, %v1151
        %v1183 = vpack.c.b16 %v1154, %v1153
        %v1184 = vpack.c.b16 %v1156, %v1155
        %v1185 = vpack.c.b16 %v1158, %v1157
        %v1186 = vpack.c.b16 %v1160, %v1159
        %v1187 = vpack.c.b16 %v1162, %v1161
        %v1188 = vpack.c.b16 %v1164, %v1163
        %v1189 = vpack.c.b16 %v1166, %v1165
        %v1190 = vpack.c.b16 %v1168, %v1167
        %v1191 = vpack.c.b16 %v1170, %v1169
        %v1192 = vpack.c.b16 %v1172, %v1171
        %1213 = vst [vmem:[#allocation2 + $0x18] sm:$0xff] %v1173
        %1214 = vst [vmem:[#allocation2 + $0x60] sm:$0xff] %v1174
        %1215 = vst [vmem:[#allocation2 + $0xa8] sm:$0xff] %v1175
        %1216 = vst [vmem:[#allocation2 + $0xf0] sm:$0xff] %v1176
        %1217 = vst [vmem:[#allocation2 + $0x138] sm:$0xff] %v1177
        %1218 = vst [vmem:[#allocation2 + $0x180] sm:$0xff] %v1178
        %1219 = vst [vmem:[#allocation2 + $0x1c8] sm:$0xff] %v1179
        %1220 = vst [vmem:[#allocation2 + $0x210] sm:$0xff] %v1180
        %1221 = vst [vmem:[#allocation2 + $0x258] sm:$0xff] %v1181
        %1222 = vst [vmem:[#allocation2 + $0x2a0] sm:$0xff] %v1182
        %1223 = vst [vmem:[#allocation2 + $0x2e8] sm:$0xff] %v1183
        %1224 = vst [vmem:[#allocation2 + $0x330] sm:$0xff] %v1184
        %1225 = vst [vmem:[#allocation2 + $0x378] sm:$0xff] %v1185
        %1226 = vst [vmem:[#allocation2 + $0x3c0] sm:$0xff] %v1186
        %1227 = vst [vmem:[#allocation2 + $0x408] sm:$0xff] %v1187
        %1228 = vst [vmem:[#allocation2 + $0x450] sm:$0xff] %v1188
        %1229 = vst [vmem:[#allocation2 + $0x498] sm:$0xff] %v1189
        %1230 = vst [vmem:[#allocation2 + $0x4e0] sm:$0xff] %v1190
        %1231 = vst [vmem:[#allocation2 + $0x528] sm:$0xff] %v1191
        %1232 = vst [vmem:[#allocation2 + $0x570] sm:$0xff] %v1192
        %v1233 = vld [vmem:[%s234 + $0x14] sm:$0xe]
        %v1234 = vld [vmem:[%s234 + $0x18] sm:$0xf]
        %v1235 = vld [vmem:[%s234 + $0x1c] sm:$0xf]
        %v1236 = vld [vmem:[%s234 + $0x20] sm:$0xf]
        %v1237 = vld [vmem:[%s234 + $0x24] sm:$0xf]
        %v1238 = vld [vmem:[%s234 + $0x28] sm:$0xf]
        %v1239 = vld [vmem:[%s234 + $0x2c] sm:$0xf]
        %v1240 = vld [vmem:[%s234 + $0x30] sm:$0xf]
        %v1241 = vld [vmem:[%s234 + $0x34] sm:$0xf]
        %v1242 = vld [vmem:[%s234 + $0x38] sm:$0xf]
        %v1243 = vld [vmem:[%s234 + $0x3c] sm:$0xf]
        %v1244 = vld [vmem:[%s234 + $0x40] sm:$0xf]
        %v1245 = vld [vmem:[%s234 + $0x44] sm:$0xf]
        %v1246 = vld [vmem:[%s234 + $0x48] sm:$0xf]
        %v1247 = vld [vmem:[%s234 + $0x4c] sm:$0xf]
        %v1248 = vld [vmem:[%s234 + $0x50] sm:$0xf]
        %v1249 = vld [vmem:[%s234 + $0x54] sm:$0xf]
        %v1250 = vld [vmem:[%s234 + $0x58] sm:$0xf]
        %v1251 = vld [vmem:[%s234 + $0x5c] sm:$0xf]
        %v1252 = vld [vmem:[%s234 + $0x60] sm:$0xf]
        %v1253 = vld [vmem:[%s234 + $0x64] sm:$0xf]
        %v1254 = vld [vmem:[%s234 + $0x68] sm:$0xf]
        %v1255 = vld [vmem:[%s234 + $0x6c] sm:$0xf]
        %v1256 = vld [vmem:[%s234 + $0x70] sm:$0xf]
        %v1257 = vld [vmem:[%s234 + $0x74] sm:$0xf]
        %v1258 = vld [vmem:[%s234 + $0x78] sm:$0xf]
        %v1259 = vld [vmem:[%s234 + $0x7c] sm:$0xf]
        %v1260 = vld [vmem:[%s234 + $0x80] sm:$0xf]
        %v1261 = vld [vmem:[%s234 + $0x84] sm:$0xf]
        %v1262 = vld [vmem:[%s234 + $0x88] sm:$0xf]
        %v1263 = vld [vmem:[%s234 + $0x8c] sm:$0xf]
        %v1264 = vld [vmem:[%s234 + $0x90] sm:$0xf]
        %v1265 = vld [vmem:[%s234 + $0x94] sm:$0xf]
        %v1266 = vld [vmem:[%s234 + $0x98] sm:$0xf]
        %v1267 = vld [vmem:[%s234 + $0x9c] sm:$0xf]
        %v1268 = vld [vmem:[%s234 + $0xa0] sm:$0xf]
        %v1269 = vld [vmem:[%s234 + $0xa4] sm:$0xf]
        %v1270 = vld [vmem:[%s234 + $0xa8] sm:$0xf]
        %v1271 = vld [vmem:[%s234 + $0xac] sm:$0xf]
        %v1272 = vld [vmem:[%s234 + $0xb0] sm:$0xf]
        %v1273 = vld [vmem:[%s234 + $0xb4] sm:$0x1]
        %v1315 = vunpack.c.l.b16 %v1233
        %v1316 = vunpack.c.l.b16 %v1234
        %v1317 = vunpack.c.l.b16 %v1235
        %v1318 = vunpack.c.l.b16 %v1236
        %v1319 = vunpack.c.l.b16 %v1237
        %v1320 = vunpack.c.l.b16 %v1238
        %v1321 = vunpack.c.l.b16 %v1239
        %v1322 = vunpack.c.l.b16 %v1240
        %v1323 = vunpack.c.l.b16 %v1241
        %v1324 = vunpack.c.l.b16 %v1242
        %v1325 = vunpack.c.l.b16 %v1243
        %v1326 = vunpack.c.l.b16 %v1244
        %v1327 = vunpack.c.l.b16 %v1245
        %v1328 = vunpack.c.l.b16 %v1246
        %v1329 = vunpack.c.l.b16 %v1247
        %v1330 = vunpack.c.l.b16 %v1248
        %v1331 = vunpack.c.l.b16 %v1249
        %v1332 = vunpack.c.l.b16 %v1250
        %v1333 = vunpack.c.l.b16 %v1251
        %v1334 = vunpack.c.l.b16 %v1252
        %v1335 = vunpack.c.l.b16 %v1253
        %v1336 = vunpack.c.l.b16 %v1254
        %v1337 = vunpack.c.l.b16 %v1255
        %v1338 = vunpack.c.l.b16 %v1256
        %v1339 = vunpack.c.l.b16 %v1257
        %v1340 = vunpack.c.l.b16 %v1258
        %v1341 = vunpack.c.l.b16 %v1259
        %v1342 = vunpack.c.l.b16 %v1260
        %v1343 = vunpack.c.l.b16 %v1261
        %v1344 = vunpack.c.l.b16 %v1262
        %v1345 = vunpack.c.l.b16 %v1263
        %v1346 = vunpack.c.l.b16 %v1264
        %v1347 = vunpack.c.l.b16 %v1265
        %v1348 = vunpack.c.l.b16 %v1266
        %v1349 = vunpack.c.l.b16 %v1267
        %v1350 = vunpack.c.l.b16 %v1268
        %v1351 = vunpack.c.l.b16 %v1269
        %v1352 = vunpack.c.l.b16 %v1270
        %v1353 = vunpack.c.l.b16 %v1271
        %v1354 = vunpack.c.l.b16 %v1272
        %v1355 = vunpack.c.l.b16 %v1273
        %v1356 = vpack.c.b16 %v1316, %v1315
        %v1357 = vpack.c.b16 %v1318, %v1317
        %v1358 = vpack.c.b16 %v1320, %v1319
        %v1359 = vpack.c.b16 %v1322, %v1321
        %v1360 = vpack.c.b16 %v1324, %v1323
        %v1361 = vpack.c.b16 %v1326, %v1325
        %v1362 = vpack.c.b16 %v1328, %v1327
        %v1363 = vpack.c.b16 %v1330, %v1329
        %v1364 = vpack.c.b16 %v1332, %v1331
        %v1365 = vpack.c.b16 %v1334, %v1333
        %v1366 = vpack.c.b16 %v1336, %v1335
        %v1367 = vpack.c.b16 %v1338, %v1337
        %v1368 = vpack.c.b16 %v1340, %v1339
        %v1369 = vpack.c.b16 %v1342, %v1341
        %v1370 = vpack.c.b16 %v1344, %v1343
        %v1371 = vpack.c.b16 %v1346, %v1345
        %v1372 = vpack.c.b16 %v1348, %v1347
        %v1373 = vpack.c.b16 %v1350, %v1349
        %v1374 = vpack.c.b16 %v1352, %v1351
        %v1375 = vpack.c.b16 %v1354, %v1353
        %v1376 = vpack.c.b16 %v1355, %v1355
        %v1377 = vrot.slane %v1356, 1
        %v1378 = vrot.slane %v1357, 1
        %v1379 = vsel %vm745, %v1377, %v1378
        %v1380 = vrot.slane %v1358, 1
        %v1381 = vsel %vm745, %v1378, %v1380
        %v1382 = vrot.slane %v1359, 1
        %v1383 = vsel %vm745, %v1380, %v1382
        %v1384 = vrot.slane %v1360, 1
        %v1385 = vsel %vm745, %v1382, %v1384
        %v1386 = vrot.slane %v1361, 1
        %v1387 = vsel %vm745, %v1384, %v1386
        %v1388 = vrot.slane %v1362, 1
        %v1389 = vsel %vm745, %v1386, %v1388
        %v1390 = vrot.slane %v1363, 1
        %v1391 = vsel %vm745, %v1388, %v1390
        %v1392 = vrot.slane %v1364, 1
        %v1393 = vsel %vm745, %v1390, %v1392
        %v1394 = vrot.slane %v1365, 1
        %v1395 = vsel %vm745, %v1392, %v1394
        %v1396 = vrot.slane %v1366, 1
        %v1397 = vsel %vm745, %v1394, %v1396
        %v1398 = vrot.slane %v1367, 1
        %v1399 = vsel %vm745, %v1396, %v1398
        %v1400 = vrot.slane %v1368, 1
        %v1401 = vsel %vm745, %v1398, %v1400
        %v1402 = vrot.slane %v1369, 1
        %v1403 = vsel %vm745, %v1400, %v1402
        %v1404 = vrot.slane %v1370, 1
        %v1405 = vsel %vm745, %v1402, %v1404
        %v1406 = vrot.slane %v1371, 1
        %v1407 = vsel %vm745, %v1404, %v1406
        %v1408 = vrot.slane %v1372, 1
        %v1409 = vsel %vm745, %v1406, %v1408
        %v1410 = vrot.slane %v1373, 1
        %v1411 = vsel %vm745, %v1408, %v1410
        %v1412 = vrot.slane %v1374, 1
        %v1413 = vsel %vm745, %v1410, %v1412
        %v1414 = vrot.slane %v1375, 1
        %v1415 = vsel %vm745, %v1412, %v1414
        %v1416 = vrot.slane %v1376, 1
        %v1417 = vsel %vm745, %v1414, %v1416
        %1438 = vst [vmem:[#allocation2 + $0x20] sm:$0xff] %v1379
        %1439 = vst [vmem:[#allocation2 + $0x68] sm:$0xff] %v1381
        %1440 = vst [vmem:[#allocation2 + $0xb0] sm:$0xff] %v1383
        %1441 = vst [vmem:[#allocation2 + $0xf8] sm:$0xff] %v1385
        %1442 = vst [vmem:[#allocation2 + $0x140] sm:$0xff] %v1387
        %1443 = vst [vmem:[#allocation2 + $0x188] sm:$0xff] %v1389
        %1444 = vst [vmem:[#allocation2 + $0x1d0] sm:$0xff] %v1391
        %1445 = vst [vmem:[#allocation2 + $0x218] sm:$0xff] %v1393
        %1446 = vst [vmem:[#allocation2 + $0x260] sm:$0xff] %v1395
        %1447 = vst [vmem:[#allocation2 + $0x2a8] sm:$0xff] %v1397
        %1448 = vst [vmem:[#allocation2 + $0x2f0] sm:$0xff] %v1399
        %1449 = vst [vmem:[#allocation2 + $0x338] sm:$0xff] %v1401
        %1450 = vst [vmem:[#allocation2 + $0x380] sm:$0xff] %v1403
        %1451 = vst [vmem:[#allocation2 + $0x3c8] sm:$0xff] %v1405
        %1452 = vst [vmem:[#allocation2 + $0x410] sm:$0xff] %v1407
        %1453 = vst [vmem:[#allocation2 + $0x458] sm:$0xff] %v1409
        %1454 = vst [vmem:[#allocation2 + $0x4a0] sm:$0xff] %v1411
        %1455 = vst [vmem:[#allocation2 + $0x4e8] sm:$0xff] %v1413
        %1456 = vst [vmem:[#allocation2 + $0x530] sm:$0xff] %v1415
        %1457 = vst [vmem:[#allocation2 + $0x578] sm:$0xff] %v1417
        %v1458 = vld [vmem:[%s234 + $0x14] sm:$0xc]
        %v1459 = vld [vmem:[%s234 + $0x18] sm:$0xf]
        %v1460 = vld [vmem:[%s234 + $0x1c] sm:$0xf]
        %v1461 = vld [vmem:[%s234 + $0x20] sm:$0xf]
        %v1462 = vld [vmem:[%s234 + $0x24] sm:$0xf]
        %v1463 = vld [vmem:[%s234 + $0x28] sm:$0xf]
        %v1464 = vld [vmem:[%s234 + $0x2c] sm:$0xf]
        %v1465 = vld [vmem:[%s234 + $0x30] sm:$0xf]
        %v1466 = vld [vmem:[%s234 + $0x34] sm:$0xf]
        %v1467 = vld [vmem:[%s234 + $0x38] sm:$0xf]
        %v1468 = vld [vmem:[%s234 + $0x3c] sm:$0xf]
        %v1469 = vld [vmem:[%s234 + $0x40] sm:$0xf]
        %v1470 = vld [vmem:[%s234 + $0x44] sm:$0xf]
        %v1471 = vld [vmem:[%s234 + $0x48] sm:$0xf]
        %v1472 = vld [vmem:[%s234 + $0x4c] sm:$0xf]
        %v1473 = vld [vmem:[%s234 + $0x50] sm:$0xf]
        %v1474 = vld [vmem:[%s234 + $0x54] sm:$0xf]
        %v1475 = vld [vmem:[%s234 + $0x58] sm:$0xf]
        %v1476 = vld [vmem:[%s234 + $0x5c] sm:$0xf]
        %v1477 = vld [vmem:[%s234 + $0x60] sm:$0xf]
        %v1478 = vld [vmem:[%s234 + $0x64] sm:$0xf]
        %v1479 = vld [vmem:[%s234 + $0x68] sm:$0xf]
        %v1480 = vld [vmem:[%s234 + $0x6c] sm:$0xf]
        %v1481 = vld [vmem:[%s234 + $0x70] sm:$0xf]
        %v1482 = vld [vmem:[%s234 + $0x74] sm:$0xf]
        %v1483 = vld [vmem:[%s234 + $0x78] sm:$0xf]
        %v1484 = vld [vmem:[%s234 + $0x7c] sm:$0xf]
        %v1485 = vld [vmem:[%s234 + $0x80] sm:$0xf]
        %v1486 = vld [vmem:[%s234 + $0x84] sm:$0xf]
        %v1487 = vld [vmem:[%s234 + $0x88] sm:$0xf]
        %v1488 = vld [vmem:[%s234 + $0x8c] sm:$0xf]
        %v1489 = vld [vmem:[%s234 + $0x90] sm:$0xf]
        %v1490 = vld [vmem:[%s234 + $0x94] sm:$0xf]
        %v1491 = vld [vmem:[%s234 + $0x98] sm:$0xf]
        %v1492 = vld [vmem:[%s234 + $0x9c] sm:$0xf]
        %v1493 = vld [vmem:[%s234 + $0xa0] sm:$0xf]
        %v1494 = vld [vmem:[%s234 + $0xa4] sm:$0xf]
        %v1495 = vld [vmem:[%s234 + $0xa8] sm:$0xf]
        %v1496 = vld [vmem:[%s234 + $0xac] sm:$0xf]
        %v1497 = vld [vmem:[%s234 + $0xb0] sm:$0xf]
        %v1498 = vld [vmem:[%s234 + $0xb4] sm:$0x3]
        %v1540 = vunpack.c.l.b16 %v1458
        %v1541 = vunpack.c.l.b16 %v1459
        %v1542 = vunpack.c.l.b16 %v1460
        %v1543 = vunpack.c.l.b16 %v1461
        %v1544 = vunpack.c.l.b16 %v1462
        %v1545 = vunpack.c.l.b16 %v1463
        %v1546 = vunpack.c.l.b16 %v1464
        %v1547 = vunpack.c.l.b16 %v1465
        %v1548 = vunpack.c.l.b16 %v1466
        %v1549 = vunpack.c.l.b16 %v1467
        %v1550 = vunpack.c.l.b16 %v1468
        %v1551 = vunpack.c.l.b16 %v1469
        %v1552 = vunpack.c.l.b16 %v1470
        %v1553 = vunpack.c.l.b16 %v1471
        %v1554 = vunpack.c.l.b16 %v1472
        %v1555 = vunpack.c.l.b16 %v1473
        %v1556 = vunpack.c.l.b16 %v1474
        %v1557 = vunpack.c.l.b16 %v1475
        %v1558 = vunpack.c.l.b16 %v1476
        %v1559 = vunpack.c.l.b16 %v1477
        %v1560 = vunpack.c.l.b16 %v1478
        %v1561 = vunpack.c.l.b16 %v1479
        %v1562 = vunpack.c.l.b16 %v1480
        %v1563 = vunpack.c.l.b16 %v1481
        %v1564 = vunpack.c.l.b16 %v1482
        %v1565 = vunpack.c.l.b16 %v1483
        %v1566 = vunpack.c.l.b16 %v1484
        %v1567 = vunpack.c.l.b16 %v1485
        %v1568 = vunpack.c.l.b16 %v1486
        %v1569 = vunpack.c.l.b16 %v1487
        %v1570 = vunpack.c.l.b16 %v1488
        %v1571 = vunpack.c.l.b16 %v1489
        %v1572 = vunpack.c.l.b16 %v1490
        %v1573 = vunpack.c.l.b16 %v1491
        %v1574 = vunpack.c.l.b16 %v1492
        %v1575 = vunpack.c.l.b16 %v1493
        %v1576 = vunpack.c.l.b16 %v1494
        %v1577 = vunpack.c.l.b16 %v1495
        %v1578 = vunpack.c.l.b16 %v1496
        %v1579 = vunpack.c.l.b16 %v1497
        %v1580 = vunpack.c.l.b16 %v1498
        %v1581 = vpack.c.b16 %v1541, %v1540
        %v1582 = vpack.c.b16 %v1543, %v1542
        %v1583 = vpack.c.b16 %v1545, %v1544
        %v1584 = vpack.c.b16 %v1547, %v1546
        %v1585 = vpack.c.b16 %v1549, %v1548
        %v1586 = vpack.c.b16 %v1551, %v1550
        %v1587 = vpack.c.b16 %v1553, %v1552
        %v1588 = vpack.c.b16 %v1555, %v1554
        %v1589 = vpack.c.b16 %v1557, %v1556
        %v1590 = vpack.c.b16 %v1559, %v1558
        %v1591 = vpack.c.b16 %v1561, %v1560
        %v1592 = vpack.c.b16 %v1563, %v1562
        %v1593 = vpack.c.b16 %v1565, %v1564
        %v1594 = vpack.c.b16 %v1567, %v1566
        %v1595 = vpack.c.b16 %v1569, %v1568
        %v1596 = vpack.c.b16 %v1571, %v1570
        %v1597 = vpack.c.b16 %v1573, %v1572
        %v1598 = vpack.c.b16 %v1575, %v1574
        %v1599 = vpack.c.b16 %v1577, %v1576
        %v1600 = vpack.c.b16 %v1579, %v1578
        %v1601 = vpack.c.b16 %v1580, %v1580
        %v1602 = vrot.slane %v1581, 2
        %v1603 = vrot.slane %v1582, 2
        %v1604 = vsel %vm971, %v1602, %v1603
        %v1605 = vrot.slane %v1583, 2
        %v1606 = vsel %vm971, %v1603, %v1605
        %v1607 = vrot.slane %v1584, 2
        %v1608 = vsel %vm971, %v1605, %v1607
        %v1609 = vrot.slane %v1585, 2
        %v1610 = vsel %vm971, %v1607, %v1609
        %v1611 = vrot.slane %v1586, 2
        %v1612 = vsel %vm971, %v1609, %v1611
        %v1613 = vrot.slane %v1587, 2
        %v1614 = vsel %vm971, %v1611, %v1613
        %v1615 = vrot.slane %v1588, 2
        %v1616 = vsel %vm971, %v1613, %v1615
        %v1617 = vrot.slane %v1589, 2
        %v1618 = vsel %vm971, %v1615, %v1617
        %v1619 = vrot.slane %v1590, 2
        %v1620 = vsel %vm971, %v1617, %v1619
        %v1621 = vrot.slane %v1591, 2
        %v1622 = vsel %vm971, %v1619, %v1621
        %v1623 = vrot.slane %v1592, 2
        %v1624 = vsel %vm971, %v1621, %v1623
        %v1625 = vrot.slane %v1593, 2
        %v1626 = vsel %vm971, %v1623, %v1625
        %v1627 = vrot.slane %v1594, 2
        %v1628 = vsel %vm971, %v1625, %v1627
        %v1629 = vrot.slane %v1595, 2
        %v1630 = vsel %vm971, %v1627, %v1629
        %v1631 = vrot.slane %v1596, 2
        %v1632 = vsel %vm971, %v1629, %v1631
        %v1633 = vrot.slane %v1597, 2
        %v1634 = vsel %vm971, %v1631, %v1633
        %v1635 = vrot.slane %v1598, 2
        %v1636 = vsel %vm971, %v1633, %v1635
        %v1637 = vrot.slane %v1599, 2
        %v1638 = vsel %vm971, %v1635, %v1637
        %v1639 = vrot.slane %v1600, 2
        %v1640 = vsel %vm971, %v1637, %v1639
        %v1641 = vrot.slane %v1601, 2
        %v1642 = vsel %vm971, %v1639, %v1641
        %1663 = vst [vmem:[#allocation2 + $0x28] sm:$0xff] %v1604
        %1664 = vst [vmem:[#allocation2 + $0x70] sm:$0xff] %v1606
        %1665 = vst [vmem:[#allocation2 + $0xb8] sm:$0xff] %v1608
        %1666 = vst [vmem:[#allocation2 + $0x100] sm:$0xff] %v1610
        %1667 = vst [vmem:[#allocation2 + $0x148] sm:$0xff] %v1612
        %1668 = vst [vmem:[#allocation2 + $0x190] sm:$0xff] %v1614
        %1669 = vst [vmem:[#allocation2 + $0x1d8] sm:$0xff] %v1616
        %1670 = vst [vmem:[#allocation2 + $0x220] sm:$0xff] %v1618
        %1671 = vst [vmem:[#allocation2 + $0x268] sm:$0xff] %v1620
        %1672 = vst [vmem:[#allocation2 + $0x2b0] sm:$0xff] %v1622
        %1673 = vst [vmem:[#allocation2 + $0x2f8] sm:$0xff] %v1624
        %1674 = vst [vmem:[#allocation2 + $0x340] sm:$0xff] %v1626
        %1675 = vst [vmem:[#allocation2 + $0x388] sm:$0xff] %v1628
        %1676 = vst [vmem:[#allocation2 + $0x3d0] sm:$0xff] %v1630
        %1677 = vst [vmem:[#allocation2 + $0x418] sm:$0xff] %v1632
        %1678 = vst [vmem:[#allocation2 + $0x460] sm:$0xff] %v1634
        %1679 = vst [vmem:[#allocation2 + $0x4a8] sm:$0xff] %v1636
        %1680 = vst [vmem:[#allocation2 + $0x4f0] sm:$0xff] %v1638
        %1681 = vst [vmem:[#allocation2 + $0x538] sm:$0xff] %v1640
        %1682 = vst [vmem:[#allocation2 + $0x580] sm:$0xff] %v1642
        %v1683 = vld [vmem:[%s234 + $0x28] sm:$0xf]
        %v1684 = vld [vmem:[%s234 + $0x2c] sm:$0xf]
        %v1685 = vld [vmem:[%s234 + $0x30] sm:$0xf]
        %v1686 = vld [vmem:[%s234 + $0x34] sm:$0xf]
        %v1687 = vld [vmem:[%s234 + $0x38] sm:$0xf]
        %v1688 = vld [vmem:[%s234 + $0x3c] sm:$0xf]
        %v1689 = vld [vmem:[%s234 + $0x40] sm:$0xf]
        %v1690 = vld [vmem:[%s234 + $0x44] sm:$0xf]
        %v1691 = vld [vmem:[%s234 + $0x48] sm:$0xf]
        %v1692 = vld [vmem:[%s234 + $0x4c] sm:$0xf]
        %v1693 = vld [vmem:[%s234 + $0x50] sm:$0xf]
        %v1694 = vld [vmem:[%s234 + $0x54] sm:$0xf]
        %v1695 = vld [vmem:[%s234 + $0x58] sm:$0xf]
        %v1696 = vld [vmem:[%s234 + $0x5c] sm:$0xf]
        %v1697 = vld [vmem:[%s234 + $0x60] sm:$0xf]
        %v1698 = vld [vmem:[%s234 + $0x64] sm:$0xf]
        %v1699 = vld [vmem:[%s234 + $0x68] sm:$0xf]
        %v1700 = vld [vmem:[%s234 + $0x6c] sm:$0xf]
        %v1701 = vld [vmem:[%s234 + $0x70] sm:$0xf]
        %v1702 = vld [vmem:[%s234 + $0x74] sm:$0xf]
        %v1703 = vld [vmem:[%s234 + $0x78] sm:$0xf]
        %v1704 = vld [vmem:[%s234 + $0x7c] sm:$0xf]
        %v1705 = vld [vmem:[%s234 + $0x80] sm:$0xf]
        %v1706 = vld [vmem:[%s234 + $0x84] sm:$0xf]
        %v1707 = vld [vmem:[%s234 + $0x88] sm:$0xf]
        %v1708 = vld [vmem:[%s234 + $0x8c] sm:$0xf]
        %v1709 = vld [vmem:[%s234 + $0x90] sm:$0xf]
        %v1710 = vld [vmem:[%s234 + $0x94] sm:$0xf]
        %v1711 = vld [vmem:[%s234 + $0x98] sm:$0xf]
        %v1712 = vld [vmem:[%s234 + $0x9c] sm:$0xf]
        %v1713 = vld [vmem:[%s234 + $0xa0] sm:$0xf]
        %v1714 = vld [vmem:[%s234 + $0xa4] sm:$0xf]
        %v1715 = vld [vmem:[%s234 + $0xa8] sm:$0xf]
        %v1716 = vld [vmem:[%s234 + $0xac] sm:$0xf]
        %v1717 = vld [vmem:[%s234 + $0xb0] sm:$0xf]
        %v1718 = vld [vmem:[%s234 + $0xb4] sm:$0xf]
        %v1719 = vld [vmem:[%s234 + $0xb8] sm:$0xf]
        %v1720 = vld [vmem:[%s234 + $0xbc] sm:$0xf]
        %v1721 = vld [vmem:[%s234 + $0xc0] sm:$0xf]
        %v1722 = vld [vmem:[%s234 + $0xc4] sm:$0xf]
        %v1763 = vunpack.c.l.b16 %v1683
        %v1764 = vunpack.c.l.b16 %v1684
        %v1765 = vunpack.c.l.b16 %v1685
        %v1766 = vunpack.c.l.b16 %v1686
        %v1767 = vunpack.c.l.b16 %v1687
        %v1768 = vunpack.c.l.b16 %v1688
        %v1769 = vunpack.c.l.b16 %v1689
        %v1770 = vunpack.c.l.b16 %v1690
        %v1771 = vunpack.c.l.b16 %v1691
        %v1772 = vunpack.c.l.b16 %v1692
        %v1773 = vunpack.c.l.b16 %v1693
        %v1774 = vunpack.c.l.b16 %v1694
        %v1775 = vunpack.c.l.b16 %v1695
        %v1776 = vunpack.c.l.b16 %v1696
        %v1777 = vunpack.c.l.b16 %v1697
        %v1778 = vunpack.c.l.b16 %v1698
        %v1779 = vunpack.c.l.b16 %v1699
        %v1780 = vunpack.c.l.b16 %v1700
        %v1781 = vunpack.c.l.b16 %v1701
        %v1782 = vunpack.c.l.b16 %v1702
        %v1783 = vunpack.c.l.b16 %v1703
        %v1784 = vunpack.c.l.b16 %v1704
        %v1785 = vunpack.c.l.b16 %v1705
        %v1786 = vunpack.c.l.b16 %v1706
        %v1787 = vunpack.c.l.b16 %v1707
        %v1788 = vunpack.c.l.b16 %v1708
        %v1789 = vunpack.c.l.b16 %v1709
        %v1790 = vunpack.c.l.b16 %v1710
        %v1791 = vunpack.c.l.b16 %v1711
        %v1792 = vunpack.c.l.b16 %v1712
        %v1793 = vunpack.c.l.b16 %v1713
        %v1794 = vunpack.c.l.b16 %v1714
        %v1795 = vunpack.c.l.b16 %v1715
        %v1796 = vunpack.c.l.b16 %v1716
        %v1797 = vunpack.c.l.b16 %v1717
        %v1798 = vunpack.c.l.b16 %v1718
        %v1799 = vunpack.c.l.b16 %v1719
        %v1800 = vunpack.c.l.b16 %v1720
        %v1801 = vunpack.c.l.b16 %v1721
        %v1802 = vunpack.c.l.b16 %v1722
        %v1803 = vpack.c.b16 %v1764, %v1763
        %v1804 = vpack.c.b16 %v1766, %v1765
        %v1805 = vpack.c.b16 %v1768, %v1767
        %v1806 = vpack.c.b16 %v1770, %v1769
        %v1807 = vpack.c.b16 %v1772, %v1771
        %v1808 = vpack.c.b16 %v1774, %v1773
        %v1809 = vpack.c.b16 %v1776, %v1775
        %v1810 = vpack.c.b16 %v1778, %v1777
        %v1811 = vpack.c.b16 %v1780, %v1779
        %v1812 = vpack.c.b16 %v1782, %v1781
        %v1813 = vpack.c.b16 %v1784, %v1783
        %v1814 = vpack.c.b16 %v1786, %v1785
        %v1815 = vpack.c.b16 %v1788, %v1787
        %v1816 = vpack.c.b16 %v1790, %v1789
        %v1817 = vpack.c.b16 %v1792, %v1791
        %v1818 = vpack.c.b16 %v1794, %v1793
        %v1819 = vpack.c.b16 %v1796, %v1795
        %v1820 = vpack.c.b16 %v1798, %v1797
        %v1821 = vpack.c.b16 %v1800, %v1799
        %v1822 = vpack.c.b16 %v1802, %v1801
        %1843 = vst [vmem:[#allocation2 + $0x30] sm:$0xff] %v1803
        %1844 = vst [vmem:[#allocation2 + $0x78] sm:$0xff] %v1804
        %1845 = vst [vmem:[#allocation2 + $0xc0] sm:$0xff] %v1805
        %1846 = vst [vmem:[#allocation2 + $0x108] sm:$0xff] %v1806
        %1847 = vst [vmem:[#allocation2 + $0x150] sm:$0xff] %v1807
        %1848 = vst [vmem:[#allocation2 + $0x198] sm:$0xff] %v1808
        %1849 = vst [vmem:[#allocation2 + $0x1e0] sm:$0xff] %v1809
        %1850 = vst [vmem:[#allocation2 + $0x228] sm:$0xff] %v1810
        %1851 = vst [vmem:[#allocation2 + $0x270] sm:$0xff] %v1811
        %1852 = vst [vmem:[#allocation2 + $0x2b8] sm:$0xff] %v1812
        %1853 = vst [vmem:[#allocation2 + $0x300] sm:$0xff] %v1813
        %1854 = vst [vmem:[#allocation2 + $0x348] sm:$0xff] %v1814
        %1855 = vst [vmem:[#allocation2 + $0x390] sm:$0xff] %v1815
        %1856 = vst [vmem:[#allocation2 + $0x3d8] sm:$0xff] %v1816
        %1857 = vst [vmem:[#allocation2 + $0x420] sm:$0xff] %v1817
        %1858 = vst [vmem:[#allocation2 + $0x468] sm:$0xff] %v1818
        %1859 = vst [vmem:[#allocation2 + $0x4b0] sm:$0xff] %v1819
        %1860 = vst [vmem:[#allocation2 + $0x4f8] sm:$0xff] %v1820
        %1861 = vst [vmem:[#allocation2 + $0x540] sm:$0xff] %v1821
        %1862 = vst [vmem:[#allocation2 + $0x588] sm:$0xff] %v1822
        %v1863 = vld [vmem:[%s234 + $0x28] sm:$0xe]
        %v1864 = vld [vmem:[%s234 + $0x2c] sm:$0xf]
        %v1865 = vld [vmem:[%s234 + $0x30] sm:$0xf]
        %v1866 = vld [vmem:[%s234 + $0x34] sm:$0xf]
        %v1867 = vld [vmem:[%s234 + $0x38] sm:$0xf]
        %v1868 = vld [vmem:[%s234 + $0x3c] sm:$0xf]
        %v1869 = vld [vmem:[%s234 + $0x40] sm:$0xf]
        %v1870 = vld [vmem:[%s234 + $0x44] sm:$0xf]
        %v1871 = vld [vmem:[%s234 + $0x48] sm:$0xf]
        %v1872 = vld [vmem:[%s234 + $0x4c] sm:$0xf]
        %v1873 = vld [vmem:[%s234 + $0x50] sm:$0xf]
        %v1874 = vld [vmem:[%s234 + $0x54] sm:$0xf]
        %v1875 = vld [vmem:[%s234 + $0x58] sm:$0xf]
        %v1876 = vld [vmem:[%s234 + $0x5c] sm:$0xf]
        %v1877 = vld [vmem:[%s234 + $0x60] sm:$0xf]
        %v1878 = vld [vmem:[%s234 + $0x64] sm:$0xf]
        %v1879 = vld [vmem:[%s234 + $0x68] sm:$0xf]
        %v1880 = vld [vmem:[%s234 + $0x6c] sm:$0xf]
        %v1881 = vld [vmem:[%s234 + $0x70] sm:$0xf]
        %v1882 = vld [vmem:[%s234 + $0x74] sm:$0xf]
        %v1883 = vld [vmem:[%s234 + $0x78] sm:$0xf]
        %v1884 = vld [vmem:[%s234 + $0x7c] sm:$0xf]
        %v1885 = vld [vmem:[%s234 + $0x80] sm:$0xf]
        %v1886 = vld [vmem:[%s234 + $0x84] sm:$0xf]
        %v1887 = vld [vmem:[%s234 + $0x88] sm:$0xf]
        %v1888 = vld [vmem:[%s234 + $0x8c] sm:$0xf]
        %v1889 = vld [vmem:[%s234 + $0x90] sm:$0xf]
        %v1890 = vld [vmem:[%s234 + $0x94] sm:$0xf]
        %v1891 = vld [vmem:[%s234 + $0x98] sm:$0xf]
        %v1892 = vld [vmem:[%s234 + $0x9c] sm:$0xf]
        %v1893 = vld [vmem:[%s234 + $0xa0] sm:$0xf]
        %v1894 = vld [vmem:[%s234 + $0xa4] sm:$0xf]
        %v1895 = vld [vmem:[%s234 + $0xa8] sm:$0xf]
        %v1896 = vld [vmem:[%s234 + $0xac] sm:$0xf]
        %v1897 = vld [vmem:[%s234 + $0xb0] sm:$0xf]
        %v1898 = vld [vmem:[%s234 + $0xb4] sm:$0xf]
        %v1899 = vld [vmem:[%s234 + $0xb8] sm:$0xf]
        %v1900 = vld [vmem:[%s234 + $0xbc] sm:$0xf]
        %v1901 = vld [vmem:[%s234 + $0xc0] sm:$0xf]
        %v1902 = vld [vmem:[%s234 + $0xc4] sm:$0xf]
        %v1903 = vld [vmem:[%s234 + $0xc8] sm:$0x1]
        %v1945 = vunpack.c.l.b16 %v1863
        %v1946 = vunpack.c.l.b16 %v1864
        %v1947 = vunpack.c.l.b16 %v1865
        %v1948 = vunpack.c.l.b16 %v1866
        %v1949 = vunpack.c.l.b16 %v1867
        %v1950 = vunpack.c.l.b16 %v1868
        %v1951 = vunpack.c.l.b16 %v1869
        %v1952 = vunpack.c.l.b16 %v1870
        %v1953 = vunpack.c.l.b16 %v1871
        %v1954 = vunpack.c.l.b16 %v1872
        %v1955 = vunpack.c.l.b16 %v1873
        %v1956 = vunpack.c.l.b16 %v1874
        %v1957 = vunpack.c.l.b16 %v1875
        %v1958 = vunpack.c.l.b16 %v1876
        %v1959 = vunpack.c.l.b16 %v1877
        %v1960 = vunpack.c.l.b16 %v1878
        %v1961 = vunpack.c.l.b16 %v1879
        %v1962 = vunpack.c.l.b16 %v1880
        %v1963 = vunpack.c.l.b16 %v1881
        %v1964 = vunpack.c.l.b16 %v1882
        %v1965 = vunpack.c.l.b16 %v1883
        %v1966 = vunpack.c.l.b16 %v1884
        %v1967 = vunpack.c.l.b16 %v1885
        %v1968 = vunpack.c.l.b16 %v1886
        %v1969 = vunpack.c.l.b16 %v1887
        %v1970 = vunpack.c.l.b16 %v1888
        %v1971 = vunpack.c.l.b16 %v1889
        %v1972 = vunpack.c.l.b16 %v1890
        %v1973 = vunpack.c.l.b16 %v1891
        %v1974 = vunpack.c.l.b16 %v1892
        %v1975 = vunpack.c.l.b16 %v1893
        %v1976 = vunpack.c.l.b16 %v1894
        %v1977 = vunpack.c.l.b16 %v1895
        %v1978 = vunpack.c.l.b16 %v1896
        %v1979 = vunpack.c.l.b16 %v1897
        %v1980 = vunpack.c.l.b16 %v1898
        %v1981 = vunpack.c.l.b16 %v1899
        %v1982 = vunpack.c.l.b16 %v1900
        %v1983 = vunpack.c.l.b16 %v1901
        %v1984 = vunpack.c.l.b16 %v1902
        %v1985 = vunpack.c.l.b16 %v1903
        %v1986 = vpack.c.b16 %v1946, %v1945
        %v1987 = vpack.c.b16 %v1948, %v1947
        %v1988 = vpack.c.b16 %v1950, %v1949
        %v1989 = vpack.c.b16 %v1952, %v1951
        %v1990 = vpack.c.b16 %v1954, %v1953
        %v1991 = vpack.c.b16 %v1956, %v1955
        %v1992 = vpack.c.b16 %v1958, %v1957
        %v1993 = vpack.c.b16 %v1960, %v1959
        %v1994 = vpack.c.b16 %v1962, %v1961
        %v1995 = vpack.c.b16 %v1964, %v1963
        %v1996 = vpack.c.b16 %v1966, %v1965
        %v1997 = vpack.c.b16 %v1968, %v1967
        %v1998 = vpack.c.b16 %v1970, %v1969
        %v1999 = vpack.c.b16 %v1972, %v1971
        %v2000 = vpack.c.b16 %v1974, %v1973
        %v2001 = vpack.c.b16 %v1976, %v1975
        %v2002 = vpack.c.b16 %v1978, %v1977
        %v2003 = vpack.c.b16 %v1980, %v1979
        %v2004 = vpack.c.b16 %v1982, %v1981
        %v2005 = vpack.c.b16 %v1984, %v1983
        %v2006 = vpack.c.b16 %v1985, %v1985
        %v2007 = vrot.slane %v1986, 1
        %v2008 = vrot.slane %v1987, 1
        %v2009 = vsel %vm745, %v2007, %v2008
        %v2010 = vrot.slane %v1988, 1
        %v2011 = vsel %vm745, %v2008, %v2010
        %v2012 = vrot.slane %v1989, 1
        %v2013 = vsel %vm745, %v2010, %v2012
        %v2014 = vrot.slane %v1990, 1
        %v2015 = vsel %vm745, %v2012, %v2014
        %v2016 = vrot.slane %v1991, 1
        %v2017 = vsel %vm745, %v2014, %v2016
        %v2018 = vrot.slane %v1992, 1
        %v2019 = vsel %vm745, %v2016, %v2018
        %v2020 = vrot.slane %v1993, 1
        %v2021 = vsel %vm745, %v2018, %v2020
        %v2022 = vrot.slane %v1994, 1
        %v2023 = vsel %vm745, %v2020, %v2022
        %v2024 = vrot.slane %v1995, 1
        %v2025 = vsel %vm745, %v2022, %v2024
        %v2026 = vrot.slane %v1996, 1
        %v2027 = vsel %vm745, %v2024, %v2026
        %v2028 = vrot.slane %v1997, 1
        %v2029 = vsel %vm745, %v2026, %v2028
        %v2030 = vrot.slane %v1998, 1
        %v2031 = vsel %vm745, %v2028, %v2030
        %v2032 = vrot.slane %v1999, 1
        %v2033 = vsel %vm745, %v2030, %v2032
        %v2034 = vrot.slane %v2000, 1
        %v2035 = vsel %vm745, %v2032, %v2034
        %v2036 = vrot.slane %v2001, 1
        %v2037 = vsel %vm745, %v2034, %v2036
        %v2038 = vrot.slane %v2002, 1
        %v2039 = vsel %vm745, %v2036, %v2038
        %v2040 = vrot.slane %v2003, 1
        %v2041 = vsel %vm745, %v2038, %v2040
        %v2042 = vrot.slane %v2004, 1
        %v2043 = vsel %vm745, %v2040, %v2042
        %v2044 = vrot.slane %v2005, 1
        %v2045 = vsel %vm745, %v2042, %v2044
        %v2046 = vrot.slane %v2006, 1
        %v2047 = vsel %vm745, %v2044, %v2046
        %2068 = vst [vmem:[#allocation2 + $0x38] sm:$0xff] %v2009
        %2069 = vst [vmem:[#allocation2 + $0x80] sm:$0xff] %v2011
        %2070 = vst [vmem:[#allocation2 + $0xc8] sm:$0xff] %v2013
        %2071 = vst [vmem:[#allocation2 + $0x110] sm:$0xff] %v2015
        %2072 = vst [vmem:[#allocation2 + $0x158] sm:$0xff] %v2017
        %2073 = vst [vmem:[#allocation2 + $0x1a0] sm:$0xff] %v2019
        %2074 = vst [vmem:[#allocation2 + $0x1e8] sm:$0xff] %v2021
        %2075 = vst [vmem:[#allocation2 + $0x230] sm:$0xff] %v2023
        %2076 = vst [vmem:[#allocation2 + $0x278] sm:$0xff] %v2025
        %2077 = vst [vmem:[#allocation2 + $0x2c0] sm:$0xff] %v2027
        %2078 = vst [vmem:[#allocation2 + $0x308] sm:$0xff] %v2029
        %2079 = vst [vmem:[#allocation2 + $0x350] sm:$0xff] %v2031
        %2080 = vst [vmem:[#allocation2 + $0x398] sm:$0xff] %v2033
        %2081 = vst [vmem:[#allocation2 + $0x3e0] sm:$0xff] %v2035
        %2082 = vst [vmem:[#allocation2 + $0x428] sm:$0xff] %v2037
        %2083 = vst [vmem:[#allocation2 + $0x470] sm:$0xff] %v2039
        %2084 = vst [vmem:[#allocation2 + $0x4b8] sm:$0xff] %v2041
        %2085 = vst [vmem:[#allocation2 + $0x500] sm:$0xff] %v2043
        %2086 = vst [vmem:[#allocation2 + $0x548] sm:$0xff] %v2045
        %2087 = vst [vmem:[#allocation2 + $0x590] sm:$0xff] %v2047
        %v2088 = vld [vmem:[%s234 + $0x28] sm:$0xc]
        %v2089 = vld [vmem:[%s234 + $0x2c] sm:$0xf]
        %v2090 = vld [vmem:[%s234 + $0x30] sm:$0xf]
        %v2091 = vld [vmem:[%s234 + $0x34] sm:$0xf]
        %v2092 = vld [vmem:[%s234 + $0x38] sm:$0xf]
        %v2093 = vld [vmem:[%s234 + $0x3c] sm:$0xf]
        %v2094 = vld [vmem:[%s234 + $0x40] sm:$0xf]
        %v2095 = vld [vmem:[%s234 + $0x44] sm:$0xf]
        %v2096 = vld [vmem:[%s234 + $0x48] sm:$0xf]
        %v2097 = vld [vmem:[%s234 + $0x4c] sm:$0xf]
        %v2098 = vld [vmem:[%s234 + $0x50] sm:$0xf]
        %v2099 = vld [vmem:[%s234 + $0x54] sm:$0xf]
        %v2100 = vld [vmem:[%s234 + $0x58] sm:$0xf]
        %v2101 = vld [vmem:[%s234 + $0x5c] sm:$0xf]
        %v2102 = vld [vmem:[%s234 + $0x60] sm:$0xf]
        %v2103 = vld [vmem:[%s234 + $0x64] sm:$0xf]
        %v2104 = vld [vmem:[%s234 + $0x68] sm:$0xf]
        %v2105 = vld [vmem:[%s234 + $0x6c] sm:$0xf]
        %v2106 = vld [vmem:[%s234 + $0x70] sm:$0xf]
        %v2107 = vld [vmem:[%s234 + $0x74] sm:$0xf]
        %v2108 = vld [vmem:[%s234 + $0x78] sm:$0xf]
        %v2109 = vld [vmem:[%s234 + $0x7c] sm:$0xf]
        %v2110 = vld [vmem:[%s234 + $0x80] sm:$0xf]
        %v2111 = vld [vmem:[%s234 + $0x84] sm:$0xf]
        %v2112 = vld [vmem:[%s234 + $0x88] sm:$0xf]
        %v2113 = vld [vmem:[%s234 + $0x8c] sm:$0xf]
        %v2114 = vld [vmem:[%s234 + $0x90] sm:$0xf]
        %v2115 = vld [vmem:[%s234 + $0x94] sm:$0xf]
        %v2116 = vld [vmem:[%s234 + $0x98] sm:$0xf]
        %v2117 = vld [vmem:[%s234 + $0x9c] sm:$0xf]
        %v2118 = vld [vmem:[%s234 + $0xa0] sm:$0xf]
        %v2119 = vld [vmem:[%s234 + $0xa4] sm:$0xf]
        %v2120 = vld [vmem:[%s234 + $0xa8] sm:$0xf]
        %v2121 = vld [vmem:[%s234 + $0xac] sm:$0xf]
        %v2122 = vld [vmem:[%s234 + $0xb0] sm:$0xf]
        %v2123 = vld [vmem:[%s234 + $0xb4] sm:$0xf]
        %v2124 = vld [vmem:[%s234 + $0xb8] sm:$0xf]
        %v2125 = vld [vmem:[%s234 + $0xbc] sm:$0xf]
        %v2126 = vld [vmem:[%s234 + $0xc0] sm:$0xf]
        %v2127 = vld [vmem:[%s234 + $0xc4] sm:$0xf]
        %v2128 = vld [vmem:[%s234 + $0xc8] sm:$0x3]
        %v2170 = vunpack.c.l.b16 %v2088
        %v2171 = vunpack.c.l.b16 %v2089
        %v2172 = vunpack.c.l.b16 %v2090
        %v2173 = vunpack.c.l.b16 %v2091
        %v2174 = vunpack.c.l.b16 %v2092
        %v2175 = vunpack.c.l.b16 %v2093
        %v2176 = vunpack.c.l.b16 %v2094
        %v2177 = vunpack.c.l.b16 %v2095
        %v2178 = vunpack.c.l.b16 %v2096
        %v2179 = vunpack.c.l.b16 %v2097
        %v2180 = vunpack.c.l.b16 %v2098
        %v2181 = vunpack.c.l.b16 %v2099
        %v2182 = vunpack.c.l.b16 %v2100
        %v2183 = vunpack.c.l.b16 %v2101
        %v2184 = vunpack.c.l.b16 %v2102
        %v2185 = vunpack.c.l.b16 %v2103
        %v2186 = vunpack.c.l.b16 %v2104
        %v2187 = vunpack.c.l.b16 %v2105
        %v2188 = vunpack.c.l.b16 %v2106
        %v2189 = vunpack.c.l.b16 %v2107
        %v2190 = vunpack.c.l.b16 %v2108
        %v2191 = vunpack.c.l.b16 %v2109
        %v2192 = vunpack.c.l.b16 %v2110
        %v2193 = vunpack.c.l.b16 %v2111
        %v2194 = vunpack.c.l.b16 %v2112
        %v2195 = vunpack.c.l.b16 %v2113
        %v2196 = vunpack.c.l.b16 %v2114
        %v2197 = vunpack.c.l.b16 %v2115
        %v2198 = vunpack.c.l.b16 %v2116
        %v2199 = vunpack.c.l.b16 %v2117
        %v2200 = vunpack.c.l.b16 %v2118
        %v2201 = vunpack.c.l.b16 %v2119
        %v2202 = vunpack.c.l.b16 %v2120
        %v2203 = vunpack.c.l.b16 %v2121
        %v2204 = vunpack.c.l.b16 %v2122
        %v2205 = vunpack.c.l.b16 %v2123
        %v2206 = vunpack.c.l.b16 %v2124
        %v2207 = vunpack.c.l.b16 %v2125
        %v2208 = vunpack.c.l.b16 %v2126
        %v2209 = vunpack.c.l.b16 %v2127
        %v2210 = vunpack.c.l.b16 %v2128
        %v2211 = vpack.c.b16 %v2171, %v2170
        %v2212 = vpack.c.b16 %v2173, %v2172
        %v2213 = vpack.c.b16 %v2175, %v2174
        %v2214 = vpack.c.b16 %v2177, %v2176
        %v2215 = vpack.c.b16 %v2179, %v2178
        %v2216 = vpack.c.b16 %v2181, %v2180
        %v2217 = vpack.c.b16 %v2183, %v2182
        %v2218 = vpack.c.b16 %v2185, %v2184
        %v2219 = vpack.c.b16 %v2187, %v2186
        %v2220 = vpack.c.b16 %v2189, %v2188
        %v2221 = vpack.c.b16 %v2191, %v2190
        %v2222 = vpack.c.b16 %v2193, %v2192
        %v2223 = vpack.c.b16 %v2195, %v2194
        %v2224 = vpack.c.b16 %v2197, %v2196
        %v2225 = vpack.c.b16 %v2199, %v2198
        %v2226 = vpack.c.b16 %v2201, %v2200
        %v2227 = vpack.c.b16 %v2203, %v2202
        %v2228 = vpack.c.b16 %v2205, %v2204
        %v2229 = vpack.c.b16 %v2207, %v2206
        %v2230 = vpack.c.b16 %v2209, %v2208
        %v2231 = vpack.c.b16 %v2210, %v2210
        %v2232 = vrot.slane %v2211, 2
        %v2233 = vrot.slane %v2212, 2
        %v2234 = vsel %vm971, %v2232, %v2233
        %v2235 = vrot.slane %v2213, 2
        %v2236 = vsel %vm971, %v2233, %v2235
        %v2237 = vrot.slane %v2214, 2
        %v2238 = vsel %vm971, %v2235, %v2237
        %v2239 = vrot.slane %v2215, 2
        %v2240 = vsel %vm971, %v2237, %v2239
        %v2241 = vrot.slane %v2216, 2
        %v2242 = vsel %vm971, %v2239, %v2241
        %v2243 = vrot.slane %v2217, 2
        %v2244 = vsel %vm971, %v2241, %v2243
        %v2245 = vrot.slane %v2218, 2
        %v2246 = vsel %vm971, %v2243, %v2245
        %v2247 = vrot.slane %v2219, 2
        %v2248 = vsel %vm971, %v2245, %v2247
        %v2249 = vrot.slane %v2220, 2
        %v2250 = vsel %vm971, %v2247, %v2249
        %v2251 = vrot.slane %v2221, 2
        %v2252 = vsel %vm971, %v2249, %v2251
        %v2253 = vrot.slane %v2222, 2
        %v2254 = vsel %vm971, %v2251, %v2253
        %v2255 = vrot.slane %v2223, 2
        %v2256 = vsel %vm971, %v2253, %v2255
        %v2257 = vrot.slane %v2224, 2
        %v2258 = vsel %vm971, %v2255, %v2257
        %v2259 = vrot.slane %v2225, 2
        %v2260 = vsel %vm971, %v2257, %v2259
        %v2261 = vrot.slane %v2226, 2
        %v2262 = vsel %vm971, %v2259, %v2261
        %v2263 = vrot.slane %v2227, 2
        %v2264 = vsel %vm971, %v2261, %v2263
        %v2265 = vrot.slane %v2228, 2
        %v2266 = vsel %vm971, %v2263, %v2265
        %v2267 = vrot.slane %v2229, 2
        %v2268 = vsel %vm971, %v2265, %v2267
        %v2269 = vrot.slane %v2230, 2
        %v2270 = vsel %vm971, %v2267, %v2269
        %v2271 = vrot.slane %v2231, 2
        %v2272 = vsel %vm971, %v2269, %v2271
        %2293 = vst [vmem:[#allocation2 + $0x40] sm:$0xff] %v2234
        %2294 = vst [vmem:[#allocation2 + $0x88] sm:$0xff] %v2236
        %2295 = vst [vmem:[#allocation2 + $0xd0] sm:$0xff] %v2238
        %2296 = vst [vmem:[#allocation2 + $0x118] sm:$0xff] %v2240
        %2297 = vst [vmem:[#allocation2 + $0x160] sm:$0xff] %v2242
        %2298 = vst [vmem:[#allocation2 + $0x1a8] sm:$0xff] %v2244
        %2299 = vst [vmem:[#allocation2 + $0x1f0] sm:$0xff] %v2246
        %2300 = vst [vmem:[#allocation2 + $0x238] sm:$0xff] %v2248
        %2301 = vst [vmem:[#allocation2 + $0x280] sm:$0xff] %v2250
        %2302 = vst [vmem:[#allocation2 + $0x2c8] sm:$0xff] %v2252
        %2303 = vst [vmem:[#allocation2 + $0x310] sm:$0xff] %v2254
        %2304 = vst [vmem:[#allocation2 + $0x358] sm:$0xff] %v2256
        %2305 = vst [vmem:[#allocation2 + $0x3a0] sm:$0xff] %v2258
        %2306 = vst [vmem:[#allocation2 + $0x3e8] sm:$0xff] %v2260
        %2307 = vst [vmem:[#allocation2 + $0x430] sm:$0xff] %v2262
        %2308 = vst [vmem:[#allocation2 + $0x478] sm:$0xff] %v2264
        %2309 = vst [vmem:[#allocation2 + $0x4c0] sm:$0xff] %v2266
        %2310 = vst [vmem:[#allocation2 + $0x508] sm:$0xff] %v2268
        %2311 = vst [vmem:[#allocation2 + $0x550] sm:$0xff] %v2270
        %2312 = vst [vmem:[#allocation2 + $0x598] sm:$0xff] %v2272
        %v2313 = vld [vmem:[#allocation2] sm:$0xff]
        %v2314 = vld [vmem:[#allocation2 + $0x8] sm:$0xff]
        %v2315 = vld [vmem:[#allocation2 + $0x10] sm:$0xff]
        %v2316 = vld [vmem:[#allocation2 + $0x18] sm:$0xff]
        %v2317 = vld [vmem:[#allocation2 + $0x20] sm:$0xff]
        %v2318 = vld [vmem:[#allocation2 + $0x28] sm:$0xff]
        %v2319 = vld [vmem:[#allocation2 + $0x30] sm:$0xff]
        %v2320 = vld [vmem:[#allocation2 + $0x38] sm:$0xff]
        %v2321 = vld [vmem:[#allocation2 + $0x40] sm:$0xff]
        %v2322 = vld [vmem:[#allocation2 + $0x48] sm:$0xff]
        %v2323 = vld [vmem:[#allocation2 + $0x50] sm:$0xff]
        %v2324 = vld [vmem:[#allocation2 + $0x58] sm:$0xff]
        %v2325 = vld [vmem:[#allocation2 + $0x60] sm:$0xff]
        %v2326 = vld [vmem:[#allocation2 + $0x68] sm:$0xff]
        %v2327 = vld [vmem:[#allocation2 + $0x70] sm:$0xff]
        %v2328 = vld [vmem:[#allocation2 + $0x78] sm:$0xff]
        %v2329 = vld [vmem:[#allocation2 + $0x80] sm:$0xff]
        %v2330 = vld [vmem:[#allocation2 + $0x88] sm:$0xff]
        %v2331 = vld [vmem:[#allocation2 + $0x90] sm:$0xff]
        %v2332 = vld [vmem:[#allocation2 + $0x98] sm:$0xff]
        %v2333 = vld [vmem:[#allocation2 + $0xa0] sm:$0xff]
        %v2334 = vld [vmem:[#allocation2 + $0xa8] sm:$0xff]
        %v2335 = vld [vmem:[#allocation2 + $0xb0] sm:$0xff]
        %v2336 = vld [vmem:[#allocation2 + $0xb8] sm:$0xff]
        %v2337 = vld [vmem:[#allocation2 + $0xc0] sm:$0xff]
        %v2338 = vld [vmem:[#allocation2 + $0xc8] sm:$0xff]
        %v2339 = vld [vmem:[#allocation2 + $0xd0] sm:$0xff]
        %v2340 = vld [vmem:[#allocation2 + $0xd8] sm:$0xff]
        %v2341 = vld [vmem:[#allocation2 + $0xe0] sm:$0xff]
        %v2342 = vld [vmem:[#allocation2 + $0xe8] sm:$0xff]
        %v2343 = vld [vmem:[#allocation2 + $0xf0] sm:$0xff]
        %v2344 = vld [vmem:[#allocation2 + $0xf8] sm:$0xff]
        %v2345 = vld [vmem:[#allocation2 + $0x100] sm:$0xff]
        %v2346 = vld [vmem:[#allocation2 + $0x108] sm:$0xff]
        %v2347 = vld [vmem:[#allocation2 + $0x110] sm:$0xff]
        %v2348 = vld [vmem:[#allocation2 + $0x118] sm:$0xff]
        %v2349 = vld [vmem:[#allocation2 + $0x120] sm:$0xff]
        %v2350 = vld [vmem:[#allocation2 + $0x128] sm:$0xff]
        %v2351 = vld [vmem:[#allocation2 + $0x130] sm:$0xff]
        %v2352 = vld [vmem:[#allocation2 + $0x138] sm:$0xff]
        %v2353 = vld [vmem:[#allocation2 + $0x140] sm:$0xff]
        %v2354 = vld [vmem:[#allocation2 + $0x148] sm:$0xff]
        %v2355 = vld [vmem:[#allocation2 + $0x150] sm:$0xff]
        %v2356 = vld [vmem:[#allocation2 + $0x158] sm:$0xff]
        %v2357 = vld [vmem:[#allocation2 + $0x160] sm:$0xff]
        %v2358 = vld [vmem:[#allocation2 + $0x168] sm:$0xff]
        %v2359 = vld [vmem:[#allocation2 + $0x170] sm:$0xff]
        %v2360 = vld [vmem:[#allocation2 + $0x178] sm:$0xff]
        %v2361 = vld [vmem:[#allocation2 + $0x180] sm:$0xff]
        %v2362 = vld [vmem:[#allocation2 + $0x188] sm:$0xff]
        %v2363 = vld [vmem:[#allocation2 + $0x190] sm:$0xff]
        %v2364 = vld [vmem:[#allocation2 + $0x198] sm:$0xff]
        %v2365 = vld [vmem:[#allocation2 + $0x1a0] sm:$0xff]
        %v2366 = vld [vmem:[#allocation2 + $0x1a8] sm:$0xff]
        %v2367 = vld [vmem:[#allocation2 + $0x1b0] sm:$0xff]
        %v2368 = vld [vmem:[#allocation2 + $0x1b8] sm:$0xff]
        %v2369 = vld [vmem:[#allocation2 + $0x1c0] sm:$0xff]
        %v2370 = vld [vmem:[#allocation2 + $0x1c8] sm:$0xff]
        %v2371 = vld [vmem:[#allocation2 + $0x1d0] sm:$0xff]
        %v2372 = vld [vmem:[#allocation2 + $0x1d8] sm:$0xff]
        %v2373 = vld [vmem:[#allocation2 + $0x1e0] sm:$0xff]
        %v2374 = vld [vmem:[#allocation2 + $0x1e8] sm:$0xff]
        %v2375 = vld [vmem:[#allocation2 + $0x1f0] sm:$0xff]
        %v2376 = vld [vmem:[#allocation2 + $0x1f8] sm:$0xff]
        %v2377 = vld [vmem:[#allocation2 + $0x200] sm:$0xff]
        %v2378 = vld [vmem:[#allocation2 + $0x208] sm:$0xff]
        %v2379 = vld [vmem:[#allocation2 + $0x210] sm:$0xff]
        %v2380 = vld [vmem:[#allocation2 + $0x218] sm:$0xff]
        %v2381 = vld [vmem:[#allocation2 + $0x220] sm:$0xff]
        %v2382 = vld [vmem:[#allocation2 + $0x228] sm:$0xff]
        %v2383 = vld [vmem:[#allocation2 + $0x230] sm:$0xff]
        %v2384 = vld [vmem:[#allocation2 + $0x238] sm:$0xff]
        %v2385 = vld [vmem:[#allocation2 + $0x240] sm:$0xff]
        %v2386 = vld [vmem:[#allocation2 + $0x248] sm:$0xff]
        %v2387 = vld [vmem:[#allocation2 + $0x250] sm:$0xff]
        %v2388 = vld [vmem:[#allocation2 + $0x258] sm:$0xff]
        %v2389 = vld [vmem:[#allocation2 + $0x260] sm:$0xff]
        %v2390 = vld [vmem:[#allocation2 + $0x268] sm:$0xff]
        %v2391 = vld [vmem:[#allocation2 + $0x270] sm:$0xff]
        %v2392 = vld [vmem:[#allocation2 + $0x278] sm:$0xff]
        %v2393 = vld [vmem:[#allocation2 + $0x280] sm:$0xff]
        %v2394 = vld [vmem:[#allocation2 + $0x288] sm:$0xff]
        %v2395 = vld [vmem:[#allocation2 + $0x290] sm:$0xff]
        %v2396 = vld [vmem:[#allocation2 + $0x298] sm:$0xff]
        %v2397 = vld [vmem:[#allocation2 + $0x2a0] sm:$0xff]
        %v2398 = vld [vmem:[#allocation2 + $0x2a8] sm:$0xff]
        %v2399 = vld [vmem:[#allocation2 + $0x2b0] sm:$0xff]
        %v2400 = vld [vmem:[#allocation2 + $0x2b8] sm:$0xff]
        %v2401 = vld [vmem:[#allocation2 + $0x2c0] sm:$0xff]
        %v2402 = vld [vmem:[#allocation2 + $0x2c8] sm:$0xff]
        %v2403 = vld [vmem:[#allocation2 + $0x2d0] sm:$0xff]
        %v2404 = vld [vmem:[#allocation2 + $0x2d8] sm:$0xff]
        %v2405 = vld [vmem:[#allocation2 + $0x2e0] sm:$0xff]
        %v2406 = vld [vmem:[#allocation2 + $0x2e8] sm:$0xff]
        %v2407 = vld [vmem:[#allocation2 + $0x2f0] sm:$0xff]
        %v2408 = vld [vmem:[#allocation2 + $0x2f8] sm:$0xff]
        %v2409 = vld [vmem:[#allocation2 + $0x300] sm:$0xff]
        %v2410 = vld [vmem:[#allocation2 + $0x308] sm:$0xff]
        %v2411 = vld [vmem:[#allocation2 + $0x310] sm:$0xff]
        %v2412 = vld [vmem:[#allocation2 + $0x318] sm:$0xff]
        %v2413 = vld [vmem:[#allocation2 + $0x320] sm:$0xff]
        %v2414 = vld [vmem:[#allocation2 + $0x328] sm:$0xff]
        %v2415 = vld [vmem:[#allocation2 + $0x330] sm:$0xff]
        %v2416 = vld [vmem:[#allocation2 + $0x338] sm:$0xff]
        %v2417 = vld [vmem:[#allocation2 + $0x340] sm:$0xff]
        %v2418 = vld [vmem:[#allocation2 + $0x348] sm:$0xff]
        %v2419 = vld [vmem:[#allocation2 + $0x350] sm:$0xff]
        %v2420 = vld [vmem:[#allocation2 + $0x358] sm:$0xff]
        %v2421 = vld [vmem:[#allocation2 + $0x360] sm:$0xff]
        %v2422 = vld [vmem:[#allocation2 + $0x368] sm:$0xff]
        %v2423 = vld [vmem:[#allocation2 + $0x370] sm:$0xff]
        %v2424 = vld [vmem:[#allocation2 + $0x378] sm:$0xff]
        %v2425 = vld [vmem:[#allocation2 + $0x380] sm:$0xff]
        %v2426 = vld [vmem:[#allocation2 + $0x388] sm:$0xff]
        %v2427 = vld [vmem:[#allocation2 + $0x390] sm:$0xff]
        %v2428 = vld [vmem:[#allocation2 + $0x398] sm:$0xff]
        %v2429 = vld [vmem:[#allocation2 + $0x3a0] sm:$0xff]
        %v2430 = vld [vmem:[#allocation2 + $0x3a8] sm:$0xff]
        %v2431 = vld [vmem:[#allocation2 + $0x3b0] sm:$0xff]
        %v2432 = vld [vmem:[#allocation2 + $0x3b8] sm:$0xff]
        %v2433 = vld [vmem:[#allocation2 + $0x3c0] sm:$0xff]
        %v2434 = vld [vmem:[#allocation2 + $0x3c8] sm:$0xff]
        %v2435 = vld [vmem:[#allocation2 + $0x3d0] sm:$0xff]
        %v2436 = vld [vmem:[#allocation2 + $0x3d8] sm:$0xff]
        %v2437 = vld [vmem:[#allocation2 + $0x3e0] sm:$0xff]
        %v2438 = vld [vmem:[#allocation2 + $0x3e8] sm:$0xff]
        %v2439 = vld [vmem:[#allocation2 + $0x3f0] sm:$0xff]
        %v2440 = vld [vmem:[#allocation2 + $0x3f8] sm:$0xff]
        %v2441 = vld [vmem:[#allocation2 + $0x400] sm:$0xff]
        %v2442 = vld [vmem:[#allocation2 + $0x408] sm:$0xff]
        %v2443 = vld [vmem:[#allocation2 + $0x410] sm:$0xff]
        %v2444 = vld [vmem:[#allocation2 + $0x418] sm:$0xff]
        %v2445 = vld [vmem:[#allocation2 + $0x420] sm:$0xff]
        %v2446 = vld [vmem:[#allocation2 + $0x428] sm:$0xff]
        %v2447 = vld [vmem:[#allocation2 + $0x430] sm:$0xff]
        %v2448 = vld [vmem:[#allocation2 + $0x438] sm:$0xff]
        %v2449 = vld [vmem:[#allocation2 + $0x440] sm:$0xff]
        %v2450 = vld [vmem:[#allocation2 + $0x448] sm:$0xff]
        %v2451 = vld [vmem:[#allocation2 + $0x450] sm:$0xff]
        %v2452 = vld [vmem:[#allocation2 + $0x458] sm:$0xff]
        %v2453 = vld [vmem:[#allocation2 + $0x460] sm:$0xff]
        %v2454 = vld [vmem:[#allocation2 + $0x468] sm:$0xff]
        %v2455 = vld [vmem:[#allocation2 + $0x470] sm:$0xff]
        %v2456 = vld [vmem:[#allocation2 + $0x478] sm:$0xff]
        %v2457 = vld [vmem:[#allocation2 + $0x480] sm:$0xff]
        %v2458 = vld [vmem:[#allocation2 + $0x488] sm:$0xff]
        %v2459 = vld [vmem:[#allocation2 + $0x490] sm:$0xff]
        %v2460 = vld [vmem:[#allocation2 + $0x498] sm:$0xff]
        %v2461 = vld [vmem:[#allocation2 + $0x4a0] sm:$0xff]
        %v2462 = vld [vmem:[#allocation2 + $0x4a8] sm:$0xff]
        %v2463 = vld [vmem:[#allocation2 + $0x4b0] sm:$0xff]
        %v2464 = vld [vmem:[#allocation2 + $0x4b8] sm:$0xff]
        %v2465 = vld [vmem:[#allocation2 + $0x4c0] sm:$0xff]
        %v2466 = vld [vmem:[#allocation2 + $0x4c8] sm:$0xff]
        %v2467 = vld [vmem:[#allocation2 + $0x4d0] sm:$0xff]
        %v2468 = vld [vmem:[#allocation2 + $0x4d8] sm:$0xff]
        %v2469 = vld [vmem:[#allocation2 + $0x4e0] sm:$0xff]
        %v2470 = vld [vmem:[#allocation2 + $0x4e8] sm:$0xff]
        %v2471 = vld [vmem:[#allocation2 + $0x4f0] sm:$0xff]
        %v2472 = vld [vmem:[#allocation2 + $0x4f8] sm:$0xff]
        %v2473 = vld [vmem:[#allocation2 + $0x500] sm:$0xff]
        %v2474 = vld [vmem:[#allocation2 + $0x508] sm:$0xff]
        %v2475 = vld [vmem:[#allocation2 + $0x510] sm:$0xff]
        %v2476 = vld [vmem:[#allocation2 + $0x518] sm:$0xff]
        %v2477 = vld [vmem:[#allocation2 + $0x520] sm:$0xff]
        %v2478 = vld [vmem:[#allocation2 + $0x528] sm:$0xff]
        %v2479 = vld [vmem:[#allocation2 + $0x530] sm:$0xff]
        %v2480 = vld [vmem:[#allocation2 + $0x538] sm:$0xff]
        %v2481 = vld [vmem:[#allocation2 + $0x540] sm:$0xff]
        %v2482 = vld [vmem:[#allocation2 + $0x548] sm:$0xff]
        %v2483 = vld [vmem:[#allocation2 + $0x550] sm:$0xff]
        %v2484 = vld [vmem:[#allocation2 + $0x558] sm:$0xff]
        %v2485 = vld [vmem:[#allocation2 + $0x560] sm:$0xff]
        %v2486 = vld [vmem:[#allocation2 + $0x568] sm:$0xff]
        %v2487 = vld [vmem:[#allocation2 + $0x570] sm:$0xff]
        %v2488 = vld [vmem:[#allocation2 + $0x578] sm:$0xff]
        %v2489 = vld [vmem:[#allocation2 + $0x580] sm:$0xff]
        %v2490 = vld [vmem:[#allocation2 + $0x588] sm:$0xff]
        %v2491 = vld [vmem:[#allocation2 + $0x590] sm:$0xff]
        %v2492 = vld [vmem:[#allocation2 + $0x598] sm:$0xff]
        %v2637 = vunpack.c.l.b16 %v275
        %v2638 = vunpack.c.h.b16 %v275
        %v2639 = vunpack.c.l.b16 %v276
        %v2640 = vunpack.c.h.b16 %v276
        %v2641 = vunpack.c.l.b16 %v277
        %v2642 = vunpack.c.h.b16 %v277
        %v2643 = vunpack.c.l.b16 %v278
        %v2644 = vunpack.c.h.b16 %v278
        %v2645 = vunpack.c.l.b16 %v279
        %v2646 = vunpack.c.h.b16 %v279
        %v2647 = vunpack.c.l.b16 %v280
        %v2648 = vunpack.c.h.b16 %v280
        %v2649 = vunpack.c.l.b16 %v281
        %v2650 = vunpack.c.h.b16 %v281
        %v2651 = vunpack.c.l.b16 %v282
        %v2652 = vunpack.c.h.b16 %v282
        %v2653 = vunpack.c.l.b16 %v283
        %v2654 = vunpack.c.h.b16 %v283
        %v2655 = vunpack.c.l.b16 %v284
        %v2656 = vunpack.c.h.b16 %v284
        %v2657 = vunpack.c.l.b16 %v285
        %v2658 = vunpack.c.h.b16 %v285
        %v2659 = vunpack.c.l.b16 %v286
        %v2660 = vunpack.c.h.b16 %v286
        %v2661 = vunpack.c.l.b16 %v287
        %v2662 = vunpack.c.h.b16 %v287
        %v2663 = vunpack.c.l.b16 %v288
        %v2664 = vunpack.c.h.b16 %v288
        %v2665 = vunpack.c.l.b16 %v289
        %v2666 = vunpack.c.h.b16 %v289
        %v2667 = vunpack.c.l.b16 %v290
        %v2668 = vunpack.c.h.b16 %v290
        %v2669 = vunpack.c.l.b16 %v291
        %v2670 = vunpack.c.h.b16 %v291
        %v2671 = vunpack.c.l.b16 %v292
        %v2672 = vunpack.c.h.b16 %v292
        %v2673 = vunpack.c.l.b16 %v293
        %v2674 = vunpack.c.h.b16 %v293
        %v2675 = vunpack.c.l.b16 %v294
        %v2676 = vunpack.c.h.b16 %v294
        %v2677 = vunpack.c.l.b16 %v295
        %v2678 = vunpack.c.h.b16 %v295
        %v2679 = vunpack.c.l.b16 %v296
        %v2680 = vunpack.c.h.b16 %v296
        %v2681 = vunpack.c.l.b16 %v297
        %v2682 = vunpack.c.h.b16 %v297
        %v2683 = vunpack.c.l.b16 %v298
        %v2684 = vunpack.c.h.b16 %v298
        %v2685 = vunpack.c.l.b16 %v299
        %v2686 = vunpack.c.h.b16 %v299
        %v2687 = vunpack.c.l.b16 %v300
        %v2688 = vunpack.c.h.b16 %v300
        %v2689 = vunpack.c.l.b16 %v301
        %v2690 = vunpack.c.h.b16 %v301
        %v2691 = vunpack.c.l.b16 %v302
        %v2692 = vunpack.c.h.b16 %v302
        %v2693 = vunpack.c.l.b16 %v303
        %v2694 = vunpack.c.h.b16 %v303
        %v2695 = vunpack.c.l.b16 %v304
        %v2696 = vunpack.c.h.b16 %v304
        %v2697 = vunpack.c.l.b16 %v305
        %v2698 = vunpack.c.h.b16 %v305
        %v2699 = vunpack.c.l.b16 %v306
        %v2700 = vunpack.c.h.b16 %v306
        %v2701 = vunpack.c.l.b16 %v307
        %v2702 = vunpack.c.h.b16 %v307
        %v2703 = vunpack.c.l.b16 %v308
        %v2704 = vunpack.c.h.b16 %v308
        %v2705 = vunpack.c.l.b16 %v309
        %v2706 = vunpack.c.h.b16 %v309
        %v2707 = vunpack.c.l.b16 %v310
        %v2708 = vunpack.c.h.b16 %v310
        %v2709 = vunpack.c.l.b16 %v311
        %v2710 = vunpack.c.h.b16 %v311
        %v2711 = vunpack.c.l.b16 %v312
        %v2712 = vunpack.c.h.b16 %v312
        %v2713 = vunpack.c.l.b16 %v313
        %v2714 = vunpack.c.h.b16 %v313
        %v2715 = vunpack.c.l.b16 %v314
        %v2716 = vunpack.c.h.b16 %v314
        %v2717 = vunpack.c.l.b16 %v315
        %v2718 = vunpack.c.h.b16 %v315
        %v2719 = vunpack.c.l.b16 %v316
        %v2720 = vunpack.c.h.b16 %v316
        %v2721 = vunpack.c.l.b16 %v317
        %v2722 = vunpack.c.h.b16 %v317
        %v2723 = vunpack.c.l.b16 %v318
        %v2724 = vunpack.c.h.b16 %v318
        %v2725 = vunpack.c.l.b16 %v319
        %v2726 = vunpack.c.h.b16 %v319
        %v2727 = vunpack.c.l.b16 %v320
        %v2728 = vunpack.c.h.b16 %v320
        %v2729 = vunpack.c.l.b16 %v321
        %v2730 = vunpack.c.h.b16 %v321
        %v2731 = vunpack.c.l.b16 %v322
        %v2732 = vunpack.c.h.b16 %v322
        %v2733 = vunpack.c.l.b16 %v323
        %v2734 = vunpack.c.h.b16 %v323
        %v2735 = vunpack.c.l.b16 %v324
        %v2736 = vunpack.c.h.b16 %v324
        %v2737 = vunpack.c.l.b16 %v325
        %v2738 = vunpack.c.h.b16 %v325
        %v2739 = vunpack.c.l.b16 %v326
        %v2740 = vunpack.c.h.b16 %v326
        %v2741 = vunpack.c.l.b16 %v327
        %v2742 = vunpack.c.h.b16 %v327
        %v2743 = vunpack.c.l.b16 %v328
        %v2744 = vunpack.c.h.b16 %v328
        %v2745 = vunpack.c.l.b16 %v329
        %v2746 = vunpack.c.h.b16 %v329
        %v2747 = vunpack.c.l.b16 %v330
        %v2748 = vunpack.c.h.b16 %v330
        %v2749 = vunpack.c.l.b16 %v331
        %v2750 = vunpack.c.h.b16 %v331
        %v2751 = vunpack.c.l.b16 %v332
        %v2752 = vunpack.c.h.b16 %v332
        %v2753 = vunpack.c.l.b16 %v333
        %v2754 = vunpack.c.h.b16 %v333
        %v2755 = vunpack.c.l.b16 %v334
        %v2756 = vunpack.c.h.b16 %v334
        %v2757 = vunpack.c.l.b16 %v335
        %v2758 = vunpack.c.h.b16 %v335
        %v2759 = vunpack.c.l.b16 %v336
        %v2760 = vunpack.c.h.b16 %v336
        %v2761 = vunpack.c.l.b16 %v337
        %v2762 = vunpack.c.h.b16 %v337
        %v2763 = vunpack.c.l.b16 %v338
        %v2764 = vunpack.c.h.b16 %v338
        %v2765 = vunpack.c.l.b16 %v339
        %v2766 = vunpack.c.h.b16 %v339
        %v2767 = vunpack.c.l.b16 %v340
        %v2768 = vunpack.c.h.b16 %v340
        %v2769 = vunpack.c.l.b16 %v341
        %v2770 = vunpack.c.h.b16 %v341
        %v2771 = vunpack.c.l.b16 %v342
        %v2772 = vunpack.c.h.b16 %v342
        %v2773 = vunpack.c.l.b16 %v343
        %v2774 = vunpack.c.h.b16 %v343
        %v2775 = vunpack.c.l.b16 %v344
        %v2776 = vunpack.c.h.b16 %v344
        %v2777 = vunpack.c.l.b16 %v345
        %v2778 = vunpack.c.h.b16 %v345
        %v2779 = vunpack.c.l.b16 %v346
        %v2780 = vunpack.c.h.b16 %v346
        %v2781 = vunpack.c.l.b16 %v347
        %v2782 = vunpack.c.h.b16 %v347
        %v2783 = vunpack.c.l.b16 %v348
        %v2784 = vunpack.c.h.b16 %v348
        %v2785 = vunpack.c.l.b16 %v349
        %v2786 = vunpack.c.h.b16 %v349
        %v2787 = vunpack.c.l.b16 %v350
        %v2788 = vunpack.c.h.b16 %v350
        %v2789 = vunpack.c.l.b16 %v351
        %v2790 = vunpack.c.h.b16 %v351
        %v2791 = vunpack.c.l.b16 %v352
        %v2792 = vunpack.c.h.b16 %v352
        %v2793 = vunpack.c.l.b16 %v353
        %v2794 = vunpack.c.h.b16 %v353
        %v2795 = vunpack.c.l.b16 %v354
        %v2796 = vunpack.c.h.b16 %v354
        %v2797 = vunpack.c.l.b16 %v355
        %v2798 = vunpack.c.h.b16 %v355
        %v2799 = vunpack.c.l.b16 %v356
        %v2800 = vunpack.c.h.b16 %v356
        %v2801 = vunpack.c.l.b16 %v357
        %v2802 = vunpack.c.h.b16 %v357
        %v2803 = vunpack.c.l.b16 %v358
        %v2804 = vunpack.c.h.b16 %v358
        %v2805 = vunpack.c.l.b16 %v359
        %v2806 = vunpack.c.h.b16 %v359
        %v2807 = vunpack.c.l.b16 %v360
        %v2808 = vunpack.c.h.b16 %v360
        %v2809 = vunpack.c.l.b16 %v361
        %v2810 = vunpack.c.h.b16 %v361
        %v2811 = vunpack.c.l.b16 %v362
        %v2812 = vunpack.c.h.b16 %v362
        %v2813 = vunpack.c.l.b16 %v363
        %v2814 = vunpack.c.h.b16 %v363
        %v2815 = vunpack.c.l.b16 %v364
        %v2816 = vunpack.c.h.b16 %v364
        %v2817 = vunpack.c.l.b16 %v365
        %v2818 = vunpack.c.h.b16 %v365
        %v2819 = vunpack.c.l.b16 %v366
        %v2820 = vunpack.c.h.b16 %v366
        %v2821 = vunpack.c.l.b16 %v367
        %v2822 = vunpack.c.h.b16 %v367
        %v2823 = vunpack.c.l.b16 %v368
        %v2824 = vunpack.c.h.b16 %v368
        %v2825 = vunpack.c.l.b16 %v369
        %v2826 = vunpack.c.h.b16 %v369
        %v2827 = vunpack.c.l.b16 %v370
        %v2828 = vunpack.c.h.b16 %v370
        %v2829 = vunpack.c.l.b16 %v371
        %v2830 = vunpack.c.h.b16 %v371
        %v2831 = vunpack.c.l.b16 %v372
        %v2832 = vunpack.c.h.b16 %v372
        %v2833 = vunpack.c.l.b16 %v373
        %v2834 = vunpack.c.h.b16 %v373
        %v2835 = vunpack.c.l.b16 %v374
        %v2836 = vunpack.c.h.b16 %v374
        %v2837 = vunpack.c.l.b16 %v375
        %v2838 = vunpack.c.h.b16 %v375
        %v2839 = vunpack.c.l.b16 %v376
        %v2840 = vunpack.c.h.b16 %v376
        %v2841 = vunpack.c.l.b16 %v377
        %v2842 = vunpack.c.h.b16 %v377
        %v2843 = vunpack.c.l.b16 %v378
        %v2844 = vunpack.c.h.b16 %v378
        %v2845 = vunpack.c.l.b16 %v379
        %v2846 = vunpack.c.h.b16 %v379
        %v2847 = vunpack.c.l.b16 %v380
        %v2848 = vunpack.c.h.b16 %v380
        %v2849 = vunpack.c.l.b16 %v381
        %v2850 = vunpack.c.h.b16 %v381
        %v2851 = vunpack.c.l.b16 %v382
        %v2852 = vunpack.c.h.b16 %v382
        %v2853 = vunpack.c.l.b16 %v383
        %v2854 = vunpack.c.h.b16 %v383
        %v2855 = vunpack.c.l.b16 %v384
        %v2856 = vunpack.c.h.b16 %v384
        %v2857 = vunpack.c.l.b16 %v385
        %v2858 = vunpack.c.h.b16 %v385
        %v2859 = vunpack.c.l.b16 %v386
        %v2860 = vunpack.c.h.b16 %v386
        %v2861 = vunpack.c.l.b16 %v387
        %v2862 = vunpack.c.h.b16 %v387
        %v2863 = vunpack.c.l.b16 %v388
        %v2864 = vunpack.c.h.b16 %v388
        %v2865 = vunpack.c.l.b16 %v389
        %v2866 = vunpack.c.h.b16 %v389
        %v2867 = vunpack.c.l.b16 %v390
        %v2868 = vunpack.c.h.b16 %v390
        %v2869 = vunpack.c.l.b16 %v391
        %v2870 = vunpack.c.h.b16 %v391
        %v2871 = vunpack.c.l.b16 %v392
        %v2872 = vunpack.c.h.b16 %v392
        %v2873 = vunpack.c.l.b16 %v393
        %v2874 = vunpack.c.h.b16 %v393
        %v2875 = vunpack.c.l.b16 %v394
        %v2876 = vunpack.c.h.b16 %v394
        %v2877 = vunpack.c.l.b16 %v395
        %v2878 = vunpack.c.h.b16 %v395
        %v2879 = vunpack.c.l.b16 %v396
        %v2880 = vunpack.c.h.b16 %v396
        %v2881 = vunpack.c.l.b16 %v397
        %v2882 = vunpack.c.h.b16 %v397
        %v2883 = vunpack.c.l.b16 %v398
        %v2884 = vunpack.c.h.b16 %v398
        %v2885 = vunpack.c.l.b16 %v399
        %v2886 = vunpack.c.h.b16 %v399
        %v2887 = vunpack.c.l.b16 %v400
        %v2888 = vunpack.c.h.b16 %v400
        %v2889 = vunpack.c.l.b16 %v401
        %v2890 = vunpack.c.h.b16 %v401
        %v2891 = vunpack.c.l.b16 %v402
        %v2892 = vunpack.c.h.b16 %v402
        %v2893 = vunpack.c.l.b16 %v403
        %v2894 = vunpack.c.h.b16 %v403
        %v2895 = vunpack.c.l.b16 %v404
        %v2896 = vunpack.c.h.b16 %v404
        %v2897 = vunpack.c.l.b16 %v405
        %v2898 = vunpack.c.h.b16 %v405
        %v2899 = vunpack.c.l.b16 %v406
        %v2900 = vunpack.c.h.b16 %v406
        %v2901 = vunpack.c.l.b16 %v407
        %v2902 = vunpack.c.h.b16 %v407
        %v2903 = vunpack.c.l.b16 %v408
        %v2904 = vunpack.c.h.b16 %v408
        %v2905 = vunpack.c.l.b16 %v409
        %v2906 = vunpack.c.h.b16 %v409
        %v2907 = vunpack.c.l.b16 %v410
        %v2908 = vunpack.c.h.b16 %v410
        %v2909 = vunpack.c.l.b16 %v411
        %v2910 = vunpack.c.h.b16 %v411
        %v2911 = vunpack.c.l.b16 %v412
        %v2912 = vunpack.c.h.b16 %v412
        %v2913 = vunpack.c.l.b16 %v413
        %v2914 = vunpack.c.h.b16 %v413
        %v2915 = vunpack.c.l.b16 %v414
        %v2916 = vunpack.c.h.b16 %v414
        %v2917 = vunpack.c.l.b16 %v415
        %v2918 = vunpack.c.h.b16 %v415
        %v2919 = vunpack.c.l.b16 %v416
        %v2920 = vunpack.c.h.b16 %v416
        %v2921 = vunpack.c.l.b16 %v417
        %v2922 = vunpack.c.h.b16 %v417
        %v2923 = vunpack.c.l.b16 %v418
        %v2924 = vunpack.c.h.b16 %v418
        %v2925 = vpack.c.b16 %v2639, %v2637
        %v2926 = vpack.c.b16 %v2640, %v2638
        %v2927 = vpack.c.b16 %v2643, %v2641
        %v2928 = vpack.c.b16 %v2644, %v2642
        %v2929 = vpack.c.b16 %v2647, %v2645
        %v2930 = vpack.c.b16 %v2648, %v2646
        %v2931 = vpack.c.b16 %v2651, %v2649
        %v2932 = vpack.c.b16 %v2652, %v2650
        %v2933 = vpack.c.b16 %v2655, %v2653
        %v2934 = vpack.c.b16 %v2656, %v2654
        %v2935 = vpack.c.b16 %v2659, %v2657
        %v2936 = vpack.c.b16 %v2660, %v2658
        %v2937 = vpack.c.b16 %v2663, %v2661
        %v2938 = vpack.c.b16 %v2664, %v2662
        %v2939 = vpack.c.b16 %v2667, %v2665
        %v2940 = vpack.c.b16 %v2668, %v2666
        %v2941 = vpack.c.b16 %v2671, %v2669
        %v2942 = vpack.c.b16 %v2672, %v2670
        %v2943 = vpack.c.b16 %v2675, %v2673
        %v2944 = vpack.c.b16 %v2676, %v2674
        %v2945 = vpack.c.b16 %v2679, %v2677
        %v2946 = vpack.c.b16 %v2680, %v2678
        %v2947 = vpack.c.b16 %v2683, %v2681
        %v2948 = vpack.c.b16 %v2684, %v2682
        %v2949 = vpack.c.b16 %v2687, %v2685
        %v2950 = vpack.c.b16 %v2688, %v2686
        %v2951 = vpack.c.b16 %v2691, %v2689
        %v2952 = vpack.c.b16 %v2692, %v2690
        %v2953 = vpack.c.b16 %v2695, %v2693
        %v2954 = vpack.c.b16 %v2696, %v2694
        %v2955 = vpack.c.b16 %v2699, %v2697
        %v2956 = vpack.c.b16 %v2700, %v2698
        %v2957 = vpack.c.b16 %v2703, %v2701
        %v2958 = vpack.c.b16 %v2704, %v2702
        %v2959 = vpack.c.b16 %v2707, %v2705
        %v2960 = vpack.c.b16 %v2708, %v2706
        %v2961 = vpack.c.b16 %v2711, %v2709
        %v2962 = vpack.c.b16 %v2712, %v2710
        %v2963 = vpack.c.b16 %v2715, %v2713
        %v2964 = vpack.c.b16 %v2716, %v2714
        %v2965 = vpack.c.b16 %v2719, %v2717
        %v2966 = vpack.c.b16 %v2720, %v2718
        %v2967 = vpack.c.b16 %v2723, %v2721
        %v2968 = vpack.c.b16 %v2724, %v2722
        %v2969 = vpack.c.b16 %v2727, %v2725
        %v2970 = vpack.c.b16 %v2728, %v2726
        %v2971 = vpack.c.b16 %v2731, %v2729
        %v2972 = vpack.c.b16 %v2732, %v2730
        %v2973 = vpack.c.b16 %v2735, %v2733
        %v2974 = vpack.c.b16 %v2736, %v2734
        %v2975 = vpack.c.b16 %v2739, %v2737
        %v2976 = vpack.c.b16 %v2740, %v2738
        %v2977 = vpack.c.b16 %v2743, %v2741
        %v2978 = vpack.c.b16 %v2744, %v2742
        %v2979 = vpack.c.b16 %v2747, %v2745
        %v2980 = vpack.c.b16 %v2748, %v2746
        %v2981 = vpack.c.b16 %v2751, %v2749
        %v2982 = vpack.c.b16 %v2752, %v2750
        %v2983 = vpack.c.b16 %v2755, %v2753
        %v2984 = vpack.c.b16 %v2756, %v2754
        %v2985 = vpack.c.b16 %v2759, %v2757
        %v2986 = vpack.c.b16 %v2760, %v2758
        %v2987 = vpack.c.b16 %v2763, %v2761
        %v2988 = vpack.c.b16 %v2764, %v2762
        %v2989 = vpack.c.b16 %v2767, %v2765
        %v2990 = vpack.c.b16 %v2768, %v2766
        %v2991 = vpack.c.b16 %v2771, %v2769
        %v2992 = vpack.c.b16 %v2772, %v2770
        %v2993 = vpack.c.b16 %v2775, %v2773
        %v2994 = vpack.c.b16 %v2776, %v2774
        %v2995 = vpack.c.b16 %v2779, %v2777
        %v2996 = vpack.c.b16 %v2780, %v2778
        %v2997 = vpack.c.b16 %v2783, %v2781
        %v2998 = vpack.c.b16 %v2784, %v2782
        %v2999 = vpack.c.b16 %v2787, %v2785
        %v3000 = vpack.c.b16 %v2788, %v2786
        %v3001 = vpack.c.b16 %v2791, %v2789
        %v3002 = vpack.c.b16 %v2792, %v2790
        %v3003 = vpack.c.b16 %v2795, %v2793
        %v3004 = vpack.c.b16 %v2796, %v2794
        %v3005 = vpack.c.b16 %v2799, %v2797
        %v3006 = vpack.c.b16 %v2800, %v2798
        %v3007 = vpack.c.b16 %v2803, %v2801
        %v3008 = vpack.c.b16 %v2804, %v2802
        %v3009 = vpack.c.b16 %v2807, %v2805
        %v3010 = vpack.c.b16 %v2808, %v2806
        %v3011 = vpack.c.b16 %v2811, %v2809
        %v3012 = vpack.c.b16 %v2812, %v2810
        %v3013 = vpack.c.b16 %v2815, %v2813
        %v3014 = vpack.c.b16 %v2816, %v2814
        %v3015 = vpack.c.b16 %v2819, %v2817
        %v3016 = vpack.c.b16 %v2820, %v2818
        %v3017 = vpack.c.b16 %v2823, %v2821
        %v3018 = vpack.c.b16 %v2824, %v2822
        %v3019 = vpack.c.b16 %v2827, %v2825
        %v3020 = vpack.c.b16 %v2828, %v2826
        %v3021 = vpack.c.b16 %v2831, %v2829
        %v3022 = vpack.c.b16 %v2832, %v2830
        %v3023 = vpack.c.b16 %v2835, %v2833
        %v3024 = vpack.c.b16 %v2836, %v2834
        %v3025 = vpack.c.b16 %v2839, %v2837
        %v3026 = vpack.c.b16 %v2840, %v2838
        %v3027 = vpack.c.b16 %v2843, %v2841
        %v3028 = vpack.c.b16 %v2844, %v2842
        %v3029 = vpack.c.b16 %v2847, %v2845
        %v3030 = vpack.c.b16 %v2848, %v2846
        %v3031 = vpack.c.b16 %v2851, %v2849
        %v3032 = vpack.c.b16 %v2852, %v2850
        %v3033 = vpack.c.b16 %v2855, %v2853
        %v3034 = vpack.c.b16 %v2856, %v2854
        %v3035 = vpack.c.b16 %v2859, %v2857
        %v3036 = vpack.c.b16 %v2860, %v2858
        %v3037 = vpack.c.b16 %v2863, %v2861
        %v3038 = vpack.c.b16 %v2864, %v2862
        %v3039 = vpack.c.b16 %v2867, %v2865
        %v3040 = vpack.c.b16 %v2868, %v2866
        %v3041 = vpack.c.b16 %v2871, %v2869
        %v3042 = vpack.c.b16 %v2872, %v2870
        %v3043 = vpack.c.b16 %v2875, %v2873
        %v3044 = vpack.c.b16 %v2876, %v2874
        %v3045 = vpack.c.b16 %v2879, %v2877
        %v3046 = vpack.c.b16 %v2880, %v2878
        %v3047 = vpack.c.b16 %v2883, %v2881
        %v3048 = vpack.c.b16 %v2884, %v2882
        %v3049 = vpack.c.b16 %v2887, %v2885
        %v3050 = vpack.c.b16 %v2888, %v2886
        %v3051 = vpack.c.b16 %v2891, %v2889
        %v3052 = vpack.c.b16 %v2892, %v2890
        %v3053 = vpack.c.b16 %v2895, %v2893
        %v3054 = vpack.c.b16 %v2896, %v2894
        %v3055 = vpack.c.b16 %v2899, %v2897
        %v3056 = vpack.c.b16 %v2900, %v2898
        %v3057 = vpack.c.b16 %v2903, %v2901
        %v3058 = vpack.c.b16 %v2904, %v2902
        %v3059 = vpack.c.b16 %v2907, %v2905
        %v3060 = vpack.c.b16 %v2908, %v2906
        %v3061 = vpack.c.b16 %v2911, %v2909
        %v3062 = vpack.c.b16 %v2912, %v2910
        %v3063 = vpack.c.b16 %v2915, %v2913
        %v3064 = vpack.c.b16 %v2916, %v2914
        %v3065 = vpack.c.b16 %v2919, %v2917
        %v3066 = vpack.c.b16 %v2920, %v2918
        %v3067 = vpack.c.b16 %v2923, %v2921
        %v3068 = vpack.c.b16 %v2924, %v2922
        %3213 = vmatprep.subr.bf16.mxu0 %v2926
        %3214 = vmatpush1.bf16.msra.mxu0 %v2925
        %3215 = vmatprep.subr.bf16.mxu0 %v2928
        %3216 = vmatpush1.bf16.msra.mxu0 %v2927
        %3217 = vmatprep.subr.bf16.mxu0 %v2930
        %3218 = vmatpush1.bf16.msra.mxu0 %v2929
        %3219 = vmatprep.subr.bf16.mxu0 %v2932
        %3220 = vmatpush1.bf16.msra.mxu0 %v2931
        %3221 = vmatprep.subr.bf16.mxu0 %v2934
        %3222 = vmatpush1.bf16.msra.mxu0 %v2933
        %3223 = vmatprep.subr.bf16.mxu0 %v2936
        %3224 = vmatpush1.bf16.msra.mxu0 %v2935
        %3225 = vmatprep.subr.bf16.mxu0 %v2938
        %3226 = vmatpush1.bf16.msra.mxu0 %v2937
        %3227 = vmatprep.subr.bf16.mxu0 %v2940
        %3228 = vmatpush1.bf16.msra.mxu0 %v2939
        %3229 = vmatprep.subr.bf16.mxu0 %v2942
        %3230 = vmatpush1.bf16.msra.mxu0 %v2941
        %3231 = vmatprep.subr.bf16.mxu0 %v2944
        %3232 = vmatpush1.bf16.msra.mxu0 %v2943
        %3233 = vmatprep.subr.bf16.mxu0 %v2946
        %3234 = vmatpush1.bf16.msra.mxu0 %v2945
        %3235 = vmatprep.subr.bf16.mxu0 %v2948
        %3236 = vmatpush1.bf16.msra.mxu0 %v2947
        %3237 = vmatprep.subr.bf16.mxu0 %v2950
        %3238 = vmatpush1.bf16.msra.mxu0 %v2949
        %3239 = vmatprep.subr.bf16.mxu0 %v2952
        %3240 = vmatpush1.bf16.msra.mxu0 %v2951
        %3241 = vmatprep.subr.bf16.mxu0 %v2954
        %3242 = vmatpush1.bf16.msra.mxu0 %v2953
        %3243 = vmatprep.subr.bf16.mxu0 %v2956
        %3244 = vmatpush1.bf16.msra.mxu0 %v2955
        %3245 = vmatprep.mubr.bf16.mxu0 %v2314
        %3246 = vmatmul.mubr.bf16.gmra.mrb[0].mxu0 %v2313
        %v3247 = vpop.f32.mrb[0].mxu0
        %v3248 = vadd.f32 0.0, %v3247
        %v3249 = vpop.f32.mrb[0].mxu0
        %v3250 = vadd.f32 0.0, %v3249
        %v3251 = vpop.f32.mrb[0].mxu0
        %v3252 = vadd.f32 0.0, %v3251
        %v3253 = vpop.f32.mrb[0].mxu0
        %v3254 = vadd.f32 0.0, %v3253
        %3255 = vmatprep.mubr.bf16.mxu0 %v2323
        %3256 = vmatmul.mubr.bf16.gmra.mrb[0].mxu0 %v2322
        %v3257 = vpop.f32.mrb[0].mxu0
        %v3258 = vadd.f32 0.0, %v3257
        %v3259 = vpop.f32.mrb[0].mxu0
        %v3260 = vadd.f32 0.0, %v3259
        %v3261 = vpop.f32.mrb[0].mxu0
        %v3262 = vadd.f32 0.0, %v3261
        %v3263 = vpop.f32.mrb[0].mxu0
        %v3264 = vadd.f32 0.0, %v3263
        %3265 = vmatprep.mubr.bf16.mxu0 %v2332
        %3266 = vmatmul.mubr.bf16.gmra.mrb[0].mxu0 %v2331
        %v3267 = vpop.f32.mrb[0].mxu0
        %v3268 = vadd.f32 0.0, %v3267
        %v3269 = vpop.f32.mrb[0].mxu0
        %v3270 = vadd.f32 0.0, %v3269
        %v3271 = vpop.f32.mrb[0].mxu0
        %v3272 = vadd.f32 0.0, %v3271
        %v3273 = vpop.f32.mrb[0].mxu0
        %v3274 = vadd.f32 0.0, %v3273
        %3275 = vmatprep.mubr.bf16.mxu0 %v2341
        %3276 = vmatmul.mubr.bf16.gmra.mrb[0].mxu0 %v2340
        %v3277 = vpop.f32.mrb[0].mxu0
        %v3278 = vadd.f32 0.0, %v3277
        %v3279 = vpop.f32.mrb[0].mxu0
        %v3280 = vadd.f32 0.0, %v3279
        %v3281 = vpop.f32.mrb[0].mxu0
        %v3282 = vadd.f32 0.0, %v3281
        %v3283 = vpop.f32.mrb[0].mxu0
        %v3284 = vadd.f32 0.0, %v3283
        %3285 = vmatprep.mubr.bf16.mxu0 %v2350
        %3286 = vmatmul.mubr.bf16.gmra.mrb[0].mxu0 %v2349
        %v3287 = vpop.f32.mrb[0].mxu0
        %v3288 = vadd.f32 0.0, %v3287
        %v3289 = vpop.f32.mrb[0].mxu0
        %v3290 = vadd.f32 0.0, %v3289
        %v3291 = vpop.f32.mrb[0].mxu0
        %v3292 = vadd.f32 0.0, %v3291
        %v3293 = vpop.f32.mrb[0].mxu0
        %v3294 = vadd.f32 0.0, %v3293
        %3295 = vmatprep.mubr.bf16.mxu0 %v2359
        %3296 = vmatmul.mubr.bf16.gmra.mrb[0].mxu0 %v2358
        %v3297 = vpop.f32.mrb[0].mxu0
        %v3298 = vadd.f32 0.0, %v3297
        %v3299 = vpop.f32.mrb[0].mxu0
        %v3300 = vadd.f32 0.0, %v3299
        %v3301 = vpop.f32.mrb[0].mxu0
        %v3302 = vadd.f32 0.0, %v3301
        %v3303 = vpop.f32.mrb[0].mxu0
        %v3304 = vadd.f32 0.0, %v3303
        %3305 = vmatprep.mubr.bf16.mxu0 %v2368
        %3306 = vmatmul.mubr.bf16.gmra.mrb[0].mxu0 %v2367
        %v3307 = vpop.f32.mrb[0].mxu0
        %v3308 = vadd.f32 0.0, %v3307
        %v3309 = vpop.f32.mrb[0].mxu0
        %v3310 = vadd.f32 0.0, %v3309
        %v3311 = vpop.f32.mrb[0].mxu0
        %v3312 = vadd.f32 0.0, %v3311
        %v3313 = vpop.f32.mrb[0].mxu0
        %v3314 = vadd.f32 0.0, %v3313
        %3315 = vmatprep.mubr.bf16.mxu0 %v2377
        %3316 = vmatmul.mubr.bf16.gmra.mrb[0].mxu0 %v2376
        %v3317 = vpop.f32.mrb[0].mxu0
        %v3318 = vadd.f32 0.0, %v3317
        %v3319 = vpop.f32.mrb[0].mxu0
        %v3320 = vadd.f32 0.0, %v3319
        %v3321 = vpop.f32.mrb[0].mxu0
        %v3322 = vadd.f32 0.0, %v3321
        %v3323 = vpop.f32.mrb[0].mxu0
        %v3324 = vadd.f32 0.0, %v3323
        %3325 = vmatprep.mubr.bf16.mxu0 %v2386
        %3326 = vmatmul.mubr.bf16.gmra.mrb[0].mxu0 %v2385
        %v3327 = vpop.f32.mrb[0].mxu0
        %v3328 = vadd.f32 0.0, %v3327
        %v3329 = vpop.f32.mrb[0].mxu0
        %v3330 = vadd.f32 0.0, %v3329
        %v3331 = vpop.f32.mrb[0].mxu0
        %v3332 = vadd.f32 0.0, %v3331
        %v3333 = vpop.f32.mrb[0].mxu0
        %v3334 = vadd.f32 0.0, %v3333
        %3335 = vmatprep.mubr.bf16.mxu0 %v2395
        %3336 = vmatmul.mubr.bf16.gmra.mrb[0].mxu0 %v2394
        %v3337 = vpop.f32.mrb[0].mxu0
        %v3338 = vadd.f32 0.0, %v3337
        %v3339 = vpop.f32.mrb[0].mxu0
        %v3340 = vadd.f32 0.0, %v3339
        %v3341 = vpop.f32.mrb[0].mxu0
        %v3342 = vadd.f32 0.0, %v3341
        %v3343 = vpop.f32.mrb[0].mxu0
        %v3344 = vadd.f32 0.0, %v3343
        %3345 = vmatprep.mubr.bf16.mxu0 %v2404
        %3346 = vmatmul.mubr.bf16.gmra.mrb[0].mxu0 %v2403
        %v3347 = vpop.f32.mrb[0].mxu0
        %v3348 = vadd.f32 0.0, %v3347
        %v3349 = vpop.f32.mrb[0].mxu0
        %v3350 = vadd.f32 0.0, %v3349
        %v3351 = vpop.f32.mrb[0].mxu0
        %v3352 = vadd.f32 0.0, %v3351
        %v3353 = vpop.f32.mrb[0].mxu0
        %v3354 = vadd.f32 0.0, %v3353
        %3355 = vmatprep.mubr.bf16.mxu0 %v2413
        %3356 = vmatmul.mubr.bf16.gmra.mrb[0].mxu0 %v2412
        %v3357 = vpop.f32.mrb[0].mxu0
        %v3358 = vadd.f32 0.0, %v3357
        %v3359 = vpop.f32.mrb[0].mxu0
        %v3360 = vadd.f32 0.0, %v3359
        %v3361 = vpop.f32.mrb[0].mxu0
        %v3362 = vadd.f32 0.0, %v3361
        %v3363 = vpop.f32.mrb[0].mxu0
        %v3364 = vadd.f32 0.0, %v3363
        %3365 = vmatprep.mubr.bf16.mxu0 %v2422
        %3366 = vmatmul.mubr.bf16.gmra.mrb[0].mxu0 %v2421
        %v3367 = vpop.f32.mrb[0].mxu0
        %v3368 = vadd.f32 0.0, %v3367
        %v3369 = vpop.f32.mrb[0].mxu0
        %v3370 = vadd.f32 0.0, %v3369
        %v3371 = vpop.f32.mrb[0].mxu0
        %v3372 = vadd.f32 0.0, %v3371
        %v3373 = vpop.f32.mrb[0].mxu0
        %v3374 = vadd.f32 0.0, %v3373
        %3375 = vmatprep.mubr.bf16.mxu0 %v2431
        %3376 = vmatmul.mubr.bf16.gmra.mrb[0].mxu0 %v2430
        %v3377 = vpop.f32.mrb[0].mxu0
        %v3378 = vadd.f32 0.0, %v3377
        %v3379 = vpop.f32.mrb[0].mxu0
        %v3380 = vadd.f32 0.0, %v3379
        %v3381 = vpop.f32.mrb[0].mxu0
        %v3382 = vadd.f32 0.0, %v3381
        %v3383 = vpop.f32.mrb[0].mxu0
        %v3384 = vadd.f32 0.0, %v3383
        %3385 = vmatprep.mubr.bf16.mxu0 %v2440
        %3386 = vmatmul.mubr.bf16.gmra.mrb[0].mxu0 %v2439
        %v3387 = vpop.f32.mrb[0].mxu0
        %v3388 = vadd.f32 0.0, %v3387
        %v3389 = vpop.f32.mrb[0].mxu0
        %v3390 = vadd.f32 0.0, %v3389
        %v3391 = vpop.f32.mrb[0].mxu0
        %v3392 = vadd.f32 0.0, %v3391
        %v3393 = vpop.f32.mrb[0].mxu0
        %v3394 = vadd.f32 0.0, %v3393
        %3395 = vmatprep.mubr.bf16.mxu0 %v2449
        %3396 = vmatmul.mubr.bf16.gmra.mrb[0].mxu0 %v2448
        %v3397 = vpop.f32.mrb[0].mxu0
        %v3398 = vadd.f32 0.0, %v3397
        %v3399 = vpop.f32.mrb[0].mxu0
        %v3400 = vadd.f32 0.0, %v3399
        %v3401 = vpop.f32.mrb[0].mxu0
        %v3402 = vadd.f32 0.0, %v3401
        %v3403 = vpop.f32.mrb[0].mxu0
        %v3404 = vadd.f32 0.0, %v3403
        %3405 = vmatprep.mubr.bf16.mxu0 %v2458
        %3406 = vmatmul.mubr.bf16.gmra.mrb[0].mxu0 %v2457
        %v3407 = vpop.f32.mrb[0].mxu0
        %v3408 = vadd.f32 0.0, %v3407
        %v3409 = vpop.f32.mrb[0].mxu0
        %v3410 = vadd.f32 0.0, %v3409
        %v3411 = vpop.f32.mrb[0].mxu0
        %v3412 = vadd.f32 0.0, %v3411
        %v3413 = vpop.f32.mrb[0].mxu0
        %v3414 = vadd.f32 0.0, %v3413
        %3415 = vmatprep.mubr.bf16.mxu0 %v2467
        %3416 = vmatmul.mubr.bf16.gmra.mrb[0].mxu0 %v2466
        %v3417 = vpop.f32.mrb[0].mxu0
        %v3418 = vadd.f32 0.0, %v3417
        %v3419 = vpop.f32.mrb[0].mxu0
        %v3420 = vadd.f32 0.0, %v3419
        %v3421 = vpop.f32.mrb[0].mxu0
        %v3422 = vadd.f32 0.0, %v3421
        %v3423 = vpop.f32.mrb[0].mxu0
        %v3424 = vadd.f32 0.0, %v3423
        %3425 = vmatprep.mubr.bf16.mxu0 %v2476
        %3426 = vmatmul.mubr.bf16.gmra.mrb[0].mxu0 %v2475
        %v3427 = vpop.f32.mrb[0].mxu0
        %v3428 = vadd.f32 0.0, %v3427
        %v3429 = vpop.f32.mrb[0].mxu0
        %v3430 = vadd.f32 0.0, %v3429
        %v3431 = vpop.f32.mrb[0].mxu0
        %v3432 = vadd.f32 0.0, %v3431
        %v3433 = vpop.f32.mrb[0].mxu0
        %v3434 = vadd.f32 0.0, %v3433
        %3435 = vmatprep.mubr.bf16.mxu0 %v2485
        %3436 = vmatmul.mubr.bf16.gmra.mrb[0].mxu0 %v2484
        %v3437 = vpop.f32.mrb[0].mxu0
        %v3438 = vadd.f32 0.0, %v3437
        %v3439 = vpop.f32.mrb[0].mxu0
        %v3440 = vadd.f32 0.0, %v3439
        %v3441 = vpop.f32.mrb[0].mxu0
        %v3442 = vadd.f32 0.0, %v3441
        %v3443 = vpop.f32.mrb[0].mxu0
        %v3444 = vadd.f32 0.0, %v3443
        %3445 = vdwg.mxu0
        %3446 = vmatprep.subr.bf16.mxu0 %v2958
        %3447 = vmatpush1.bf16.msra.mxu0 %v2957
        %3448 = vmatprep.subr.bf16.mxu0 %v2960
        %3449 = vmatpush1.bf16.msra.mxu0 %v2959
        %3450 = vmatprep.subr.bf16.mxu0 %v2962
        %3451 = vmatpush1.bf16.msra.mxu0 %v2961
        %3452 = vmatprep.subr.bf16.mxu0 %v2964
        %3453 = vmatpush1.bf16.msra.mxu0 %v2963
        %3454 = vmatprep.subr.bf16.mxu0 %v2966
        %3455 = vmatpush1.bf16.msra.mxu0 %v2965
        %3456 = vmatprep.subr.bf16.mxu0 %v2968
        %3457 = vmatpush1.bf16.msra.mxu0 %v2967
        %3458 = vmatprep.subr.bf16.mxu0 %v2970
        %3459 = vmatpush1.bf16.msra.mxu0 %v2969
        %3460 = vmatprep.subr.bf16.mxu0 %v2972
        %3461 = vmatpush1.bf16.msra.mxu0 %v2971
        %3462 = vmatprep.subr.bf16.mxu0 %v2974
        %3463 = vmatpush1.bf16.msra.mxu0 %v2973
        %3464 = vmatprep.subr.bf16.mxu0 %v2976
        %3465 = vmatpush1.bf16.msra.mxu0 %v2975
        %3466 = vmatprep.subr.bf16.mxu0 %v2978
        %3467 = vmatpush1.bf16.msra.mxu0 %v2977
        %3468 = vmatprep.subr.bf16.mxu0 %v2980
        %3469 = vmatpush1.bf16.msra.mxu0 %v2979
        %3470 = vmatprep.subr.bf16.mxu0 %v2982
        %3471 = vmatpush1.bf16.msra.mxu0 %v2981
        %3472 = vmatprep.subr.bf16.mxu0 %v2984
        %3473 = vmatpush1.bf16.msra.mxu0 %v2983
        %3474 = vmatprep.subr.bf16.mxu0 %v2986
        %3475 = vmatpush1.bf16.msra.mxu0 %v2985
        %3476 = vmatprep.subr.bf16.mxu0 %v2988
        %3477 = vmatpush1.bf16.msra.mxu0 %v2987
        %3478 = vmatprep.mubr.bf16.mxu0 %v2316
        %3479 = vmatmul.mubr.bf16.gmra.mrb[0].mxu0 %v2315
        %v3480 = vpop.f32.mrb[0].mxu0
        %v3481 = vadd.f32 %v3248, %v3480
        %v3482 = vpop.f32.mrb[0].mxu0
        %v3483 = vadd.f32 %v3250, %v3482
        %v3484 = vpop.f32.mrb[0].mxu0
        %v3485 = vadd.f32 %v3252, %v3484
        %v3486 = vpop.f32.mrb[0].mxu0
        %v3487 = vadd.f32 %v3254, %v3486
        %3488 = vmatprep.mubr.bf16.mxu0 %v2325
        %3489 = vmatmul.mubr.bf16.gmra.mrb[0].mxu0 %v2324
        %v3490 = vpop.f32.mrb[0].mxu0
        %v3491 = vadd.f32 %v3258, %v3490
        %v3492 = vpop.f32.mrb[0].mxu0
        %v3493 = vadd.f32 %v3260, %v3492
        %v3494 = vpop.f32.mrb[0].mxu0
        %v3495 = vadd.f32 %v3262, %v3494
        %v3496 = vpop.f32.mrb[0].mxu0
        %v3497 = vadd.f32 %v3264, %v3496
        %3498 = vmatprep.mubr.bf16.mxu0 %v2334
        %3499 = vmatmul.mubr.bf16.gmra.mrb[0].mxu0 %v2333
        %v3500 = vpop.f32.mrb[0].mxu0
        %v3501 = vadd.f32 %v3268, %v3500
        %v3502 = vpop.f32.mrb[0].mxu0
        %v3503 = vadd.f32 %v3270, %v3502
        %v3504 = vpop.f32.mrb[0].mxu0
        %v3505 = vadd.f32 %v3272, %v3504
        %v3506 = vpop.f32.mrb[0].mxu0
        %v3507 = vadd.f32 %v3274, %v3506
        %3508 = vmatprep.mubr.bf16.mxu0 %v2343
        %3509 = vmatmul.mubr.bf16.gmra.mrb[0].mxu0 %v2342
        %v3510 = vpop.f32.mrb[0].mxu0
        %v3511 = vadd.f32 %v3278, %v3510
        %v3512 = vpop.f32.mrb[0].mxu0
        %v3513 = vadd.f32 %v3280, %v3512
        %v3514 = vpop.f32.mrb[0].mxu0
        %v3515 = vadd.f32 %v3282, %v3514
        %v3516 = vpop.f32.mrb[0].mxu0
        %v3517 = vadd.f32 %v3284, %v3516
        %3518 = vmatprep.mubr.bf16.mxu0 %v2352
        %3519 = vmatmul.mubr.bf16.gmra.mrb[0].mxu0 %v2351
        %v3520 = vpop.f32.mrb[0].mxu0
        %v3521 = vadd.f32 %v3288, %v3520
        %v3522 = vpop.f32.mrb[0].mxu0
        %v3523 = vadd.f32 %v3290, %v3522
        %v3524 = vpop.f32.mrb[0].mxu0
        %v3525 = vadd.f32 %v3292, %v3524
        %v3526 = vpop.f32.mrb[0].mxu0
        %v3527 = vadd.f32 %v3294, %v3526
        %3528 = vmatprep.mubr.bf16.mxu0 %v2361
        %3529 = vmatmul.mubr.bf16.gmra.mrb[0].mxu0 %v2360
        %v3530 = vpop.f32.mrb[0].mxu0
        %v3531 = vadd.f32 %v3298, %v3530
        %v3532 = vpop.f32.mrb[0].mxu0
        %v3533 = vadd.f32 %v3300, %v3532
        %v3534 = vpop.f32.mrb[0].mxu0
        %v3535 = vadd.f32 %v3302, %v3534
        %v3536 = vpop.f32.mrb[0].mxu0
        %v3537 = vadd.f32 %v3304, %v3536
        %3538 = vmatprep.mubr.bf16.mxu0 %v2370
        %3539 = vmatmul.mubr.bf16.gmra.mrb[0].mxu0 %v2369
        %v3540 = vpop.f32.mrb[0].mxu0
        %v3541 = vadd.f32 %v3308, %v3540
        %v3542 = vpop.f32.mrb[0].mxu0
        %v3543 = vadd.f32 %v3310, %v3542
        %v3544 = vpop.f32.mrb[0].mxu0
        %v3545 = vadd.f32 %v3312, %v3544
        %v3546 = vpop.f32.mrb[0].mxu0
        %v3547 = vadd.f32 %v3314, %v3546
        %3548 = vmatprep.mubr.bf16.mxu0 %v2379
        %3549 = vmatmul.mubr.bf16.gmra.mrb[0].mxu0 %v2378
        %v3550 = vpop.f32.mrb[0].mxu0
        %v3551 = vadd.f32 %v3318, %v3550
        %v3552 = vpop.f32.mrb[0].mxu0
        %v3553 = vadd.f32 %v3320, %v3552
        %v3554 = vpop.f32.mrb[0].mxu0
        %v3555 = vadd.f32 %v3322, %v3554
        %v3556 = vpop.f32.mrb[0].mxu0
        %v3557 = vadd.f32 %v3324, %v3556
        %3558 = vmatprep.mubr.bf16.mxu0 %v2388
        %3559 = vmatmul.mubr.bf16.gmra.mrb[0].mxu0 %v2387
        %v3560 = vpop.f32.mrb[0].mxu0
        %v3561 = vadd.f32 %v3328, %v3560
        %v3562 = vpop.f32.mrb[0].mxu0
        %v3563 = vadd.f32 %v3330, %v3562
        %v3564 = vpop.f32.mrb[0].mxu0
        %v3565 = vadd.f32 %v3332, %v3564
        %v3566 = vpop.f32.mrb[0].mxu0
        %v3567 = vadd.f32 %v3334, %v3566
        %3568 = vmatprep.mubr.bf16.mxu0 %v2397
        %3569 = vmatmul.mubr.bf16.gmra.mrb[0].mxu0 %v2396
        %v3570 = vpop.f32.mrb[0].mxu0
        %v3571 = vadd.f32 %v3338, %v3570
        %v3572 = vpop.f32.mrb[0].mxu0
        %v3573 = vadd.f32 %v3340, %v3572
        %v3574 = vpop.f32.mrb[0].mxu0
        %v3575 = vadd.f32 %v3342, %v3574
        %v3576 = vpop.f32.mrb[0].mxu0
        %v3577 = vadd.f32 %v3344, %v3576
        %3578 = vmatprep.mubr.bf16.mxu0 %v2406
        %3579 = vmatmul.mubr.bf16.gmra.mrb[0].mxu0 %v2405
        %v3580 = vpop.f32.mrb[0].mxu0
        %v3581 = vadd.f32 %v3348, %v3580
        %v3582 = vpop.f32.mrb[0].mxu0
        %v3583 = vadd.f32 %v3350, %v3582
        %v3584 = vpop.f32.mrb[0].mxu0
        %v3585 = vadd.f32 %v3352, %v3584
        %v3586 = vpop.f32.mrb[0].mxu0
        %v3587 = vadd.f32 %v3354, %v3586
        %3588 = vmatprep.mubr.bf16.mxu0 %v2415
        %3589 = vmatmul.mubr.bf16.gmra.mrb[0].mxu0 %v2414
        %v3590 = vpop.f32.mrb[0].mxu0
        %v3591 = vadd.f32 %v3358, %v3590
        %v3592 = vpop.f32.mrb[0].mxu0
        %v3593 = vadd.f32 %v3360, %v3592
        %v3594 = vpop.f32.mrb[0].mxu0
        %v3595 = vadd.f32 %v3362, %v3594
        %v3596 = vpop.f32.mrb[0].mxu0
        %v3597 = vadd.f32 %v3364, %v3596
        %3598 = vmatprep.mubr.bf16.mxu0 %v2424
        %3599 = vmatmul.mubr.bf16.gmra.mrb[0].mxu0 %v2423
        %v3600 = vpop.f32.mrb[0].mxu0
        %v3601 = vadd.f32 %v3368, %v3600
        %v3602 = vpop.f32.mrb[0].mxu0
        %v3603 = vadd.f32 %v3370, %v3602
        %v3604 = vpop.f32.mrb[0].mxu0
        %v3605 = vadd.f32 %v3372, %v3604
        %v3606 = vpop.f32.mrb[0].mxu0
        %v3607 = vadd.f32 %v3374, %v3606
        %3608 = vmatprep.mubr.bf16.mxu0 %v2433
        %3609 = vmatmul.mubr.bf16.gmra.mrb[0].mxu0 %v2432
        %v3610 = vpop.f32.mrb[0].mxu0
        %v3611 = vadd.f32 %v3378, %v3610
        %v3612 = vpop.f32.mrb[0].mxu0
        %v3613 = vadd.f32 %v3380, %v3612
        %v3614 = vpop.f32.mrb[0].mxu0
        %v3615 = vadd.f32 %v3382, %v3614
        %v3616 = vpop.f32.mrb[0].mxu0
        %v3617 = vadd.f32 %v3384, %v3616
        %3618 = vmatprep.mubr.bf16.mxu0 %v2442
        %3619 = vmatmul.mubr.bf16.gmra.mrb[0].mxu0 %v2441
        %v3620 = vpop.f32.mrb[0].mxu0
        %v3621 = vadd.f32 %v3388, %v3620
        %v3622 = vpop.f32.mrb[0].mxu0
        %v3623 = vadd.f32 %v3390, %v3622
        %v3624 = vpop.f32.mrb[0].mxu0
        %v3625 = vadd.f32 %v3392, %v3624
        %v3626 = vpop.f32.mrb[0].mxu0
        %v3627 = vadd.f32 %v3394, %v3626
        %3628 = vmatprep.mubr.bf16.mxu0 %v2451
        %3629 = vmatmul.mubr.bf16.gmra.mrb[0].mxu0 %v2450
        %v3630 = vpop.f32.mrb[0].mxu0
        %v3631 = vadd.f32 %v3398, %v3630
        %v3632 = vpop.f32.mrb[0].mxu0
        %v3633 = vadd.f32 %v3400, %v3632
        %v3634 = vpop.f32.mrb[0].mxu0
        %v3635 = vadd.f32 %v3402, %v3634
        %v3636 = vpop.f32.mrb[0].mxu0
        %v3637 = vadd.f32 %v3404, %v3636
        %3638 = vmatprep.mubr.bf16.mxu0 %v2460
        %3639 = vmatmul.mubr.bf16.gmra.mrb[0].mxu0 %v2459
        %v3640 = vpop.f32.mrb[0].mxu0
        %v3641 = vadd.f32 %v3408, %v3640
        %v3642 = vpop.f32.mrb[0].mxu0
        %v3643 = vadd.f32 %v3410, %v3642
        %v3644 = vpop.f32.mrb[0].mxu0
        %v3645 = vadd.f32 %v3412, %v3644
        %v3646 = vpop.f32.mrb[0].mxu0
        %v3647 = vadd.f32 %v3414, %v3646
        %3648 = vmatprep.mubr.bf16.mxu0 %v2469
        %3649 = vmatmul.mubr.bf16.gmra.mrb[0].mxu0 %v2468
        %v3650 = vpop.f32.mrb[0].mxu0
        %v3651 = vadd.f32 %v3418, %v3650
        %v3652 = vpop.f32.mrb[0].mxu0
        %v3653 = vadd.f32 %v3420, %v3652
        %v3654 = vpop.f32.mrb[0].mxu0
        %v3655 = vadd.f32 %v3422, %v3654
        %v3656 = vpop.f32.mrb[0].mxu0
        %v3657 = vadd.f32 %v3424, %v3656
        %3658 = vmatprep.mubr.bf16.mxu0 %v2478
        %3659 = vmatmul.mubr.bf16.gmra.mrb[0].mxu0 %v2477
        %v3660 = vpop.f32.mrb[0].mxu0
        %v3661 = vadd.f32 %v3428, %v3660
        %v3662 = vpop.f32.mrb[0].mxu0
        %v3663 = vadd.f32 %v3430, %v3662
        %v3664 = vpop.f32.mrb[0].mxu0
        %v3665 = vadd.f32 %v3432, %v3664
        %v3666 = vpop.f32.mrb[0].mxu0
        %v3667 = vadd.f32 %v3434, %v3666
        %3668 = vmatprep.mubr.bf16.mxu0 %v2487
        %3669 = vmatmul.mubr.bf16.gmra.mrb[0].mxu0 %v2486
        %v3670 = vpop.f32.mrb[0].mxu0
        %v3671 = vadd.f32 %v3438, %v3670
        %v3672 = vpop.f32.mrb[0].mxu0
        %v3673 = vadd.f32 %v3440, %v3672
        %v3674 = vpop.f32.mrb[0].mxu0
        %v3675 = vadd.f32 %v3442, %v3674
        %v3676 = vpop.f32.mrb[0].mxu0
        %v3677 = vadd.f32 %v3444, %v3676
        %3678 = vdwg.mxu0
        %3679 = vmatprep.subr.bf16.mxu0 %v2990
        %3680 = vmatpush1.bf16.msra.mxu0 %v2989
        %3681 = vmatprep.subr.bf16.mxu0 %v2992
        %3682 = vmatpush1.bf16.msra.mxu0 %v2991
        %3683 = vmatprep.subr.bf16.mxu0 %v2994
        %3684 = vmatpush1.bf16.msra.mxu0 %v2993
        %3685 = vmatprep.subr.bf16.mxu0 %v2996
        %3686 = vmatpush1.bf16.msra.mxu0 %v2995
        %3687 = vmatprep.subr.bf16.mxu0 %v2998
        %3688 = vmatpush1.bf16.msra.mxu0 %v2997
        %3689 = vmatprep.subr.bf16.mxu0 %v3000
        %3690 = vmatpush1.bf16.msra.mxu0 %v2999
        %3691 = vmatprep.subr.bf16.mxu0 %v3002
        %3692 = vmatpush1.bf16.msra.mxu0 %v3001
        %3693 = vmatprep.subr.bf16.mxu0 %v3004
        %3694 = vmatpush1.bf16.msra.mxu0 %v3003
        %3695 = vmatprep.subr.bf16.mxu0 %v3006
        %3696 = vmatpush1.bf16.msra.mxu0 %v3005
        %3697 = vmatprep.subr.bf16.mxu0 %v3008
        %3698 = vmatpush1.bf16.msra.mxu0 %v3007
        %3699 = vmatprep.subr.bf16.mxu0 %v3010
        %3700 = vmatpush1.bf16.msra.mxu0 %v3009
        %3701 = vmatprep.subr.bf16.mxu0 %v3012
        %3702 = vmatpush1.bf16.msra.mxu0 %v3011
        %3703 = vmatprep.subr.bf16.mxu0 %v3014
        %3704 = vmatpush1.bf16.msra.mxu0 %v3013
        %3705 = vmatprep.subr.bf16.mxu0 %v3016
        %3706 = vmatpush1.bf16.msra.mxu0 %v3015
        %3707 = vmatprep.subr.bf16.mxu0 %v3018
        %3708 = vmatpush1.bf16.msra.mxu0 %v3017
        %3709 = vmatprep.subr.bf16.mxu0 %v3020
        %3710 = vmatpush1.bf16.msra.mxu0 %v3019
        %3711 = vmatprep.mubr.bf16.mxu0 %v2318
        %3712 = vmatmul.mubr.bf16.gmra.mrb[0].mxu0 %v2317
        %v3713 = vpop.f32.mrb[0].mxu0
        %v3714 = vadd.f32 %v3481, %v3713
        %v3715 = vpop.f32.mrb[0].mxu0
        %v3716 = vadd.f32 %v3483, %v3715
        %v3717 = vpop.f32.mrb[0].mxu0
        %v3718 = vadd.f32 %v3485, %v3717
        %v3719 = vpop.f32.mrb[0].mxu0
        %v3720 = vadd.f32 %v3487, %v3719
        %3721 = vmatprep.mubr.bf16.mxu0 %v2327
        %3722 = vmatmul.mubr.bf16.gmra.mrb[0].mxu0 %v2326
        %v3723 = vpop.f32.mrb[0].mxu0
        %v3724 = vadd.f32 %v3491, %v3723
        %v3725 = vpop.f32.mrb[0].mxu0
        %v3726 = vadd.f32 %v3493, %v3725
        %v3727 = vpop.f32.mrb[0].mxu0
        %v3728 = vadd.f32 %v3495, %v3727
        %v3729 = vpop.f32.mrb[0].mxu0
        %v3730 = vadd.f32 %v3497, %v3729
        %3731 = vmatprep.mubr.bf16.mxu0 %v2336
        %3732 = vmatmul.mubr.bf16.gmra.mrb[0].mxu0 %v2335
        %v3733 = vpop.f32.mrb[0].mxu0
        %v3734 = vadd.f32 %v3501, %v3733
        %v3735 = vpop.f32.mrb[0].mxu0
        %v3736 = vadd.f32 %v3503, %v3735
        %v3737 = vpop.f32.mrb[0].mxu0
        %v3738 = vadd.f32 %v3505, %v3737
        %v3739 = vpop.f32.mrb[0].mxu0
        %v3740 = vadd.f32 %v3507, %v3739
        %3741 = vmatprep.mubr.bf16.mxu0 %v2345
        %3742 = vmatmul.mubr.bf16.gmra.mrb[0].mxu0 %v2344
        %v3743 = vpop.f32.mrb[0].mxu0
        %v3744 = vadd.f32 %v3511, %v3743
        %v3745 = vpop.f32.mrb[0].mxu0
        %v3746 = vadd.f32 %v3513, %v3745
        %v3747 = vpop.f32.mrb[0].mxu0
        %v3748 = vadd.f32 %v3515, %v3747
        %v3749 = vpop.f32.mrb[0].mxu0
        %v3750 = vadd.f32 %v3517, %v3749
        %3751 = vmatprep.mubr.bf16.mxu0 %v2354
        %3752 = vmatmul.mubr.bf16.gmra.mrb[0].mxu0 %v2353
        %v3753 = vpop.f32.mrb[0].mxu0
        %v3754 = vadd.f32 %v3521, %v3753
        %v3755 = vpop.f32.mrb[0].mxu0
        %v3756 = vadd.f32 %v3523, %v3755
        %v3757 = vpop.f32.mrb[0].mxu0
        %v3758 = vadd.f32 %v3525, %v3757
        %v3759 = vpop.f32.mrb[0].mxu0
        %v3760 = vadd.f32 %v3527, %v3759
        %3761 = vmatprep.mubr.bf16.mxu0 %v2363
        %3762 = vmatmul.mubr.bf16.gmra.mrb[0].mxu0 %v2362
        %v3763 = vpop.f32.mrb[0].mxu0
        %v3764 = vadd.f32 %v3531, %v3763
        %v3765 = vpop.f32.mrb[0].mxu0
        %v3766 = vadd.f32 %v3533, %v3765
        %v3767 = vpop.f32.mrb[0].mxu0
        %v3768 = vadd.f32 %v3535, %v3767
        %v3769 = vpop.f32.mrb[0].mxu0
        %v3770 = vadd.f32 %v3537, %v3769
        %3771 = vmatprep.mubr.bf16.mxu0 %v2372
        %3772 = vmatmul.mubr.bf16.gmra.mrb[0].mxu0 %v2371
        %v3773 = vpop.f32.mrb[0].mxu0
        %v3774 = vadd.f32 %v3541, %v3773
        %v3775 = vpop.f32.mrb[0].mxu0
        %v3776 = vadd.f32 %v3543, %v3775
        %v3777 = vpop.f32.mrb[0].mxu0
        %v3778 = vadd.f32 %v3545, %v3777
        %v3779 = vpop.f32.mrb[0].mxu0
        %v3780 = vadd.f32 %v3547, %v3779
        %3781 = vmatprep.mubr.bf16.mxu0 %v2381
        %3782 = vmatmul.mubr.bf16.gmra.mrb[0].mxu0 %v2380
        %v3783 = vpop.f32.mrb[0].mxu0
        %v3784 = vadd.f32 %v3551, %v3783
        %v3785 = vpop.f32.mrb[0].mxu0
        %v3786 = vadd.f32 %v3553, %v3785
        %v3787 = vpop.f32.mrb[0].mxu0
        %v3788 = vadd.f32 %v3555, %v3787
        %v3789 = vpop.f32.mrb[0].mxu0
        %v3790 = vadd.f32 %v3557, %v3789
        %3791 = vmatprep.mubr.bf16.mxu0 %v2390
        %3792 = vmatmul.mubr.bf16.gmra.mrb[0].mxu0 %v2389
        %v3793 = vpop.f32.mrb[0].mxu0
        %v3794 = vadd.f32 %v3561, %v3793
        %v3795 = vpop.f32.mrb[0].mxu0
        %v3796 = vadd.f32 %v3563, %v3795
        %v3797 = vpop.f32.mrb[0].mxu0
        %v3798 = vadd.f32 %v3565, %v3797
        %v3799 = vpop.f32.mrb[0].mxu0
        %v3800 = vadd.f32 %v3567, %v3799
        %3801 = vmatprep.mubr.bf16.mxu0 %v2399
        %3802 = vmatmul.mubr.bf16.gmra.mrb[0].mxu0 %v2398
        %v3803 = vpop.f32.mrb[0].mxu0
        %v3804 = vadd.f32 %v3571, %v3803
        %v3805 = vpop.f32.mrb[0].mxu0
        %v3806 = vadd.f32 %v3573, %v3805
        %v3807 = vpop.f32.mrb[0].mxu0
        %v3808 = vadd.f32 %v3575, %v3807
        %v3809 = vpop.f32.mrb[0].mxu0
        %v3810 = vadd.f32 %v3577, %v3809
        %3811 = vmatprep.mubr.bf16.mxu0 %v2408
        %3812 = vmatmul.mubr.bf16.gmra.mrb[0].mxu0 %v2407
        %v3813 = vpop.f32.mrb[0].mxu0
        %v3814 = vadd.f32 %v3581, %v3813
        %v3815 = vpop.f32.mrb[0].mxu0
        %v3816 = vadd.f32 %v3583, %v3815
        %v3817 = vpop.f32.mrb[0].mxu0
        %v3818 = vadd.f32 %v3585, %v3817
        %v3819 = vpop.f32.mrb[0].mxu0
        %v3820 = vadd.f32 %v3587, %v3819
        %3821 = vmatprep.mubr.bf16.mxu0 %v2417
        %3822 = vmatmul.mubr.bf16.gmra.mrb[0].mxu0 %v2416
        %v3823 = vpop.f32.mrb[0].mxu0
        %v3824 = vadd.f32 %v3591, %v3823
        %v3825 = vpop.f32.mrb[0].mxu0
        %v3826 = vadd.f32 %v3593, %v3825
        %v3827 = vpop.f32.mrb[0].mxu0
        %v3828 = vadd.f32 %v3595, %v3827
        %v3829 = vpop.f32.mrb[0].mxu0
        %v3830 = vadd.f32 %v3597, %v3829
        %3831 = vmatprep.mubr.bf16.mxu0 %v2426
        %3832 = vmatmul.mubr.bf16.gmra.mrb[0].mxu0 %v2425
        %v3833 = vpop.f32.mrb[0].mxu0
        %v3834 = vadd.f32 %v3601, %v3833
        %v3835 = vpop.f32.mrb[0].mxu0
        %v3836 = vadd.f32 %v3603, %v3835
        %v3837 = vpop.f32.mrb[0].mxu0
        %v3838 = vadd.f32 %v3605, %v3837
        %v3839 = vpop.f32.mrb[0].mxu0
        %v3840 = vadd.f32 %v3607, %v3839
        %3841 = vmatprep.mubr.bf16.mxu0 %v2435
        %3842 = vmatmul.mubr.bf16.gmra.mrb[0].mxu0 %v2434
        %v3843 = vpop.f32.mrb[0].mxu0
        %v3844 = vadd.f32 %v3611, %v3843
        %v3845 = vpop.f32.mrb[0].mxu0
        %v3846 = vadd.f32 %v3613, %v3845
        %v3847 = vpop.f32.mrb[0].mxu0
        %v3848 = vadd.f32 %v3615, %v3847
        %v3849 = vpop.f32.mrb[0].mxu0
        %v3850 = vadd.f32 %v3617, %v3849
        %3851 = vmatprep.mubr.bf16.mxu0 %v2444
        %3852 = vmatmul.mubr.bf16.gmra.mrb[0].mxu0 %v2443
        %v3853 = vpop.f32.mrb[0].mxu0
        %v3854 = vadd.f32 %v3621, %v3853
        %v3855 = vpop.f32.mrb[0].mxu0
        %v3856 = vadd.f32 %v3623, %v3855
        %v3857 = vpop.f32.mrb[0].mxu0
        %v3858 = vadd.f32 %v3625, %v3857
        %v3859 = vpop.f32.mrb[0].mxu0
        %v3860 = vadd.f32 %v3627, %v3859
        %3861 = vmatprep.mubr.bf16.mxu0 %v2453
        %3862 = vmatmul.mubr.bf16.gmra.mrb[0].mxu0 %v2452
        %v3863 = vpop.f32.mrb[0].mxu0
        %v3864 = vadd.f32 %v3631, %v3863
        %v3865 = vpop.f32.mrb[0].mxu0
        %v3866 = vadd.f32 %v3633, %v3865
        %v3867 = vpop.f32.mrb[0].mxu0
        %v3868 = vadd.f32 %v3635, %v3867
        %v3869 = vpop.f32.mrb[0].mxu0
        %v3870 = vadd.f32 %v3637, %v3869
        %3871 = vmatprep.mubr.bf16.mxu0 %v2462
        %3872 = vmatmul.mubr.bf16.gmra.mrb[0].mxu0 %v2461
        %v3873 = vpop.f32.mrb[0].mxu0
        %v3874 = vadd.f32 %v3641, %v3873
        %v3875 = vpop.f32.mrb[0].mxu0
        %v3876 = vadd.f32 %v3643, %v3875
        %v3877 = vpop.f32.mrb[0].mxu0
        %v3878 = vadd.f32 %v3645, %v3877
        %v3879 = vpop.f32.mrb[0].mxu0
        %v3880 = vadd.f32 %v3647, %v3879
        %3881 = vmatprep.mubr.bf16.mxu0 %v2471
        %3882 = vmatmul.mubr.bf16.gmra.mrb[0].mxu0 %v2470
        %v3883 = vpop.f32.mrb[0].mxu0
        %v3884 = vadd.f32 %v3651, %v3883
        %v3885 = vpop.f32.mrb[0].mxu0
        %v3886 = vadd.f32 %v3653, %v3885
        %v3887 = vpop.f32.mrb[0].mxu0
        %v3888 = vadd.f32 %v3655, %v3887
        %v3889 = vpop.f32.mrb[0].mxu0
        %v3890 = vadd.f32 %v3657, %v3889
        %3891 = vmatprep.mubr.bf16.mxu0 %v2480
        %3892 = vmatmul.mubr.bf16.gmra.mrb[0].mxu0 %v2479
        %v3893 = vpop.f32.mrb[0].mxu0
        %v3894 = vadd.f32 %v3661, %v3893
        %v3895 = vpop.f32.mrb[0].mxu0
        %v3896 = vadd.f32 %v3663, %v3895
        %v3897 = vpop.f32.mrb[0].mxu0
        %v3898 = vadd.f32 %v3665, %v3897
        %v3899 = vpop.f32.mrb[0].mxu0
        %v3900 = vadd.f32 %v3667, %v3899
        %3901 = vmatprep.mubr.bf16.mxu0 %v2489
        %3902 = vmatmul.mubr.bf16.gmra.mrb[0].mxu0 %v2488
        %v3903 = vpop.f32.mrb[0].mxu0
        %v3904 = vadd.f32 %v3671, %v3903
        %v3905 = vpop.f32.mrb[0].mxu0
        %v3906 = vadd.f32 %v3673, %v3905
        %v3907 = vpop.f32.mrb[0].mxu0
        %v3908 = vadd.f32 %v3675, %v3907
        %v3909 = vpop.f32.mrb[0].mxu0
        %v3910 = vadd.f32 %v3677, %v3909
        %3911 = vdwg.mxu0
        %3912 = vmatprep.subr.bf16.mxu0 %v3022
        %3913 = vmatpush1.bf16.msra.mxu0 %v3021
        %3914 = vmatprep.subr.bf16.mxu0 %v3024
        %3915 = vmatpush1.bf16.msra.mxu0 %v3023
        %3916 = vmatprep.subr.bf16.mxu0 %v3026
        %3917 = vmatpush1.bf16.msra.mxu0 %v3025
        %3918 = vmatprep.subr.bf16.mxu0 %v3028
        %3919 = vmatpush1.bf16.msra.mxu0 %v3027
        %3920 = vmatprep.subr.bf16.mxu0 %v3030
        %3921 = vmatpush1.bf16.msra.mxu0 %v3029
        %3922 = vmatprep.subr.bf16.mxu0 %v3032
        %3923 = vmatpush1.bf16.msra.mxu0 %v3031
        %3924 = vmatprep.subr.bf16.mxu0 %v3034
        %3925 = vmatpush1.bf16.msra.mxu0 %v3033
        %3926 = vmatprep.subr.bf16.mxu0 %v3036
        %3927 = vmatpush1.bf16.msra.mxu0 %v3035
        %3928 = vmatprep.subr.bf16.mxu0 %v3038
        %3929 = vmatpush1.bf16.msra.mxu0 %v3037
        %3930 = vmatprep.subr.bf16.mxu0 %v3040
        %3931 = vmatpush1.bf16.msra.mxu0 %v3039
        %3932 = vmatprep.subr.bf16.mxu0 %v3042
        %3933 = vmatpush1.bf16.msra.mxu0 %v3041
        %3934 = vmatprep.subr.bf16.mxu0 %v3044
        %3935 = vmatpush1.bf16.msra.mxu0 %v3043
        %3936 = vmatprep.subr.bf16.mxu0 %v3046
        %3937 = vmatpush1.bf16.msra.mxu0 %v3045
        %3938 = vmatprep.subr.bf16.mxu0 %v3048
        %3939 = vmatpush1.bf16.msra.mxu0 %v3047
        %3940 = vmatprep.subr.bf16.mxu0 %v3050
        %3941 = vmatpush1.bf16.msra.mxu0 %v3049
        %3942 = vmatprep.subr.bf16.mxu0 %v3052
        %3943 = vmatpush1.bf16.msra.mxu0 %v3051
        %3944 = vmatprep.mubr.bf16.mxu0 %v2320
        %3945 = vmatmul.mubr.bf16.gmra.mrb[0].mxu0 %v2319
        %v3946 = vpop.f32.mrb[0].mxu0
        %v3947 = vadd.f32 %v3714, %v3946
        %v3948 = vpop.f32.mrb[0].mxu0
        %v3949 = vadd.f32 %v3716, %v3948
        %v3950 = vpop.f32.mrb[0].mxu0
        %v3951 = vadd.f32 %v3718, %v3950
        %v3952 = vpop.f32.mrb[0].mxu0
        %v3953 = vadd.f32 %v3720, %v3952
        %3954 = vmatprep.mubr.bf16.mxu0 %v2329
        %3955 = vmatmul.mubr.bf16.gmra.mrb[0].mxu0 %v2328
        %v3956 = vpop.f32.mrb[0].mxu0
        %v3957 = vadd.f32 %v3724, %v3956
        %v3958 = vpop.f32.mrb[0].mxu0
        %v3959 = vadd.f32 %v3726, %v3958
        %v3960 = vpop.f32.mrb[0].mxu0
        %v3961 = vadd.f32 %v3728, %v3960
        %v3962 = vpop.f32.mrb[0].mxu0
        %v3963 = vadd.f32 %v3730, %v3962
        %3964 = vmatprep.mubr.bf16.mxu0 %v2338
        %3965 = vmatmul.mubr.bf16.gmra.mrb[0].mxu0 %v2337
        %v3966 = vpop.f32.mrb[0].mxu0
        %v3967 = vadd.f32 %v3734, %v3966
        %v3968 = vpop.f32.mrb[0].mxu0
        %v3969 = vadd.f32 %v3736, %v3968
        %v3970 = vpop.f32.mrb[0].mxu0
        %v3971 = vadd.f32 %v3738, %v3970
        %v3972 = vpop.f32.mrb[0].mxu0
        %v3973 = vadd.f32 %v3740, %v3972
        %3974 = vmatprep.mubr.bf16.mxu0 %v2347
        %3975 = vmatmul.mubr.bf16.gmra.mrb[0].mxu0 %v2346
        %v3976 = vpop.f32.mrb[0].mxu0
        %v3977 = vadd.f32 %v3744, %v3976
        %v3978 = vpop.f32.mrb[0].mxu0
        %v3979 = vadd.f32 %v3746, %v3978
        %v3980 = vpop.f32.mrb[0].mxu0
        %v3981 = vadd.f32 %v3748, %v3980
        %v3982 = vpop.f32.mrb[0].mxu0
        %v3983 = vadd.f32 %v3750, %v3982
        %3984 = vmatprep.mubr.bf16.mxu0 %v2356
        %3985 = vmatmul.mubr.bf16.gmra.mrb[0].mxu0 %v2355
        %v3986 = vpop.f32.mrb[0].mxu0
        %v3987 = vadd.f32 %v3754, %v3986
        %v3988 = vpop.f32.mrb[0].mxu0
        %v3989 = vadd.f32 %v3756, %v3988
        %v3990 = vpop.f32.mrb[0].mxu0
        %v3991 = vadd.f32 %v3758, %v3990
        %v3992 = vpop.f32.mrb[0].mxu0
        %v3993 = vadd.f32 %v3760, %v3992
        %3994 = vmatprep.mubr.bf16.mxu0 %v2365
        %3995 = vmatmul.mubr.bf16.gmra.mrb[0].mxu0 %v2364
        %v3996 = vpop.f32.mrb[0].mxu0
        %v3997 = vadd.f32 %v3764, %v3996
        %v3998 = vpop.f32.mrb[0].mxu0
        %v3999 = vadd.f32 %v3766, %v3998
        %v4000 = vpop.f32.mrb[0].mxu0
        %v4001 = vadd.f32 %v3768, %v4000
        %v4002 = vpop.f32.mrb[0].mxu0
        %v4003 = vadd.f32 %v3770, %v4002
        %4004 = vmatprep.mubr.bf16.mxu0 %v2374
        %4005 = vmatmul.mubr.bf16.gmra.mrb[0].mxu0 %v2373
        %v4006 = vpop.f32.mrb[0].mxu0
        %v4007 = vadd.f32 %v3774, %v4006
        %v4008 = vpop.f32.mrb[0].mxu0
        %v4009 = vadd.f32 %v3776, %v4008
        %v4010 = vpop.f32.mrb[0].mxu0
        %v4011 = vadd.f32 %v3778, %v4010
        %v4012 = vpop.f32.mrb[0].mxu0
        %v4013 = vadd.f32 %v3780, %v4012
        %4014 = vmatprep.mubr.bf16.mxu0 %v2383
        %4015 = vmatmul.mubr.bf16.gmra.mrb[0].mxu0 %v2382
        %v4016 = vpop.f32.mrb[0].mxu0
        %v4017 = vadd.f32 %v3784, %v4016
        %v4018 = vpop.f32.mrb[0].mxu0
        %v4019 = vadd.f32 %v3786, %v4018
        %v4020 = vpop.f32.mrb[0].mxu0
        %v4021 = vadd.f32 %v3788, %v4020
        %v4022 = vpop.f32.mrb[0].mxu0
        %v4023 = vadd.f32 %v3790, %v4022
        %4024 = vmatprep.mubr.bf16.mxu0 %v2392
        %4025 = vmatmul.mubr.bf16.gmra.mrb[0].mxu0 %v2391
        %v4026 = vpop.f32.mrb[0].mxu0
        %v4027 = vadd.f32 %v3794, %v4026
        %v4028 = vpop.f32.mrb[0].mxu0
        %v4029 = vadd.f32 %v3796, %v4028
        %v4030 = vpop.f32.mrb[0].mxu0
        %v4031 = vadd.f32 %v3798, %v4030
        %v4032 = vpop.f32.mrb[0].mxu0
        %v4033 = vadd.f32 %v3800, %v4032
        %4034 = vmatprep.mubr.bf16.mxu0 %v2401
        %4035 = vmatmul.mubr.bf16.gmra.mrb[0].mxu0 %v2400
        %v4036 = vpop.f32.mrb[0].mxu0
        %v4037 = vadd.f32 %v3804, %v4036
        %v4038 = vpop.f32.mrb[0].mxu0
        %v4039 = vadd.f32 %v3806, %v4038
        %v4040 = vpop.f32.mrb[0].mxu0
        %v4041 = vadd.f32 %v3808, %v4040
        %v4042 = vpop.f32.mrb[0].mxu0
        %v4043 = vadd.f32 %v3810, %v4042
        %4044 = vmatprep.mubr.bf16.mxu0 %v2410
        %4045 = vmatmul.mubr.bf16.gmra.mrb[0].mxu0 %v2409
        %v4046 = vpop.f32.mrb[0].mxu0
        %v4047 = vadd.f32 %v3814, %v4046
        %v4048 = vpop.f32.mrb[0].mxu0
        %v4049 = vadd.f32 %v3816, %v4048
        %v4050 = vpop.f32.mrb[0].mxu0
        %v4051 = vadd.f32 %v3818, %v4050
        %v4052 = vpop.f32.mrb[0].mxu0
        %v4053 = vadd.f32 %v3820, %v4052
        %4054 = vmatprep.mubr.bf16.mxu0 %v2419
        %4055 = vmatmul.mubr.bf16.gmra.mrb[0].mxu0 %v2418
        %v4056 = vpop.f32.mrb[0].mxu0
        %v4057 = vadd.f32 %v3824, %v4056
        %v4058 = vpop.f32.mrb[0].mxu0
        %v4059 = vadd.f32 %v3826, %v4058
        %v4060 = vpop.f32.mrb[0].mxu0
        %v4061 = vadd.f32 %v3828, %v4060
        %v4062 = vpop.f32.mrb[0].mxu0
        %v4063 = vadd.f32 %v3830, %v4062
        %4064 = vmatprep.mubr.bf16.mxu0 %v2428
        %4065 = vmatmul.mubr.bf16.gmra.mrb[0].mxu0 %v2427
        %v4066 = vpop.f32.mrb[0].mxu0
        %v4067 = vadd.f32 %v3834, %v4066
        %v4068 = vpop.f32.mrb[0].mxu0
        %v4069 = vadd.f32 %v3836, %v4068
        %v4070 = vpop.f32.mrb[0].mxu0
        %v4071 = vadd.f32 %v3838, %v4070
        %v4072 = vpop.f32.mrb[0].mxu0
        %v4073 = vadd.f32 %v3840, %v4072
        %4074 = vmatprep.mubr.bf16.mxu0 %v2437
        %4075 = vmatmul.mubr.bf16.gmra.mrb[0].mxu0 %v2436
        %v4076 = vpop.f32.mrb[0].mxu0
        %v4077 = vadd.f32 %v3844, %v4076
        %v4078 = vpop.f32.mrb[0].mxu0
        %v4079 = vadd.f32 %v3846, %v4078
        %v4080 = vpop.f32.mrb[0].mxu0
        %v4081 = vadd.f32 %v3848, %v4080
        %v4082 = vpop.f32.mrb[0].mxu0
        %v4083 = vadd.f32 %v3850, %v4082
        %4084 = vmatprep.mubr.bf16.mxu0 %v2446
        %4085 = vmatmul.mubr.bf16.gmra.mrb[0].mxu0 %v2445
        %v4086 = vpop.f32.mrb[0].mxu0
        %v4087 = vadd.f32 %v3854, %v4086
        %v4088 = vpop.f32.mrb[0].mxu0
        %v4089 = vadd.f32 %v3856, %v4088
        %v4090 = vpop.f32.mrb[0].mxu0
        %v4091 = vadd.f32 %v3858, %v4090
        %v4092 = vpop.f32.mrb[0].mxu0
        %v4093 = vadd.f32 %v3860, %v4092
        %4094 = vmatprep.mubr.bf16.mxu0 %v2455
        %4095 = vmatmul.mubr.bf16.gmra.mrb[0].mxu0 %v2454
        %v4096 = vpop.f32.mrb[0].mxu0
        %v4097 = vadd.f32 %v3864, %v4096
        %v4098 = vpop.f32.mrb[0].mxu0
        %v4099 = vadd.f32 %v3866, %v4098
        %v4100 = vpop.f32.mrb[0].mxu0
        %v4101 = vadd.f32 %v3868, %v4100
        %v4102 = vpop.f32.mrb[0].mxu0
        %v4103 = vadd.f32 %v3870, %v4102
        %4104 = vmatprep.mubr.bf16.mxu0 %v2464
        %4105 = vmatmul.mubr.bf16.gmra.mrb[0].mxu0 %v2463
        %v4106 = vpop.f32.mrb[0].mxu0
        %v4107 = vadd.f32 %v3874, %v4106
        %v4108 = vpop.f32.mrb[0].mxu0
        %v4109 = vadd.f32 %v3876, %v4108
        %v4110 = vpop.f32.mrb[0].mxu0
        %v4111 = vadd.f32 %v3878, %v4110
        %v4112 = vpop.f32.mrb[0].mxu0
        %v4113 = vadd.f32 %v3880, %v4112
        %4114 = vmatprep.mubr.bf16.mxu0 %v2473
        %4115 = vmatmul.mubr.bf16.gmra.mrb[0].mxu0 %v2472
        %v4116 = vpop.f32.mrb[0].mxu0
        %v4117 = vadd.f32 %v3884, %v4116
        %v4118 = vpop.f32.mrb[0].mxu0
        %v4119 = vadd.f32 %v3886, %v4118
        %v4120 = vpop.f32.mrb[0].mxu0
        %v4121 = vadd.f32 %v3888, %v4120
        %v4122 = vpop.f32.mrb[0].mxu0
        %v4123 = vadd.f32 %v3890, %v4122
        %4124 = vmatprep.mubr.bf16.mxu0 %v2482
        %4125 = vmatmul.mubr.bf16.gmra.mrb[0].mxu0 %v2481
        %v4126 = vpop.f32.mrb[0].mxu0
        %v4127 = vadd.f32 %v3894, %v4126
        %v4128 = vpop.f32.mrb[0].mxu0
        %v4129 = vadd.f32 %v3896, %v4128
        %v4130 = vpop.f32.mrb[0].mxu0
        %v4131 = vadd.f32 %v3898, %v4130
        %v4132 = vpop.f32.mrb[0].mxu0
        %v4133 = vadd.f32 %v3900, %v4132
        %4134 = vmatprep.mubr.bf16.mxu0 %v2491
        %4135 = vmatmul.mubr.bf16.gmra.mrb[0].mxu0 %v2490
        %v4136 = vpop.f32.mrb[0].mxu0
        %v4137 = vadd.f32 %v3904, %v4136
        %v4138 = vpop.f32.mrb[0].mxu0
        %v4139 = vadd.f32 %v3906, %v4138
        %v4140 = vpop.f32.mrb[0].mxu0
        %v4141 = vadd.f32 %v3908, %v4140
        %v4142 = vpop.f32.mrb[0].mxu0
        %v4143 = vadd.f32 %v3910, %v4142
        %4144 = vdwg.mxu0
        %4145 = vmatprep.subr.bf16.mxu0 %v3054
        %4146 = vmatpush1.bf16.msra.mxu0 %v3053
        %4147 = vmatprep.subr.bf16.mxu0 %v3056
        %4148 = vmatpush1.bf16.msra.mxu0 %v3055
        %4149 = vmatprep.subr.bf16.mxu0 %v3058
        %4150 = vmatpush1.bf16.msra.mxu0 %v3057
        %4151 = vmatprep.subr.bf16.mxu0 %v3060
        %4152 = vmatpush1.bf16.msra.mxu0 %v3059
        %4153 = vmatprep.subr.bf16.mxu0 %v3062
        %4154 = vmatpush1.bf16.msra.mxu0 %v3061
        %4155 = vmatprep.subr.bf16.mxu0 %v3064
        %4156 = vmatpush1.bf16.msra.mxu0 %v3063
        %4157 = vmatprep.subr.bf16.mxu0 %v3066
        %4158 = vmatpush1.bf16.msra.mxu0 %v3065
        %4159 = vmatprep.subr.bf16.mxu0 %v3068
        %4160 = vmatpush1.bf16.msra.mxu0 %v3067
        %4161 = vmatprep.subr.bf16.mxu0 0
        %4162 = vmatpush1.bf16.msra.mxu0 0
        %4163 = vmatprep.subr.bf16.mxu0 0
        %4164 = vmatpush1.bf16.msra.mxu0 0
        %4165 = vmatprep.subr.bf16.mxu0 0
        %4166 = vmatpush1.bf16.msra.mxu0 0
        %4167 = vmatprep.subr.bf16.mxu0 0
        %4168 = vmatpush1.bf16.msra.mxu0 0
        %4169 = vmatprep.subr.bf16.mxu0 0
        %4170 = vmatpush1.bf16.msra.mxu0 0
        %4171 = vmatprep.subr.bf16.mxu0 0
        %4172 = vmatpush1.bf16.msra.mxu0 0
        %4173 = vmatprep.subr.bf16.mxu0 0
        %4174 = vmatpush1.bf16.msra.mxu0 0
        %4175 = vmatprep.subr.bf16.mxu0 0
        %4176 = vmatpush1.bf16.msra.mxu0 0
        %4177 = vmatprep.mubr.bf16.mxu0 0
        %4178 = vmatmul.mubr.bf16.gmra.mrb[0].mxu0 %v2321
        %v4179 = vpop.f32.mrb[0].mxu0
        %v4180 = vadd.f32 %v3947, %v4179
        %v4181 = vpop.f32.mrb[0].mxu0
        %v4182 = vadd.f32 %v3949, %v4181
        %v4183 = vpop.f32.mrb[0].mxu0
        %v4184 = vadd.f32 %v3951, %v4183
        %v4185 = vpop.f32.mrb[0].mxu0
        %v4186 = vadd.f32 %v3953, %v4185
        %4187 = vmatprep.mubr.bf16.mxu0 0
        %4188 = vmatmul.mubr.bf16.gmra.mrb[0].mxu0 %v2330
        %v4189 = vpop.f32.mrb[0].mxu0
        %v4190 = vadd.f32 %v3957, %v4189
        %v4191 = vpop.f32.mrb[0].mxu0
        %v4192 = vadd.f32 %v3959, %v4191
        %v4193 = vpop.f32.mrb[0].mxu0
        %v4194 = vadd.f32 %v3961, %v4193
        %v4195 = vpop.f32.mrb[0].mxu0
        %v4196 = vadd.f32 %v3963, %v4195
        %4197 = vmatprep.mubr.bf16.mxu0 0
        %4198 = vmatmul.mubr.bf16.gmra.mrb[0].mxu0 %v2339
        %v4199 = vpop.f32.mrb[0].mxu0
        %v4200 = vadd.f32 %v3967, %v4199
        %v4201 = vpop.f32.mrb[0].mxu0
        %v4202 = vadd.f32 %v3969, %v4201
        %v4203 = vpop.f32.mrb[0].mxu0
        %v4204 = vadd.f32 %v3971, %v4203
        %v4205 = vpop.f32.mrb[0].mxu0
        %v4206 = vadd.f32 %v3973, %v4205
        %4207 = vmatprep.mubr.bf16.mxu0 0
        %4208 = vmatmul.mubr.bf16.gmra.mrb[0].mxu0 %v2348
        %v4209 = vpop.f32.mrb[0].mxu0
        %v4210 = vadd.f32 %v3977, %v4209
        %v4211 = vpop.f32.mrb[0].mxu0
        %v4212 = vadd.f32 %v3979, %v4211
        %v4213 = vpop.f32.mrb[0].mxu0
        %v4214 = vadd.f32 %v3981, %v4213
        %v4215 = vpop.f32.mrb[0].mxu0
        %v4216 = vadd.f32 %v3983, %v4215
        %4217 = vmatprep.mubr.bf16.mxu0 0
        %4218 = vmatmul.mubr.bf16.gmra.mrb[0].mxu0 %v2357
        %v4219 = vpop.f32.mrb[0].mxu0
        %v4220 = vadd.f32 %v3987, %v4219
        %v4221 = vpop.f32.mrb[0].mxu0
        %v4222 = vadd.f32 %v3989, %v4221
        %v4223 = vpop.f32.mrb[0].mxu0
        %v4224 = vadd.f32 %v3991, %v4223
        %v4225 = vpop.f32.mrb[0].mxu0
        %v4226 = vadd.f32 %v3993, %v4225
        %4227 = vmatprep.mubr.bf16.mxu0 0
        %4228 = vmatmul.mubr.bf16.gmra.mrb[0].mxu0 %v2366
        %v4229 = vpop.f32.mrb[0].mxu0
        %v4230 = vadd.f32 %v3997, %v4229
        %v4231 = vpop.f32.mrb[0].mxu0
        %v4232 = vadd.f32 %v3999, %v4231
        %v4233 = vpop.f32.mrb[0].mxu0
        %v4234 = vadd.f32 %v4001, %v4233
        %v4235 = vpop.f32.mrb[0].mxu0
        %v4236 = vadd.f32 %v4003, %v4235
        %4237 = vmatprep.mubr.bf16.mxu0 0
        %4238 = vmatmul.mubr.bf16.gmra.mrb[0].mxu0 %v2375
        %v4239 = vpop.f32.mrb[0].mxu0
        %v4240 = vadd.f32 %v4007, %v4239
        %v4241 = vpop.f32.mrb[0].mxu0
        %v4242 = vadd.f32 %v4009, %v4241
        %v4243 = vpop.f32.mrb[0].mxu0
        %v4244 = vadd.f32 %v4011, %v4243
        %v4245 = vpop.f32.mrb[0].mxu0
        %v4246 = vadd.f32 %v4013, %v4245
        %4247 = vmatprep.mubr.bf16.mxu0 0
        %4248 = vmatmul.mubr.bf16.gmra.mrb[0].mxu0 %v2384
        %v4249 = vpop.f32.mrb[0].mxu0
        %v4250 = vadd.f32 %v4017, %v4249
        %v4251 = vpop.f32.mrb[0].mxu0
        %v4252 = vadd.f32 %v4019, %v4251
        %v4253 = vpop.f32.mrb[0].mxu0
        %v4254 = vadd.f32 %v4021, %v4253
        %v4255 = vpop.f32.mrb[0].mxu0
        %v4256 = vadd.f32 %v4023, %v4255
        %4257 = vmatprep.mubr.bf16.mxu0 0
        %4258 = vmatmul.mubr.bf16.gmra.mrb[0].mxu0 %v2393
        %v4259 = vpop.f32.mrb[0].mxu0
        %v4260 = vadd.f32 %v4027, %v4259
        %v4261 = vpop.f32.mrb[0].mxu0
        %v4262 = vadd.f32 %v4029, %v4261
        %v4263 = vpop.f32.mrb[0].mxu0
        %v4264 = vadd.f32 %v4031, %v4263
        %v4265 = vpop.f32.mrb[0].mxu0
        %v4266 = vadd.f32 %v4033, %v4265
        %4267 = vmatprep.mubr.bf16.mxu0 0
        %4268 = vmatmul.mubr.bf16.gmra.mrb[0].mxu0 %v2402
        %v4269 = vpop.f32.mrb[0].mxu0
        %v4270 = vadd.f32 %v4037, %v4269
        %v4271 = vpop.f32.mrb[0].mxu0
        %v4272 = vadd.f32 %v4039, %v4271
        %v4273 = vpop.f32.mrb[0].mxu0
        %v4274 = vadd.f32 %v4041, %v4273
        %v4275 = vpop.f32.mrb[0].mxu0
        %v4276 = vadd.f32 %v4043, %v4275
        %4277 = vmatprep.mubr.bf16.mxu0 0
        %4278 = vmatmul.mubr.bf16.gmra.mrb[0].mxu0 %v2411
        %v4279 = vpop.f32.mrb[0].mxu0
        %v4280 = vadd.f32 %v4047, %v4279
        %v4281 = vpop.f32.mrb[0].mxu0
        %v4282 = vadd.f32 %v4049, %v4281
        %v4283 = vpop.f32.mrb[0].mxu0
        %v4284 = vadd.f32 %v4051, %v4283
        %v4285 = vpop.f32.mrb[0].mxu0
        %v4286 = vadd.f32 %v4053, %v4285
        %4287 = vmatprep.mubr.bf16.mxu0 0
        %4288 = vmatmul.mubr.bf16.gmra.mrb[0].mxu0 %v2420
        %v4289 = vpop.f32.mrb[0].mxu0
        %v4290 = vadd.f32 %v4057, %v4289
        %v4291 = vpop.f32.mrb[0].mxu0
        %v4292 = vadd.f32 %v4059, %v4291
        %v4293 = vpop.f32.mrb[0].mxu0
        %v4294 = vadd.f32 %v4061, %v4293
        %v4295 = vpop.f32.mrb[0].mxu0
        %v4296 = vadd.f32 %v4063, %v4295
        %4297 = vmatprep.mubr.bf16.mxu0 0
        %4298 = vmatmul.mubr.bf16.gmra.mrb[0].mxu0 %v2429
        %v4299 = vpop.f32.mrb[0].mxu0
        %v4300 = vadd.f32 %v4067, %v4299
        %v4301 = vpop.f32.mrb[0].mxu0
        %v4302 = vadd.f32 %v4069, %v4301
        %v4303 = vpop.f32.mrb[0].mxu0
        %v4304 = vadd.f32 %v4071, %v4303
        %v4305 = vpop.f32.mrb[0].mxu0
        %v4306 = vadd.f32 %v4073, %v4305
        %4307 = vmatprep.mubr.bf16.mxu0 0
        %4308 = vmatmul.mubr.bf16.gmra.mrb[0].mxu0 %v2438
        %v4309 = vpop.f32.mrb[0].mxu0
        %v4310 = vadd.f32 %v4077, %v4309
        %v4311 = vpop.f32.mrb[0].mxu0
        %v4312 = vadd.f32 %v4079, %v4311
        %v4313 = vpop.f32.mrb[0].mxu0
        %v4314 = vadd.f32 %v4081, %v4313
        %v4315 = vpop.f32.mrb[0].mxu0
        %v4316 = vadd.f32 %v4083, %v4315
        %4317 = vmatprep.mubr.bf16.mxu0 0
        %4318 = vmatmul.mubr.bf16.gmra.mrb[0].mxu0 %v2447
        %v4319 = vpop.f32.mrb[0].mxu0
        %v4320 = vadd.f32 %v4087, %v4319
        %v4321 = vpop.f32.mrb[0].mxu0
        %v4322 = vadd.f32 %v4089, %v4321
        %v4323 = vpop.f32.mrb[0].mxu0
        %v4324 = vadd.f32 %v4091, %v4323
        %v4325 = vpop.f32.mrb[0].mxu0
        %v4326 = vadd.f32 %v4093, %v4325
        %4327 = vmatprep.mubr.bf16.mxu0 0
        %4328 = vmatmul.mubr.bf16.gmra.mrb[0].mxu0 %v2456
        %v4329 = vpop.f32.mrb[0].mxu0
        %v4330 = vadd.f32 %v4097, %v4329
        %v4331 = vpop.f32.mrb[0].mxu0
        %v4332 = vadd.f32 %v4099, %v4331
        %v4333 = vpop.f32.mrb[0].mxu0
        %v4334 = vadd.f32 %v4101, %v4333
        %v4335 = vpop.f32.mrb[0].mxu0
        %v4336 = vadd.f32 %v4103, %v4335
        %4337 = vmatprep.mubr.bf16.mxu0 0
        %4338 = vmatmul.mubr.bf16.gmra.mrb[0].mxu0 %v2465
        %v4339 = vpop.f32.mrb[0].mxu0
        %v4340 = vadd.f32 %v4107, %v4339
        %v4341 = vpop.f32.mrb[0].mxu0
        %v4342 = vadd.f32 %v4109, %v4341
        %v4343 = vpop.f32.mrb[0].mxu0
        %v4344 = vadd.f32 %v4111, %v4343
        %v4345 = vpop.f32.mrb[0].mxu0
        %v4346 = vadd.f32 %v4113, %v4345
        %4347 = vmatprep.mubr.bf16.mxu0 0
        %4348 = vmatmul.mubr.bf16.gmra.mrb[0].mxu0 %v2474
        %v4349 = vpop.f32.mrb[0].mxu0
        %v4350 = vadd.f32 %v4117, %v4349
        %v4351 = vpop.f32.mrb[0].mxu0
        %v4352 = vadd.f32 %v4119, %v4351
        %v4353 = vpop.f32.mrb[0].mxu0
        %v4354 = vadd.f32 %v4121, %v4353
        %v4355 = vpop.f32.mrb[0].mxu0
        %v4356 = vadd.f32 %v4123, %v4355
        %4357 = vmatprep.mubr.bf16.mxu0 0
        %4358 = vmatmul.mubr.bf16.gmra.mrb[0].mxu0 %v2483
        %v4359 = vpop.f32.mrb[0].mxu0
        %v4360 = vadd.f32 %v4127, %v4359
        %v4361 = vpop.f32.mrb[0].mxu0
        %v4362 = vadd.f32 %v4129, %v4361
        %v4363 = vpop.f32.mrb[0].mxu0
        %v4364 = vadd.f32 %v4131, %v4363
        %v4365 = vpop.f32.mrb[0].mxu0
        %v4366 = vadd.f32 %v4133, %v4365
        %4367 = vmatprep.mubr.bf16.mxu0 0
        %4368 = vmatmul.mubr.bf16.gmra.mrb[0].mxu0 %v2492
        %v4369 = vpop.f32.mrb[0].mxu0
        %v4370 = vadd.f32 %v4137, %v4369
        %v4371 = vpop.f32.mrb[0].mxu0
        %v4372 = vadd.f32 %v4139, %v4371
        %v4373 = vpop.f32.mrb[0].mxu0
        %v4374 = vadd.f32 %v4141, %v4373
        %v4375 = vpop.f32.mrb[0].mxu0
        %v4376 = vadd.f32 %v4143, %v4375
        %4377 = vdwg.mxu0
        %v4379 = vlaneseq
        %v4380 = vshrl.u32 %v4379, 7
        %v4381 = vsub.s32 0, %v4380
        %v4382 = vrot.slane %v419, %v4381
        %v4383 = vlaneseq
        %v4384 = vshrl.u32 %v4383, 7
        %v4385 = vsub.s32 1, %v4384
        %v4386 = vrot.slane %v419, %v4385
        %v4389 = vmul.f32 %v4180, %v4382
        %v4390 = vmul.f32 %v4182, %v4386
        %v4391 = vmul.f32 %v4184, %v4382
        %v4392 = vmul.f32 %v4186, %v4386
        %v4393 = vmul.f32 %v4190, %v4382
        %v4394 = vmul.f32 %v4192, %v4386
        %v4395 = vmul.f32 %v4194, %v4382
        %v4396 = vmul.f32 %v4196, %v4386
        %v4397 = vmul.f32 %v4200, %v4382
        %v4398 = vmul.f32 %v4202, %v4386
        %v4399 = vmul.f32 %v4204, %v4382
        %v4400 = vmul.f32 %v4206, %v4386
        %v4401 = vmul.f32 %v4210, %v4382
        %v4402 = vmul.f32 %v4212, %v4386
        %v4403 = vmul.f32 %v4214, %v4382
        %v4404 = vmul.f32 %v4216, %v4386
        %v4405 = vmul.f32 %v4220, %v4382
        %v4406 = vmul.f32 %v4222, %v4386
        %v4407 = vmul.f32 %v4224, %v4382
        %v4408 = vmul.f32 %v4226, %v4386
        %v4409 = vmul.f32 %v4230, %v4382
        %v4410 = vmul.f32 %v4232, %v4386
        %v4411 = vmul.f32 %v4234, %v4382
        %v4412 = vmul.f32 %v4236, %v4386
        %v4413 = vmul.f32 %v4240, %v4382
        %v4414 = vmul.f32 %v4242, %v4386
        %v4415 = vmul.f32 %v4244, %v4382
        %v4416 = vmul.f32 %v4246, %v4386
        %v4417 = vmul.f32 %v4250, %v4382
        %v4418 = vmul.f32 %v4252, %v4386
        %v4419 = vmul.f32 %v4254, %v4382
        %v4420 = vmul.f32 %v4256, %v4386
        %v4421 = vmul.f32 %v4260, %v4382
        %v4422 = vmul.f32 %v4262, %v4386
        %v4423 = vmul.f32 %v4264, %v4382
        %v4424 = vmul.f32 %v4266, %v4386
        %v4425 = vmul.f32 %v4270, %v4382
        %v4426 = vmul.f32 %v4272, %v4386
        %v4427 = vmul.f32 %v4274, %v4382
        %v4428 = vmul.f32 %v4276, %v4386
        %v4429 = vmul.f32 %v4280, %v4382
        %v4430 = vmul.f32 %v4282, %v4386
        %v4431 = vmul.f32 %v4284, %v4382
        %v4432 = vmul.f32 %v4286, %v4386
        %v4433 = vmul.f32 %v4290, %v4382
        %v4434 = vmul.f32 %v4292, %v4386
        %v4435 = vmul.f32 %v4294, %v4382
        %v4436 = vmul.f32 %v4296, %v4386
        %v4437 = vmul.f32 %v4300, %v4382
        %v4438 = vmul.f32 %v4302, %v4386
        %v4439 = vmul.f32 %v4304, %v4382
        %v4440 = vmul.f32 %v4306, %v4386
        %v4441 = vmul.f32 %v4310, %v4382
        %v4442 = vmul.f32 %v4312, %v4386
        %v4443 = vmul.f32 %v4314, %v4382
        %v4444 = vmul.f32 %v4316, %v4386
        %v4445 = vmul.f32 %v4320, %v4382
        %v4446 = vmul.f32 %v4322, %v4386
        %v4447 = vmul.f32 %v4324, %v4382
        %v4448 = vmul.f32 %v4326, %v4386
        %v4449 = vmul.f32 %v4330, %v4382
        %v4450 = vmul.f32 %v4332, %v4386
        %v4451 = vmul.f32 %v4334, %v4382
        %v4452 = vmul.f32 %v4336, %v4386
        %v4453 = vmul.f32 %v4340, %v4382
        %v4454 = vmul.f32 %v4342, %v4386
        %v4455 = vmul.f32 %v4344, %v4382
        %v4456 = vmul.f32 %v4346, %v4386
        %v4457 = vmul.f32 %v4350, %v4382
        %v4458 = vmul.f32 %v4352, %v4386
        %v4459 = vmul.f32 %v4354, %v4382
        %v4460 = vmul.f32 %v4356, %v4386
        %v4461 = vmul.f32 %v4360, %v4382
        %v4462 = vmul.f32 %v4362, %v4386
        %v4463 = vmul.f32 %v4364, %v4382
        %v4464 = vmul.f32 %v4366, %v4386
        %v4465 = vmul.f32 %v4370, %v4382
        %v4466 = vmul.f32 %v4372, %v4386
        %v4467 = vmul.f32 %v4374, %v4382
        %v4468 = vmul.f32 %v4376, %v4386
        %v4470 = vlaneseq
        %v4471 = vshrl.u32 %v4470, 7
        %v4472 = vsub.s32 0, %v4471
        %v4473 = vrot.slane %v420, %v4472
        %v4474 = vlaneseq
        %v4475 = vshrl.u32 %v4474, 7
        %v4476 = vsub.s32 1, %v4475
        %v4477 = vrot.slane %v420, %v4476
        %v4480 = vadd.f32 %v4389, %v4473
        %v4481 = vadd.f32 %v4390, %v4477
        %v4482 = vadd.f32 %v4391, %v4473
        %v4483 = vadd.f32 %v4392, %v4477
        %v4484 = vadd.f32 %v4393, %v4473
        %v4485 = vadd.f32 %v4394, %v4477
        %v4486 = vadd.f32 %v4395, %v4473
        %v4487 = vadd.f32 %v4396, %v4477
        %v4488 = vadd.f32 %v4397, %v4473
        %v4489 = vadd.f32 %v4398, %v4477
        %v4490 = vadd.f32 %v4399, %v4473
        %v4491 = vadd.f32 %v4400, %v4477
        %v4492 = vadd.f32 %v4401, %v4473
        %v4493 = vadd.f32 %v4402, %v4477
        %v4494 = vadd.f32 %v4403, %v4473
        %v4495 = vadd.f32 %v4404, %v4477
        %v4496 = vadd.f32 %v4405, %v4473
        %v4497 = vadd.f32 %v4406, %v4477
        %v4498 = vadd.f32 %v4407, %v4473
        %v4499 = vadd.f32 %v4408, %v4477
        %v4500 = vadd.f32 %v4409, %v4473
        %v4501 = vadd.f32 %v4410, %v4477
        %v4502 = vadd.f32 %v4411, %v4473
        %v4503 = vadd.f32 %v4412, %v4477
        %v4504 = vadd.f32 %v4413, %v4473
        %v4505 = vadd.f32 %v4414, %v4477
        %v4506 = vadd.f32 %v4415, %v4473
        %v4507 = vadd.f32 %v4416, %v4477
        %v4508 = vadd.f32 %v4417, %v4473
        %v4509 = vadd.f32 %v4418, %v4477
        %v4510 = vadd.f32 %v4419, %v4473
        %v4511 = vadd.f32 %v4420, %v4477
        %v4512 = vadd.f32 %v4421, %v4473
        %v4513 = vadd.f32 %v4422, %v4477
        %v4514 = vadd.f32 %v4423, %v4473
        %v4515 = vadd.f32 %v4424, %v4477
        %v4516 = vadd.f32 %v4425, %v4473
        %v4517 = vadd.f32 %v4426, %v4477
        %v4518 = vadd.f32 %v4427, %v4473
        %v4519 = vadd.f32 %v4428, %v4477
        %v4520 = vadd.f32 %v4429, %v4473
        %v4521 = vadd.f32 %v4430, %v4477
        %v4522 = vadd.f32 %v4431, %v4473
        %v4523 = vadd.f32 %v4432, %v4477
        %v4524 = vadd.f32 %v4433, %v4473
        %v4525 = vadd.f32 %v4434, %v4477
        %v4526 = vadd.f32 %v4435, %v4473
        %v4527 = vadd.f32 %v4436, %v4477
        %v4528 = vadd.f32 %v4437, %v4473
        %v4529 = vadd.f32 %v4438, %v4477
        %v4530 = vadd.f32 %v4439, %v4473
        %v4531 = vadd.f32 %v4440, %v4477
        %v4532 = vadd.f32 %v4441, %v4473
        %v4533 = vadd.f32 %v4442, %v4477
        %v4534 = vadd.f32 %v4443, %v4473
        %v4535 = vadd.f32 %v4444, %v4477
        %v4536 = vadd.f32 %v4445, %v4473
        %v4537 = vadd.f32 %v4446, %v4477
        %v4538 = vadd.f32 %v4447, %v4473
        %v4539 = vadd.f32 %v4448, %v4477
        %v4540 = vadd.f32 %v4449, %v4473
        %v4541 = vadd.f32 %v4450, %v4477
        %v4542 = vadd.f32 %v4451, %v4473
        %v4543 = vadd.f32 %v4452, %v4477
        %v4544 = vadd.f32 %v4453, %v4473
        %v4545 = vadd.f32 %v4454, %v4477
        %v4546 = vadd.f32 %v4455, %v4473
        %v4547 = vadd.f32 %v4456, %v4477
        %v4548 = vadd.f32 %v4457, %v4473
        %v4549 = vadd.f32 %v4458, %v4477
        %v4550 = vadd.f32 %v4459, %v4473
        %v4551 = vadd.f32 %v4460, %v4477
        %v4552 = vadd.f32 %v4461, %v4473
        %v4553 = vadd.f32 %v4462, %v4477
        %v4554 = vadd.f32 %v4463, %v4473
        %v4555 = vadd.f32 %v4464, %v4477
        %v4556 = vadd.f32 %v4465, %v4473
        %v4557 = vadd.f32 %v4466, %v4477
        %v4558 = vadd.f32 %v4467, %v4473
        %v4559 = vadd.f32 %v4468, %v4477
        %v4560 = vmax.f32 %v4480, 0.0
        %v4561 = vmax.f32 %v4481, 0.0
        %v4562 = vmax.f32 %v4482, 0.0
        %v4563 = vmax.f32 %v4483, 0.0
        %v4564 = vmax.f32 %v4484, 0.0
        %v4565 = vmax.f32 %v4485, 0.0
        %v4566 = vmax.f32 %v4486, 0.0
        %v4567 = vmax.f32 %v4487, 0.0
        %v4568 = vmax.f32 %v4488, 0.0
        %v4569 = vmax.f32 %v4489, 0.0
        %v4570 = vmax.f32 %v4490, 0.0
        %v4571 = vmax.f32 %v4491, 0.0
        %v4572 = vmax.f32 %v4492, 0.0
        %v4573 = vmax.f32 %v4493, 0.0
        %v4574 = vmax.f32 %v4494, 0.0
        %v4575 = vmax.f32 %v4495, 0.0
        %v4576 = vmax.f32 %v4496, 0.0
        %v4577 = vmax.f32 %v4497, 0.0
        %v4578 = vmax.f32 %v4498, 0.0
        %v4579 = vmax.f32 %v4499, 0.0
        %v4580 = vmax.f32 %v4500, 0.0
        %v4581 = vmax.f32 %v4501, 0.0
        %v4582 = vmax.f32 %v4502, 0.0
        %v4583 = vmax.f32 %v4503, 0.0
        %v4584 = vmax.f32 %v4504, 0.0
        %v4585 = vmax.f32 %v4505, 0.0
        %v4586 = vmax.f32 %v4506, 0.0
        %v4587 = vmax.f32 %v4507, 0.0
        %v4588 = vmax.f32 %v4508, 0.0
        %v4589 = vmax.f32 %v4509, 0.0
        %v4590 = vmax.f32 %v4510, 0.0
        %v4591 = vmax.f32 %v4511, 0.0
        %v4592 = vmax.f32 %v4512, 0.0
        %v4593 = vmax.f32 %v4513, 0.0
        %v4594 = vmax.f32 %v4514, 0.0
        %v4595 = vmax.f32 %v4515, 0.0
        %v4596 = vmax.f32 %v4516, 0.0
        %v4597 = vmax.f32 %v4517, 0.0
        %v4598 = vmax.f32 %v4518, 0.0
        %v4599 = vmax.f32 %v4519, 0.0
        %v4600 = vmax.f32 %v4520, 0.0
        %v4601 = vmax.f32 %v4521, 0.0
        %v4602 = vmax.f32 %v4522, 0.0
        %v4603 = vmax.f32 %v4523, 0.0
        %v4604 = vmax.f32 %v4524, 0.0
        %v4605 = vmax.f32 %v4525, 0.0
        %v4606 = vmax.f32 %v4526, 0.0
        %v4607 = vmax.f32 %v4527, 0.0
        %v4608 = vmax.f32 %v4528, 0.0
        %v4609 = vmax.f32 %v4529, 0.0
        %v4610 = vmax.f32 %v4530, 0.0
        %v4611 = vmax.f32 %v4531, 0.0
        %v4612 = vmax.f32 %v4532, 0.0
        %v4613 = vmax.f32 %v4533, 0.0
        %v4614 = vmax.f32 %v4534, 0.0
        %v4615 = vmax.f32 %v4535, 0.0
        %v4616 = vmax.f32 %v4536, 0.0
        %v4617 = vmax.f32 %v4537, 0.0
        %v4618 = vmax.f32 %v4538, 0.0
        %v4619 = vmax.f32 %v4539, 0.0
        %v4620 = vmax.f32 %v4540, 0.0
        %v4621 = vmax.f32 %v4541, 0.0
        %v4622 = vmax.f32 %v4542, 0.0
        %v4623 = vmax.f32 %v4543, 0.0
        %v4624 = vmax.f32 %v4544, 0.0
        %v4625 = vmax.f32 %v4545, 0.0
        %v4626 = vmax.f32 %v4546, 0.0
        %v4627 = vmax.f32 %v4547, 0.0
        %v4628 = vmax.f32 %v4548, 0.0
        %v4629 = vmax.f32 %v4549, 0.0
        %v4630 = vmax.f32 %v4550, 0.0
        %v4631 = vmax.f32 %v4551, 0.0
        %v4632 = vmax.f32 %v4552, 0.0
        %v4633 = vmax.f32 %v4553, 0.0
        %v4634 = vmax.f32 %v4554, 0.0
        %v4635 = vmax.f32 %v4555, 0.0
        %v4636 = vmax.f32 %v4556, 0.0
        %v4637 = vmax.f32 %v4557, 0.0
        %v4638 = vmax.f32 %v4558, 0.0
        %v4639 = vmax.f32 %v4559, 0.0
        %v4640 = vpack.c.bf16 %v4562, %v4560
        %v4641 = vpack.c.bf16 %v4563, %v4561
        %v4642 = vpack.c.bf16 %v4566, %v4564
        %v4643 = vpack.c.bf16 %v4567, %v4565
        %v4644 = vpack.c.bf16 %v4570, %v4568
        %v4645 = vpack.c.bf16 %v4571, %v4569
        %v4646 = vpack.c.bf16 %v4574, %v4572
        %v4647 = vpack.c.bf16 %v4575, %v4573
        %v4648 = vpack.c.bf16 %v4578, %v4576
        %v4649 = vpack.c.bf16 %v4579, %v4577
        %v4650 = vpack.c.bf16 %v4582, %v4580
        %v4651 = vpack.c.bf16 %v4583, %v4581
        %v4652 = vpack.c.bf16 %v4586, %v4584
        %v4653 = vpack.c.bf16 %v4587, %v4585
        %v4654 = vpack.c.bf16 %v4590, %v4588
        %v4655 = vpack.c.bf16 %v4591, %v4589
        %v4656 = vpack.c.bf16 %v4594, %v4592
        %v4657 = vpack.c.bf16 %v4595, %v4593
        %v4658 = vpack.c.bf16 %v4598, %v4596
        %v4659 = vpack.c.bf16 %v4599, %v4597
        %v4660 = vpack.c.bf16 %v4602, %v4600
        %v4661 = vpack.c.bf16 %v4603, %v4601
        %v4662 = vpack.c.bf16 %v4606, %v4604
        %v4663 = vpack.c.bf16 %v4607, %v4605
        %v4664 = vpack.c.bf16 %v4610, %v4608
        %v4665 = vpack.c.bf16 %v4611, %v4609
        %v4666 = vpack.c.bf16 %v4614, %v4612
        %v4667 = vpack.c.bf16 %v4615, %v4613
        %v4668 = vpack.c.bf16 %v4618, %v4616
        %v4669 = vpack.c.bf16 %v4619, %v4617
        %v4670 = vpack.c.bf16 %v4622, %v4620
        %v4671 = vpack.c.bf16 %v4623, %v4621
        %v4672 = vpack.c.bf16 %v4626, %v4624
        %v4673 = vpack.c.bf16 %v4627, %v4625
        %v4674 = vpack.c.bf16 %v4630, %v4628
        %v4675 = vpack.c.bf16 %v4631, %v4629
        %v4676 = vpack.c.bf16 %v4634, %v4632
        %v4677 = vpack.c.bf16 %v4635, %v4633
        %v4678 = vpack.c.bf16 %v4638, %v4636
        %v4679 = vpack.c.bf16 %v4639, %v4637
        %v4720 = vunpack.c.l.b16 %v4640
        %v4721 = vunpack.c.l.b16 %v4641
        %v4722 = vunpack.c.h.b16 %v4640
        %v4723 = vunpack.c.h.b16 %v4641
        %v4724 = vunpack.c.l.b16 %v4642
        %v4725 = vunpack.c.l.b16 %v4643
        %v4726 = vunpack.c.h.b16 %v4642
        %v4727 = vunpack.c.h.b16 %v4643
        %v4728 = vunpack.c.l.b16 %v4644
        %v4729 = vunpack.c.l.b16 %v4645
        %v4730 = vunpack.c.h.b16 %v4644
        %v4731 = vunpack.c.h.b16 %v4645
        %v4732 = vunpack.c.l.b16 %v4646
        %v4733 = vunpack.c.l.b16 %v4647
        %v4734 = vunpack.c.h.b16 %v4646
        %v4735 = vunpack.c.h.b16 %v4647
        %v4736 = vunpack.c.l.b16 %v4648
        %v4737 = vunpack.c.l.b16 %v4649
        %v4738 = vunpack.c.h.b16 %v4648
        %v4739 = vunpack.c.h.b16 %v4649
        %v4740 = vunpack.c.l.b16 %v4650
        %v4741 = vunpack.c.l.b16 %v4651
        %v4742 = vunpack.c.h.b16 %v4650
        %v4743 = vunpack.c.h.b16 %v4651
        %v4744 = vunpack.c.l.b16 %v4652
        %v4745 = vunpack.c.l.b16 %v4653
        %v4746 = vunpack.c.h.b16 %v4652
        %v4747 = vunpack.c.h.b16 %v4653
        %v4748 = vunpack.c.l.b16 %v4654
        %v4749 = vunpack.c.l.b16 %v4655
        %v4750 = vunpack.c.h.b16 %v4654
        %v4751 = vunpack.c.h.b16 %v4655
        %v4752 = vunpack.c.l.b16 %v4656
        %v4753 = vunpack.c.l.b16 %v4657
        %v4754 = vunpack.c.h.b16 %v4656
        %v4755 = vunpack.c.h.b16 %v4657
        %v4756 = vunpack.c.l.b16 %v4658
        %v4757 = vunpack.c.l.b16 %v4659
        %v4758 = vunpack.c.h.b16 %v4658
        %v4759 = vunpack.c.h.b16 %v4659
        %v4760 = vunpack.c.l.b16 %v4660
        %v4761 = vunpack.c.l.b16 %v4661
        %v4762 = vunpack.c.h.b16 %v4660
        %v4763 = vunpack.c.h.b16 %v4661
        %v4764 = vunpack.c.l.b16 %v4662
        %v4765 = vunpack.c.l.b16 %v4663
        %v4766 = vunpack.c.h.b16 %v4662
        %v4767 = vunpack.c.h.b16 %v4663
        %v4768 = vunpack.c.l.b16 %v4664
        %v4769 = vunpack.c.l.b16 %v4665
        %v4770 = vunpack.c.h.b16 %v4664
        %v4771 = vunpack.c.h.b16 %v4665
        %v4772 = vunpack.c.l.b16 %v4666
        %v4773 = vunpack.c.l.b16 %v4667
        %v4774 = vunpack.c.h.b16 %v4666
        %v4775 = vunpack.c.h.b16 %v4667
        %v4776 = vunpack.c.l.b16 %v4668
        %v4777 = vunpack.c.l.b16 %v4669
        %v4778 = vunpack.c.h.b16 %v4668
        %v4779 = vunpack.c.h.b16 %v4669
        %v4780 = vunpack.c.l.b16 %v4670
        %v4781 = vunpack.c.l.b16 %v4671
        %v4782 = vunpack.c.h.b16 %v4670
        %v4783 = vunpack.c.h.b16 %v4671
        %v4784 = vunpack.c.l.b16 %v4672
        %v4785 = vunpack.c.l.b16 %v4673
        %v4786 = vunpack.c.h.b16 %v4672
        %v4787 = vunpack.c.h.b16 %v4673
        %v4788 = vunpack.c.l.b16 %v4674
        %v4789 = vunpack.c.l.b16 %v4675
        %v4790 = vunpack.c.h.b16 %v4674
        %v4791 = vunpack.c.h.b16 %v4675
        %v4792 = vunpack.c.l.b16 %v4676
        %v4793 = vunpack.c.l.b16 %v4677
        %v4794 = vunpack.c.h.b16 %v4676
        %v4795 = vunpack.c.h.b16 %v4677
        %v4796 = vunpack.c.l.b16 %v4678
        %v4797 = vunpack.c.l.b16 %v4679
        %v4798 = vunpack.c.h.b16 %v4678
        %v4799 = vunpack.c.h.b16 %v4679
        %v4800 = vpack.c.b16 %v4721, %v4720
        %v4801 = vpack.c.b16 %v4723, %v4722
        %v4802 = vpack.c.b16 %v4725, %v4724
        %v4803 = vpack.c.b16 %v4727, %v4726
        %v4804 = vpack.c.b16 %v4729, %v4728
        %v4805 = vpack.c.b16 %v4731, %v4730
        %v4806 = vpack.c.b16 %v4733, %v4732
        %v4807 = vpack.c.b16 %v4735, %v4734
        %v4808 = vpack.c.b16 %v4737, %v4736
        %v4809 = vpack.c.b16 %v4739, %v4738
        %v4810 = vpack.c.b16 %v4741, %v4740
        %v4811 = vpack.c.b16 %v4743, %v4742
        %v4812 = vpack.c.b16 %v4745, %v4744
        %v4813 = vpack.c.b16 %v4747, %v4746
        %v4814 = vpack.c.b16 %v4749, %v4748
        %v4815 = vpack.c.b16 %v4751, %v4750
        %v4816 = vpack.c.b16 %v4753, %v4752
        %v4817 = vpack.c.b16 %v4755, %v4754
        %v4818 = vpack.c.b16 %v4757, %v4756
        %v4819 = vpack.c.b16 %v4759, %v4758
        %v4820 = vpack.c.b16 %v4761, %v4760
        %v4821 = vpack.c.b16 %v4763, %v4762
        %v4822 = vpack.c.b16 %v4765, %v4764
        %v4823 = vpack.c.b16 %v4767, %v4766
        %v4824 = vpack.c.b16 %v4769, %v4768
        %v4825 = vpack.c.b16 %v4771, %v4770
        %v4826 = vpack.c.b16 %v4773, %v4772
        %v4827 = vpack.c.b16 %v4775, %v4774
        %v4828 = vpack.c.b16 %v4777, %v4776
        %v4829 = vpack.c.b16 %v4779, %v4778
        %v4830 = vpack.c.b16 %v4781, %v4780
        %v4831 = vpack.c.b16 %v4783, %v4782
        %v4832 = vpack.c.b16 %v4785, %v4784
        %v4833 = vpack.c.b16 %v4787, %v4786
        %v4834 = vpack.c.b16 %v4789, %v4788
        %v4835 = vpack.c.b16 %v4791, %v4790
        %v4836 = vpack.c.b16 %v4793, %v4792
        %v4837 = vpack.c.b16 %v4795, %v4794
        %v4838 = vpack.c.b16 %v4797, %v4796
        %v4839 = vpack.c.b16 %v4799, %v4798
        %4880 = vst [vmem:[%s270] sm:$0xff] %v4800
        %4881 = vst [vmem:[%s270 + $0x8] sm:$0xff] %v4801
        %4882 = vst [vmem:[%s270 + $0x10] sm:$0xff] %v4802
        %4883 = vst [vmem:[%s270 + $0x18] sm:$0xff] %v4803
        %4884 = vst [vmem:[%s270 + $0x20] sm:$0xff] %v4804
        %4885 = vst [vmem:[%s270 + $0x28] sm:$0xff] %v4805
        %4886 = vst [vmem:[%s270 + $0x30] sm:$0xff] %v4806
        %4887 = vst [vmem:[%s270 + $0x38] sm:$0xff] %v4807
        %4888 = vst [vmem:[%s270 + $0x40] sm:$0xff] %v4808
        %4889 = vst [vmem:[%s270 + $0x48] sm:$0xff] %v4809
        %4890 = vst [vmem:[%s270 + $0x50] sm:$0xff] %v4810
        %4891 = vst [vmem:[%s270 + $0x58] sm:$0xff] %v4811
        %4892 = vst [vmem:[%s270 + $0x60] sm:$0xff] %v4812
        %4893 = vst [vmem:[%s270 + $0x68] sm:$0xff] %v4813
        %4894 = vst [vmem:[%s270 + $0x70] sm:$0xff] %v4814
        %4895 = vst [vmem:[%s270 + $0x78] sm:$0xff] %v4815
        %4896 = vst [vmem:[%s270 + $0x80] sm:$0xff] %v4816
        %4897 = vst [vmem:[%s270 + $0x88] sm:$0xff] %v4817
        %4898 = vst [vmem:[%s270 + $0x90] sm:$0xff] %v4818
        %4899 = vst [vmem:[%s270 + $0x98] sm:$0xff] %v4819
        %4900 = vst [vmem:[%s270 + $0xa0] sm:$0xff] %v4820
        %4901 = vst [vmem:[%s270 + $0xa8] sm:$0xff] %v4821
        %4902 = vst [vmem:[%s270 + $0xb0] sm:$0xff] %v4822
        %4903 = vst [vmem:[%s270 + $0xb8] sm:$0xff] %v4823
        %4904 = vst [vmem:[%s270 + $0xc0] sm:$0xff] %v4824
        %4905 = vst [vmem:[%s270 + $0xc8] sm:$0xff] %v4825
        %4906 = vst [vmem:[%s270 + $0xd0] sm:$0xff] %v4826
        %4907 = vst [vmem:[%s270 + $0xd8] sm:$0xff] %v4827
        %4908 = vst [vmem:[%s270 + $0xe0] sm:$0xff] %v4828
        %4909 = vst [vmem:[%s270 + $0xe8] sm:$0xff] %v4829
        %4910 = vst [vmem:[%s270 + $0xf0] sm:$0xff] %v4830
        %4911 = vst [vmem:[%s270 + $0xf8] sm:$0xff] %v4831
        %4912 = vst [vmem:[%s270 + $0x100] sm:$0xff] %v4832
        %4913 = vst [vmem:[%s270 + $0x108] sm:$0xff] %v4833
        %4914 = vst [vmem:[%s270 + $0x110] sm:$0xff] %v4834
        %4915 = vst [vmem:[%s270 + $0x118] sm:$0xff] %v4835
        %4916 = vst [vmem:[%s270 + $0x120] sm:$0xff] %v4836
        %4917 = vst [vmem:[%s270 + $0x128] sm:$0xff] %v4837
        %4918 = vst [vmem:[%s270 + $0x130] sm:$0xff] %v4838
        %4919 = vst [vmem:[%s270 + $0x138] sm:$0xff] %v4839
        %s4920 = sand.u32 %s134, 1
        %s4921 = scalar_lea.sflag [#allocation5], %s4920
        %s4922 = sand.u32 %s134, 1
        %s4923 = smul.addr %s4922, 320
        %s4924 = scalar_lea.vmem [#allocation11], %s4923
        // Predicated region
        $region53: #{conv_block_forward_nhwc.1} parent=35 // pred_check
          %p4925 = pneg %p144
        $region54: #{conv_block_forward_nhwc.1} parent=35 // pred_check_branch
          %4927 = sbr.rel (%p4925) target = $region56
        $region55: #{conv_block_forward_nhwc.1} parent=35 // pred_region
          %s4929 = ssub.s32 5120, 5120
          %4930 = vsyncadd %s4921, %s4929
          %s4931 = smul.addr %s27, 80
          %s4932 = smul.addr %s4931, 64
          %s4933 = scalar_lea.hbm %s4, %s4932
          %s4934 = sshll.u32 %s4924, 4
          %s4935 = int_to_ptr.vmem [resolvable:$true] %s4934
          %4940 = dma.vmem_to_hbm [thread:$0]  %s4935, 5120, %s4933, %s4921, 128, 128, 8
        $region56: #{conv_block_forward_nhwc.1} parent=35 // pred_fallthru
          _
      $region36: #{conv_block_forward_nhwc.1} parent=5 // pred_fallthru
        _
      %p4941 = scmp.le.s32.totalorder 2, %s18
      // Predicated region
      $region57: #{conv_block_forward_nhwc.1} parent=5 // pred_check
        %p4942 = pneg %p4941
      $region58: #{conv_block_forward_nhwc.1} parent=5 // pred_check_branch
        %4944 = sbr.rel (%p4942) target = $region60
      $region59: #{conv_block_forward_nhwc.1} parent=5 // pred_region
        %s4945 = ssub.s32 %s18, 2
        // Predicated region
        $region61: #{conv_block_forward_nhwc.1} parent=59 // pred_check
          %p4946 = pneg %p150
        $region62: #{conv_block_forward_nhwc.1} parent=59 // pred_check_branch
          %4948 = sbr.rel (%p4946) target = $region64
        $region63: #{conv_block_forward_nhwc.1} parent=59 // pred_region
          %s4949 = sand.u32 %s135, 1
          %s4950 = scalar_lea.sflag [#allocation5], %s4949
          %s4951 = sand.u32 %s135, 1
          %s4952 = smul.addr %s4951, 320
          %s4953 = scalar_lea.vmem [#allocation11], %s4952
          %4954 = dma.done %s4950, 5120
        $region64: #{conv_block_forward_nhwc.1} parent=59 // pred_fallthru
          _
      $region60: #{conv_block_forward_nhwc.1} parent=5 // pred_fallthru
        _
    $region6: #{conv_block_forward_nhwc.1} parent=1 // loop_footer
      %s22 = sadd.s32 1, %s18
    $region7: #{conv_block_forward_nhwc.1} parent=1 // loop_footer_branch
      %17 = sbr.rel target = $region3
    $region8: #{conv_block_forward_nhwc.1} parent=1 // loop_exit
      _
    %4955 = vsyncpa [#allocation4], 1
    %s4956 = scalar_lea.sflag [#allocation4], 1
    %4957 = vsyncpa %s4956, 1
    %4958 = vsyncpa [#allocation7], 1
    %4959 = vsyncpa [#allocation10], 1
    %4960 = vsyncpa [#allocation5], 1
    %s4961 = scalar_lea.sflag [#allocation5], 1
    %4962 = vsyncpa %s4961, 1

</llo_original>
